<compile_context>
chip_gen: v5e
topology: v5e:2x2
jax: 0.10.0
libtpu: 0.0.40
codegen_flags: <defaults>
</compile_context>

<pallas_src>
import functools

import jax
import jax.numpy as jnp
from jax.experimental import pallas as pl
from jax.experimental.pallas import tpu as pltpu


# ----------------------------------------------------------------------------
# Fully fused SSA kernel (one batch sample per grid step)
# ----------------------------------------------------------------------------
def _ssa_kernel(s_ldm_ref, t_ldm_ref, sface_ref, pre_ref, tface_ref,
                w_ldm_ref, b_ldm_ref, w_c12_ref, b_c12_ref,
                w_c3_ref, b_c3_ref, w_gb_ref, b_gb_ref,
                o_ref, xp_ref, *, H, W, fa, in_ch, out_ch, eps):
    HW = H * W
    f32 = jnp.float32
    c_rows = xp_ref.shape[0]

    # Zero ONLY the two border strips that are ever read as H-direction
    # padding (windows read columns [W-1, 2W) and [2W+HW, 3W+HW+1)); the image
    # region [2W, 2W+HW) is overwritten by every conv's own input copy.
    # Re-zeroed each grid step so it is correct under megacore sharding.
    xp_ref[:, 0:2 * W] = jnp.zeros((c_rows, 2 * W), f32)
    xp_ref[:, 2 * W + HW:4 * W + HW] = jnp.zeros((c_rows, 2 * W), f32)

    # W-direction validity masks, applied ONCE per (Cout, HW) tap-group output
    # (the per-column mask commutes with the channel contraction).
    col = jax.lax.broadcasted_iota(jnp.int32, (1, HW), 1) % W
    mask_left = (col >= 1).astype(f32)        # tap dx = -1 valid iff x-1 >= 0
    mask_right = (col <= W - 2).astype(f32)   # tap dx = +1 valid iff x+1 <  W

    def conv3x3(cin, w_ref, b_ref, act=False):
        # Input must already be written to xp_ref[0:cin, 2W:2W+HW].
        # w_ref: (9, Cout, Cin) with tap = ky*3 + kx ; b_ref: (Cout, 1)
        cout = w_ref.shape[1]
        acc_l = jnp.zeros((cout, HW), f32)   # dx = -1 taps
        acc_c = jnp.zeros((cout, HW), f32)   # dx =  0 taps
        acc_r = jnp.zeros((cout, HW), f32)   # dx = +1 taps
        for ky in range(3):                  # dy = ky - 1
            base = (ky + 1) * W
            acc_l = acc_l + jnp.dot(w_ref[ky * 3 + 0],
                                    xp_ref[0:cin, base - 1:base - 1 + HW],
                                    preferred_element_type=f32)
            acc_c = acc_c + jnp.dot(w_ref[ky * 3 + 1],
                                    xp_ref[0:cin, base:base + HW],
                                    preferred_element_type=f32)
            acc_r = acc_r + jnp.dot(w_ref[ky * 3 + 2],
                                    xp_ref[0:cin, base + 1:base + 1 + HW],
                                    preferred_element_type=f32)
        acc = acc_c + acc_l * mask_left + acc_r * mask_right + b_ref[...]
        if act:                              # LeakyReLU(0.1)
            acc = jnp.where(acc > 0, acc, 0.1 * acc)
        return acc

    # --- fused ldmsConv1 + ldmsConv2 (block-diagonal weight) -----------------
    cs = s_ldm_ref.shape[1]
    ct = t_ldm_ref.shape[1]
    xp_ref[0:cs, 2 * W:2 * W + HW] = s_ldm_ref[0].astype(f32)
    xp_ref[cs:cs + ct, 2 * W:2 * W + HW] = t_ldm_ref[0].astype(f32)
    ldm = conv3x3(cs + ct, w_ldm_ref, b_ldm_ref)     # rows 0..fa-1 = x_s_l,
    #                                                # rows fa..2fa-1 = x_t_l
    # --- fused conv1 + conv2 (block-diagonal weight) -------------------------
    sf = sface_ref[0].astype(f32) * ldm[0:fa]        # sface * x_s_l
    xp_ref[0:fa, 2 * W:2 * W + HW] = sf
    xp_ref[fa:2 * fa, 2 * W:2 * W + HW] = ldm[fa:2 * fa]
    xp_ref[2 * fa:2 * fa + in_ch, 2 * W:2 * W + HW] = pre_ref[0].astype(f32)
    c12 = conv3x3(2 * fa + in_ch, w_c12_ref, b_c12_ref, act=True)
    h3_in = c12[0:fa] + c12[fa:2 * fa]               # lrelu(conv1)+lrelu(conv2)

    # --- conv3 ---------------------------------------------------------------
    xp_ref[0:fa, 2 * W:2 * W + HW] = h3_in
    h = conv3x3(fa, w_c3_ref, b_c3_ref)              # (out_ch, HW)

    # --- InstanceNorm2d (per-channel over spatial, biased var, no affine) ----
    mean = jnp.mean(h, axis=1, keepdims=True)
    m2 = jnp.mean(h * h, axis=1, keepdims=True)
    var = m2 - mean * mean                           # single-pass statistics
    h_norm = (h - mean) * jax.lax.rsqrt(var + eps)

    # --- fused 1x1 spd convs: rows 0..out_ch-1 = gamma (spd2), rest = beta ---
    tf = tface_ref[0].astype(f32)                    # (3, HW)
    gb = jnp.dot(w_gb_ref[...], tf, preferred_element_type=f32) + b_gb_ref[...]
    gamma = gb[0:out_ch]
    beta = gb[out_ch:2 * out_ch]
    o_ref[0] = (gamma * h_norm + beta).astype(o_ref.dtype)


# ----------------------------------------------------------------------------
# One-time weight repacking (keep out of the per-call hot path)
# ----------------------------------------------------------------------------
def pack_ssa_params(params):
    def pack_w3(w):   # (Cout, Cin, 3, 3) -> (9, Cout, Cin), tap = ky*3 + kx
        return jnp.transpose(w, (2, 3, 0, 1)).reshape(9, w.shape[0], w.shape[1])

    fa = params["ldm1_w"].shape[0]
    in_ch = params["conv2_w"].shape[1]
    out_ch = params["spd1_w"].shape[0]

    # Fused ldm conv: block-diag (9, 2*fa, 136); s_ldm in cols 0..67, t_ldm 68..
    wl1, wl2 = pack_w3(params["ldm1_w"]), pack_w3(params["ldm2_w"])
    zl = jnp.zeros_like(wl1)
    w_ldm = jnp.concatenate([jnp.concatenate([wl1, zl], axis=2),
                             jnp.concatenate([zl, wl2], axis=2)], axis=1)
    b_ldm = jnp.concatenate([params["ldm1_b"], params["ldm2_b"]]).reshape(-1, 1)

    # Fused conv1+conv2: block-diag (9, 2*fa, 2*fa + in_ch)
    wc1, wc2 = pack_w3(params["conv1_w"]), pack_w3(params["conv2_w"])
    w_c12 = jnp.concatenate(
        [jnp.concatenate([wc1, jnp.zeros((9, fa, in_ch), wc1.dtype)], axis=2),
         jnp.concatenate([jnp.zeros((9, fa, 2 * fa), wc2.dtype), wc2], axis=2)],
        axis=1)
    b_c12 = jnp.concatenate([params["conv1_b"], params["conv2_b"]]).reshape(-1, 1)

    w_c3 = pack_w3(params["conv3_w"])
    b_c3 = params["conv3_b"].reshape(-1, 1)

    # Fused 1x1 spd convs: gamma (spd_conv2) rows first, then beta (spd_conv1).
    w_gb = jnp.concatenate([params["spd2_w"].reshape(out_ch, 3),
                            params["spd1_w"].reshape(out_ch, 3)], axis=0)
    b_gb = jnp.concatenate([params["spd2_b"], params["spd1_b"]]).reshape(-1, 1)

    return {"w_ldm": w_ldm, "b_ldm": b_ldm, "w_c12": w_c12, "b_c12": b_c12,
            "w_c3": w_c3, "b_c3": b_c3, "w_gb": w_gb, "b_gb": b_gb}


# ----------------------------------------------------------------------------
# SSA forward (Pallas path); tensor args are NCHW, output is NCHW.
# ----------------------------------------------------------------------------
def ssa_forward(packed, pre_stage, sface, tface, s_ldm, t_ldm):
    N, in_ch, H, W = pre_stage.shape
    fa = sface.shape[1]
    out_ch = packed["w_gb"].shape[0] // 2
    HW = H * W
    assert HW % 128 == 0 and W >= 2, "kernel assumes H*W % 128 == 0 and W >= 2"
    flat = lambda x: x.reshape(x.shape[0], x.shape[1], HW)    # free reshape

    cin_max = max(s_ldm.shape[1] + t_ldm.shape[1], 2 * fa + in_ch, fa)

    def xspec(c):
        return pl.BlockSpec((1, c, HW), lambda n: (n, 0, 0))

    def wspec(shape):
        return pl.BlockSpec(shape, lambda n, nd=len(shape): (0,) * nd)

    kernel = functools.partial(_ssa_kernel, H=H, W=W, fa=fa, in_ch=in_ch,
                               out_ch=out_ch, eps=1e-5)
    out = pl.pallas_call(
        kernel,
        out_shape=jax.ShapeDtypeStruct((N, out_ch, HW), pre_stage.dtype),
        grid=(N,),
        in_specs=[
            xspec(s_ldm.shape[1]), xspec(t_ldm.shape[1]), xspec(fa),
            xspec(in_ch), xspec(3),
            wspec(packed["w_ldm"].shape), wspec(packed["b_ldm"].shape),
            wspec(packed["w_c12"].shape), wspec(packed["b_c12"].shape),
            wspec(packed["w_c3"].shape), wspec(packed["b_c3"].shape),
            wspec(packed["w_gb"].shape), wspec(packed["b_gb"].shape),
        ],
        out_specs=pl.BlockSpec((1, out_ch, HW), lambda n: (n, 0, 0)),
        scratch_shapes=[pltpu.VMEM((cin_max, HW + 4 * W), jnp.float32)],
        compiler_params=pltpu.CompilerParams(
            dimension_semantics=("parallel",)),
    )(flat(s_ldm), flat(t_ldm), flat(sface), flat(pre_stage), flat(tface),
      packed["w_ldm"], packed["b_ldm"], packed["w_c12"], packed["b_c12"],
      packed["w_c3"], packed["b_c3"], packed["w_gb"], packed["b_gb"])
    return out.reshape(N, out_ch, H, W)


# ----------------------------------------------------------------------------
# Pure-JAX reference (for correctness check)
# ----------------------------------------------------------------------------
def ssa_reference(params, pre_stage, sface, tface, s_ldm, t_ldm):
    def conv(x, w, b, pad):
        y = jax.lax.conv_general_dilated(
            x, w, (1, 1), [(pad, pad), (pad, pad)],
            dimension_numbers=("NCHW", "OIHW", "NCHW"))
        return y + b[None, :, None, None]

    lrelu = lambda x: jnp.where(x > 0, x, 0.1 * x)
    x_s_l = conv(s_ldm, params["ldm1_w"], params["ldm1_b"], 1)
    x_t_l = conv(t_ldm, params["ldm2_w"], params["ldm2_b"], 1)
    sf = sface * x_s_l
    h = jnp.concatenate([sf, x_t_l], axis=1)
    h = lrelu(conv(h, params["conv1_w"], params["conv1_b"], 1))
    ps = lrelu(conv(pre_stage, params["conv2_w"], params["conv2_b"], 1))
    h = ps + h
    h = conv(h, params["conv3_w"], params["conv3_b"], 1)
    mean = jnp.mean(h, axis=(2, 3), keepdims=True)
    var = jnp.mean((h - mean) ** 2, axis=(2, 3), keepdims=True)
    h_norm = (h - mean) / jnp.sqrt(var + 1e-5)
    att_beta = conv(tface, params["spd1_w"], params["spd1_b"], 0)
    att_gamma = conv(tface, params["spd2_w"], params["spd2_b"], 0)
    return att_gamma * h_norm + att_beta


# ----------------------------------------------------------------------------
# Deterministic parameter init
# ----------------------------------------------------------------------------
def make_params(in_ch, face_attr_in, out_ch, key):
    def conv_init(key, cout, cin, k):
        kw, kb = jax.random.split(key)
        scale = 1.0 / jnp.sqrt(cin * k * k)
        w = jax.random.normal(kw, (cout, cin, k, k), jnp.float32) * scale
        b = jax.random.normal(kb, (cout,), jnp.float32) * scale
        return w, b

    keys = jax.random.split(key, 7)
    p = {}
    p["ldm1_w"], p["ldm1_b"] = conv_init(keys[0], face_attr_in, 68, 3)
    p["ldm2_w"], p["ldm2_b"] = conv_init(keys[1], face_attr_in, 68, 3)
    p["conv1_w"], p["conv1_b"] = conv_init(keys[2], face_attr_in,
                                           2 * face_attr_in, 3)
    p["conv2_w"], p["conv2_b"] = conv_init(keys[3], face_attr_in, in_ch, 3)
    p["conv3_w"], p["conv3_b"] = conv_init(keys[4], out_ch, face_attr_in, 3)
    p["spd1_w"], p["spd1_b"] = conv_init(keys[5], out_ch, 3, 1)
    p["spd2_w"], p["spd2_b"] = conv_init(keys[6], out_ch, 3, 1)
    return p


if __name__ == "__main__":
    in_ch, face_attr_in, out_ch = 4, 8, 4
    N, H, W = 2, 16, 16

    root = jax.random.PRNGKey(0)
    kp, k1, k2, k3, k4, k5 = jax.random.split(root, 6)
    params = make_params(in_ch, face_attr_in, out_ch, kp)
    packed = pack_ssa_params(params)

    pre_stage = jax.random.normal(k1, (N, in_ch, H, W), jnp.float32)
    sface = jax.random.normal(k2, (N, face_attr_in, H, W), jnp.float32)
    tface = jax.random.normal(k3, (N, 3, H, W), jnp.float32)
    s_ldm = jax.random.normal(k4, (N, 68, H, W), jnp.float32)
    t_ldm = jax.random.normal(k5, (N, 68, H, W), jnp.float32)

    fwd = jax.jit(ssa_forward)
    out = jax.block_until_ready(
        fwd(packed, pre_stage, sface, tface, s_ldm, t_ldm))

    ref = jax.block_until_ready(
        ssa_reference(params, pre_stage, sface, tface, s_ldm, t_ldm))
    assert out.shape == (N, out_ch, H, W), out.shape
    max_err = float(jnp.max(jnp.abs(out - ref)))
    assert max_err < 1e-3, f"mismatch vs reference: {max_err}"

    print("KERNEL_OK")
</pallas_src>

<mosaic_0001>
module attributes {stable_mosaic.version = 11 : i64} {
  func.func @_ssa_kernel(%arg0: i32, %arg1: memref<1x68x256xf32, #tpu.memory_space<vmem>>, %arg2: memref<1x68x256xf32, #tpu.memory_space<vmem>>, %arg3: memref<1x8x256xf32, #tpu.memory_space<vmem>>, %arg4: memref<1x4x256xf32, #tpu.memory_space<vmem>>, %arg5: memref<1x3x256xf32, #tpu.memory_space<vmem>>, %arg6: memref<9x16x136xf32, #tpu.memory_space<vmem>>, %arg7: memref<16x1xf32, #tpu.memory_space<vmem>>, %arg8: memref<9x16x20xf32, #tpu.memory_space<vmem>>, %arg9: memref<16x1xf32, #tpu.memory_space<vmem>>, %arg10: memref<9x4x8xf32, #tpu.memory_space<vmem>>, %arg11: memref<4x1xf32, #tpu.memory_space<vmem>>, %arg12: memref<8x3xf32, #tpu.memory_space<vmem>>, %arg13: memref<8x1xf32, #tpu.memory_space<vmem>>, %arg14: memref<1x4x256xf32, #tpu.memory_space<vmem>>, %arg15: memref<136x320xf32, #tpu.memory_space<vmem>>) attributes {dimension_semantics = [#tpu.dimension_semantics<parallel>], iteration_bounds = array<i64: 2>, scalar_prefetch = 0 : i64, scratch_operands = 1 : i64, tpu.core_type = #tpu.core_type<tc>, window_params = [{transform_indices = @transform_0, window_bounds = array<i64: 1, 68, 256>}, {transform_indices = @transform_1, window_bounds = array<i64: 1, 68, 256>}, {transform_indices = @transform_2, window_bounds = array<i64: 1, 8, 256>}, {transform_indices = @transform_3, window_bounds = array<i64: 1, 4, 256>}, {transform_indices = @transform_4, window_bounds = array<i64: 1, 3, 256>}, {pipeline_mode = #tpu.pipeline_mode<synchronous>, transform_indices = @transform_5, window_bounds = array<i64: 9, 16, 136>}, {pipeline_mode = #tpu.pipeline_mode<synchronous>, transform_indices = @transform_6, window_bounds = array<i64: 16, 1>}, {pipeline_mode = #tpu.pipeline_mode<synchronous>, transform_indices = @transform_7, window_bounds = array<i64: 9, 16, 20>}, {pipeline_mode = #tpu.pipeline_mode<synchronous>, transform_indices = @transform_8, window_bounds = array<i64: 16, 1>}, {pipeline_mode = #tpu.pipeline_mode<synchronous>, transform_indices = @transform_9, window_bounds = array<i64: 9, 4, 8>}, {pipeline_mode = #tpu.pipeline_mode<synchronous>, transform_indices = @transform_10, window_bounds = array<i64: 4, 1>}, {pipeline_mode = #tpu.pipeline_mode<synchronous>, transform_indices = @transform_11, window_bounds = array<i64: 8, 3>}, {pipeline_mode = #tpu.pipeline_mode<synchronous>, transform_indices = @transform_12, window_bounds = array<i64: 8, 1>}, {transform_indices = @transform_13, window_bounds = array<i64: 1, 4, 256>}]} {
    %cst = arith.constant 0.000000e+00 : f32
    %0 = vector.broadcast %cst : f32 to vector<136x32xf32>
    %c0 = arith.constant 0 : index
    %c0_0 = arith.constant 0 : index
    %1 = vector.load %arg15[%c0, %c0_0] : memref<136x320xf32, #tpu.memory_space<vmem>>, vector<136x32xf32>
    tpu.vector_store %arg15[%c0, %c0_0], %0 {strides = array<i32>} : memref<136x320xf32, #tpu.memory_space<vmem>>, vector<136x32xf32>,
    %cst_1 = arith.constant 0.000000e+00 : f32
    %2 = vector.broadcast %cst_1 : f32 to vector<136x32xf32>
    %c0_2 = arith.constant 0 : index
    %c288 = arith.constant 288 : index
    %3 = vector.load %arg15[%c0_2, %c288] : memref<136x320xf32, #tpu.memory_space<vmem>>, vector<136x32xf32>
    tpu.vector_store %arg15[%c0_2, %c288], %2 {strides = array<i32>} : memref<136x320xf32, #tpu.memory_space<vmem>>, vector<136x32xf32>,
    %4 = tpu.iota {dimensions = array<i32: 1>} : vector<1x256xi32>
    %c16_i32 = arith.constant 16 : i32
    %c0_i32 = arith.constant 0 : i32
    %5 = arith.cmpi eq, %c16_i32, %c0_i32 : i32
    %c1_i32 = arith.constant 1 : i32
    %6 = arith.select %5, %c1_i32, %c16_i32 : i32
    %7 = vector.broadcast %6 : i32 to vector<1x256xi32>
    %8 = arith.remsi %4, %7 : vector<1x256xi32>
    %c0_i32_3 = arith.constant 0 : i32
    %9 = vector.broadcast %c0_i32_3 : i32 to vector<1x256xi32>
    %10 = arith.cmpi ne, %8, %9 : vector<1x256xi32>
    %c0_i32_4 = arith.constant 0 : i32
    %11 = vector.broadcast %c0_i32_4 : i32 to vector<1x256xi32>
    %12 = arith.cmpi slt, %8, %11 : vector<1x256xi32>
    %c0_i32_5 = arith.constant 0 : i32
    %13 = arith.cmpi slt, %6, %c0_i32_5 : i32
    %14 = vector.broadcast %13 : i1 to vector<1x256xi1>
    %15 = vector.broadcast %14 : vector<1x256xi1> to vector<1x256xi1>
    %16 = arith.xori %12, %15 : vector<1x256xi1>
    %17 = arith.andi %16, %10 : vector<1x256xi1>
    %18 = vector.broadcast %6 : i32 to vector<1x256xi32>
    %19 = arith.addi %8, %18 : vector<1x256xi32>
    %20 = arith.select %17, %19, %8 : vector<1x256xi1>, vector<1x256xi32>
    %c1_i32_6 = arith.constant 1 : i32
    %21 = vector.broadcast %c1_i32_6 : i32 to vector<1x256xi32>
    %22 = arith.cmpi sge, %20, %21 : vector<1x256xi32>
    %23 = arith.extui %22 : vector<1x256xi1> to vector<1x256xi32>
    %24 = arith.sitofp %23 : vector<1x256xi32> to vector<1x256xf32>
    %c14_i32 = arith.constant 14 : i32
    %25 = vector.broadcast %c14_i32 : i32 to vector<1x256xi32>
    %26 = arith.cmpi sle, %20, %25 : vector<1x256xi32>
    %27 = arith.extui %26 : vector<1x256xi1> to vector<1x256xi32>
    %28 = arith.sitofp %27 : vector<1x256xi32> to vector<1x256xf32>
    %c0_7 = arith.constant 0 : index
    %c0_8 = arith.constant 0 : index
    %c0_9 = arith.constant 0 : index
    %29 = vector.load %arg1[%c0_7, %c0_8, %c0_9] : memref<1x68x256xf32, #tpu.memory_space<vmem>>, vector<1x68x256xf32>
    %30 = vector.shape_cast %29 : vector<1x68x256xf32> to vector<68x256xf32>
    %c0_10 = arith.constant 0 : index
    %c32 = arith.constant 32 : index
    %31 = vector.load %arg15[%c0_10, %c32] : memref<136x320xf32, #tpu.memory_space<vmem>>, vector<68x256xf32>
    tpu.vector_store %arg15[%c0_10, %c32], %30 {strides = array<i32>} : memref<136x320xf32, #tpu.memory_space<vmem>>, vector<68x256xf32>,
    %c0_11 = arith.constant 0 : index
    %c0_12 = arith.constant 0 : index
    %c0_13 = arith.constant 0 : index
    %32 = vector.load %arg2[%c0_11, %c0_12, %c0_13] : memref<1x68x256xf32, #tpu.memory_space<vmem>>, vector<1x68x256xf32>
    %33 = vector.shape_cast %32 : vector<1x68x256xf32> to vector<68x256xf32>
    %c68 = arith.constant 68 : index
    %c32_14 = arith.constant 32 : index
    %34 = vector.load %arg15[%c68, %c32_14] : memref<136x320xf32, #tpu.memory_space<vmem>>, vector<68x256xf32>
    tpu.vector_store %arg15[%c68, %c32_14], %33 {strides = array<i32>} : memref<136x320xf32, #tpu.memory_space<vmem>>, vector<68x256xf32>,
    %cst_15 = arith.constant 0.000000e+00 : f32
    %35 = vector.broadcast %cst_15 : f32 to vector<16x256xf32>
    %cst_16 = arith.constant 0.000000e+00 : f32
    %36 = vector.broadcast %cst_16 : f32 to vector<16x256xf32>
    %cst_17 = arith.constant 0.000000e+00 : f32
    %37 = vector.broadcast %cst_17 : f32 to vector<16x256xf32>
    %c0_18 = arith.constant 0 : index
    %c0_19 = arith.constant 0 : index
    %c0_20 = arith.constant 0 : index
    %38 = vector.load %arg6[%c0_18, %c0_19, %c0_20] : memref<9x16x136xf32, #tpu.memory_space<vmem>>, vector<1x16x136xf32>
    %39 = vector.shape_cast %38 : vector<1x16x136xf32> to vector<16x136xf32>
    %c0_21 = arith.constant 0 : index
    %c15 = arith.constant 15 : index
    %40 = vector.load %arg15[%c0_21, %c15] : memref<136x320xf32, #tpu.memory_space<vmem>>, vector<136x256xf32>
    %cst_22 = arith.constant dense<0.000000e+00> : vector<16x256xf32>
    %41 = tpu.matmul %39, %40, %cst_22 {dimension_numbers = #tpu.dot_dimension_numbers<[1], [0], [0], [1], [0, 0, 1, 1], [], []>} : vector<16x136xf32>, vector<136x256xf32>, vector<16x256xf32> -> vector<16x256xf32>
    %42 = arith.addf %35, %41 : vector<16x256xf32>
    %c1 = arith.constant 1 : index
    %c0_23 = arith.constant 0 : index
    %c0_24 = arith.constant 0 : index
    %43 = vector.load %arg6[%c1, %c0_23, %c0_24] : memref<9x16x136xf32, #tpu.memory_space<vmem>>, vector<1x16x136xf32>
    %44 = vector.shape_cast %43 : vector<1x16x136xf32> to vector<16x136xf32>
    %c0_25 = arith.constant 0 : index
    %c16 = arith.constant 16 : index
    %45 = vector.load %arg15[%c0_25, %c16] : memref<136x320xf32, #tpu.memory_space<vmem>>, vector<136x256xf32>
    %cst_26 = arith.constant dense<0.000000e+00> : vector<16x256xf32>
    %46 = tpu.matmul %44, %45, %cst_26 {dimension_numbers = #tpu.dot_dimension_numbers<[1], [0], [0], [1], [0, 0, 1, 1], [], []>} : vector<16x136xf32>, vector<136x256xf32>, vector<16x256xf32> -> vector<16x256xf32>
    %47 = arith.addf %36, %46 : vector<16x256xf32>
    %c2 = arith.constant 2 : index
    %c0_27 = arith.constant 0 : index
    %c0_28 = arith.constant 0 : index
    %48 = vector.load %arg6[%c2, %c0_27, %c0_28] : memref<9x16x136xf32, #tpu.memory_space<vmem>>, vector<1x16x136xf32>
    %49 = vector.shape_cast %48 : vector<1x16x136xf32> to vector<16x136xf32>
    %c0_29 = arith.constant 0 : index
    %c17 = arith.constant 17 : index
    %50 = vector.load %arg15[%c0_29, %c17] : memref<136x320xf32, #tpu.memory_space<vmem>>, vector<136x256xf32>
    %cst_30 = arith.constant dense<0.000000e+00> : vector<16x256xf32>
    %51 = tpu.matmul %49, %50, %cst_30 {dimension_numbers = #tpu.dot_dimension_numbers<[1], [0], [0], [1], [0, 0, 1, 1], [], []>} : vector<16x136xf32>, vector<136x256xf32>, vector<16x256xf32> -> vector<16x256xf32>
    %52 = arith.addf %37, %51 : vector<16x256xf32>
    %c3 = arith.constant 3 : index
    %c0_31 = arith.constant 0 : index
    %c0_32 = arith.constant 0 : index
    %53 = vector.load %arg6[%c3, %c0_31, %c0_32] : memref<9x16x136xf32, #tpu.memory_space<vmem>>, vector<1x16x136xf32>
    %54 = vector.shape_cast %53 : vector<1x16x136xf32> to vector<16x136xf32>
    %c0_33 = arith.constant 0 : index
    %c31 = arith.constant 31 : index
    %55 = vector.load %arg15[%c0_33, %c31] : memref<136x320xf32, #tpu.memory_space<vmem>>, vector<136x256xf32>
    %cst_34 = arith.constant dense<0.000000e+00> : vector<16x256xf32>
    %56 = tpu.matmul %54, %55, %cst_34 {dimension_numbers = #tpu.dot_dimension_numbers<[1], [0], [0], [1], [0, 0, 1, 1], [], []>} : vector<16x136xf32>, vector<136x256xf32>, vector<16x256xf32> -> vector<16x256xf32>
    %57 = arith.addf %42, %56 : vector<16x256xf32>
    %c4 = arith.constant 4 : index
    %c0_35 = arith.constant 0 : index
    %c0_36 = arith.constant 0 : index
    %58 = vector.load %arg6[%c4, %c0_35, %c0_36] : memref<9x16x136xf32, #tpu.memory_space<vmem>>, vector<1x16x136xf32>
    %59 = vector.shape_cast %58 : vector<1x16x136xf32> to vector<16x136xf32>
    %c0_37 = arith.constant 0 : index
    %c32_38 = arith.constant 32 : index
    %60 = vector.load %arg15[%c0_37, %c32_38] : memref<136x320xf32, #tpu.memory_space<vmem>>, vector<136x256xf32>
    %cst_39 = arith.constant dense<0.000000e+00> : vector<16x256xf32>
    %61 = tpu.matmul %59, %60, %cst_39 {dimension_numbers = #tpu.dot_dimension_numbers<[1], [0], [0], [1], [0, 0, 1, 1], [], []>} : vector<16x136xf32>, vector<136x256xf32>, vector<16x256xf32> -> vector<16x256xf32>
    %62 = arith.addf %47, %61 : vector<16x256xf32>
    %c5 = arith.constant 5 : index
    %c0_40 = arith.constant 0 : index
    %c0_41 = arith.constant 0 : index
    %63 = vector.load %arg6[%c5, %c0_40, %c0_41] : memref<9x16x136xf32, #tpu.memory_space<vmem>>, vector<1x16x136xf32>
    %64 = vector.shape_cast %63 : vector<1x16x136xf32> to vector<16x136xf32>
    %c0_42 = arith.constant 0 : index
    %c33 = arith.constant 33 : index
    %65 = vector.load %arg15[%c0_42, %c33] : memref<136x320xf32, #tpu.memory_space<vmem>>, vector<136x256xf32>
    %cst_43 = arith.constant dense<0.000000e+00> : vector<16x256xf32>
    %66 = tpu.matmul %64, %65, %cst_43 {dimension_numbers = #tpu.dot_dimension_numbers<[1], [0], [0], [1], [0, 0, 1, 1], [], []>} : vector<16x136xf32>, vector<136x256xf32>, vector<16x256xf32> -> vector<16x256xf32>
    %67 = arith.addf %52, %66 : vector<16x256xf32>
    %c6 = arith.constant 6 : index
    %c0_44 = arith.constant 0 : index
    %c0_45 = arith.constant 0 : index
    %68 = vector.load %arg6[%c6, %c0_44, %c0_45] : memref<9x16x136xf32, #tpu.memory_space<vmem>>, vector<1x16x136xf32>
    %69 = vector.shape_cast %68 : vector<1x16x136xf32> to vector<16x136xf32>
    %c0_46 = arith.constant 0 : index
    %c47 = arith.constant 47 : index
    %70 = vector.load %arg15[%c0_46, %c47] : memref<136x320xf32, #tpu.memory_space<vmem>>, vector<136x256xf32>
    %cst_47 = arith.constant dense<0.000000e+00> : vector<16x256xf32>
    %71 = tpu.matmul %69, %70, %cst_47 {dimension_numbers = #tpu.dot_dimension_numbers<[1], [0], [0], [1], [0, 0, 1, 1], [], []>} : vector<16x136xf32>, vector<136x256xf32>, vector<16x256xf32> -> vector<16x256xf32>
    %72 = arith.addf %57, %71 : vector<16x256xf32>
    %c7 = arith.constant 7 : index
    %c0_48 = arith.constant 0 : index
    %c0_49 = arith.constant 0 : index
    %73 = vector.load %arg6[%c7, %c0_48, %c0_49] : memref<9x16x136xf32, #tpu.memory_space<vmem>>, vector<1x16x136xf32>
    %74 = vector.shape_cast %73 : vector<1x16x136xf32> to vector<16x136xf32>
    %c0_50 = arith.constant 0 : index
    %c48 = arith.constant 48 : index
    %75 = vector.load %arg15[%c0_50, %c48] : memref<136x320xf32, #tpu.memory_space<vmem>>, vector<136x256xf32>
    %cst_51 = arith.constant dense<0.000000e+00> : vector<16x256xf32>
    %76 = tpu.matmul %74, %75, %cst_51 {dimension_numbers = #tpu.dot_dimension_numbers<[1], [0], [0], [1], [0, 0, 1, 1], [], []>} : vector<16x136xf32>, vector<136x256xf32>, vector<16x256xf32> -> vector<16x256xf32>
    %77 = arith.addf %62, %76 : vector<16x256xf32>
    %c8 = arith.constant 8 : index
    %c0_52 = arith.constant 0 : index
    %c0_53 = arith.constant 0 : index
    %78 = vector.load %arg6[%c8, %c0_52, %c0_53] : memref<9x16x136xf32, #tpu.memory_space<vmem>>, vector<1x16x136xf32>
    %79 = vector.shape_cast %78 : vector<1x16x136xf32> to vector<16x136xf32>
    %c0_54 = arith.constant 0 : index
    %c49 = arith.constant 49 : index
    %80 = vector.load %arg15[%c0_54, %c49] : memref<136x320xf32, #tpu.memory_space<vmem>>, vector<136x256xf32>
    %cst_55 = arith.constant dense<0.000000e+00> : vector<16x256xf32>
    %81 = tpu.matmul %79, %80, %cst_55 {dimension_numbers = #tpu.dot_dimension_numbers<[1], [0], [0], [1], [0, 0, 1, 1], [], []>} : vector<16x136xf32>, vector<136x256xf32>, vector<16x256xf32> -> vector<16x256xf32>
    %82 = arith.addf %67, %81 : vector<16x256xf32>
    %83 = vector.broadcast %24 : vector<1x256xf32> to vector<16x256xf32>
    %84 = arith.mulf %72, %83 : vector<16x256xf32>
    %85 = arith.addf %77, %84 : vector<16x256xf32>
    %86 = vector.broadcast %28 : vector<1x256xf32> to vector<16x256xf32>
    %87 = arith.mulf %82, %86 : vector<16x256xf32>
    %88 = arith.addf %85, %87 : vector<16x256xf32>
    %c0_56 = arith.constant 0 : index
    %c0_57 = arith.constant 0 : index
    %89 = vector.load %arg7[%c0_56, %c0_57] : memref<16x1xf32, #tpu.memory_space<vmem>>, vector<16x1xf32>
    %90 = vector.broadcast %89 : vector<16x1xf32> to vector<16x256xf32>
    %91 = arith.addf %88, %90 : vector<16x256xf32>
    %c0_58 = arith.constant 0 : index
    %c0_59 = arith.constant 0 : index
    %c0_60 = arith.constant 0 : index
    %92 = vector.load %arg3[%c0_58, %c0_59, %c0_60] : memref<1x8x256xf32, #tpu.memory_space<vmem>>, vector<1x8x256xf32>
    %93 = vector.shape_cast %92 : vector<1x8x256xf32> to vector<8x256xf32>
    %94 = vector.extract_strided_slice %91 {offsets = [0, 0], sizes = [8, 256], strides = [1, 1]} : vector<16x256xf32> to vector<8x256xf32>
    %95 = arith.mulf %93, %94 : vector<8x256xf32>
    %c0_61 = arith.constant 0 : index
    %c32_62 = arith.constant 32 : index
    %96 = vector.load %arg15[%c0_61, %c32_62] : memref<136x320xf32, #tpu.memory_space<vmem>>, vector<8x256xf32>
    tpu.vector_store %arg15[%c0_61, %c32_62], %95 {strides = array<i32>} : memref<136x320xf32, #tpu.memory_space<vmem>>, vector<8x256xf32>,
    %97 = vector.extract_strided_slice %91 {offsets = [8, 0], sizes = [8, 256], strides = [1, 1]} : vector<16x256xf32> to vector<8x256xf32>
    %c8_63 = arith.constant 8 : index
    %c32_64 = arith.constant 32 : index
    %98 = vector.load %arg15[%c8_63, %c32_64] : memref<136x320xf32, #tpu.memory_space<vmem>>, vector<8x256xf32>
    tpu.vector_store %arg15[%c8_63, %c32_64], %97 {strides = array<i32>} : memref<136x320xf32, #tpu.memory_space<vmem>>, vector<8x256xf32>,
    %c0_65 = arith.constant 0 : index
    %c0_66 = arith.constant 0 : index
    %c0_67 = arith.constant 0 : index
    %99 = vector.load %arg4[%c0_65, %c0_66, %c0_67] : memref<1x4x256xf32, #tpu.memory_space<vmem>>, vector<1x4x256xf32>
    %100 = vector.shape_cast %99 : vector<1x4x256xf32> to vector<4x256xf32>
    %c16_68 = arith.constant 16 : index
    %c32_69 = arith.constant 32 : index
    %101 = vector.load %arg15[%c16_68, %c32_69] : memref<136x320xf32, #tpu.memory_space<vmem>>, vector<4x256xf32>
    tpu.vector_store %arg15[%c16_68, %c32_69], %100 {strides = array<i32>} : memref<136x320xf32, #tpu.memory_space<vmem>>, vector<4x256xf32>,
    %cst_70 = arith.constant 0.000000e+00 : f32
    %102 = vector.broadcast %cst_70 : f32 to vector<16x256xf32>
    %cst_71 = arith.constant 0.000000e+00 : f32
    %103 = vector.broadcast %cst_71 : f32 to vector<16x256xf32>
    %cst_72 = arith.constant 0.000000e+00 : f32
    %104 = vector.broadcast %cst_72 : f32 to vector<16x256xf32>
    %c0_73 = arith.constant 0 : index
    %c0_74 = arith.constant 0 : index
    %c0_75 = arith.constant 0 : index
    %105 = vector.load %arg8[%c0_73, %c0_74, %c0_75] : memref<9x16x20xf32, #tpu.memory_space<vmem>>, vector<1x16x20xf32>
    %106 = vector.shape_cast %105 : vector<1x16x20xf32> to vector<16x20xf32>
    %c0_76 = arith.constant 0 : index
    %c15_77 = arith.constant 15 : index
    %107 = vector.load %arg15[%c0_76, %c15_77] : memref<136x320xf32, #tpu.memory_space<vmem>>, vector<20x256xf32>
    %cst_78 = arith.constant dense<0.000000e+00> : vector<16x256xf32>
    %108 = tpu.matmul %106, %107, %cst_78 {dimension_numbers = #tpu.dot_dimension_numbers<[1], [0], [0], [1], [0, 0, 1, 1], [], []>} : vector<16x20xf32>, vector<20x256xf32>, vector<16x256xf32> -> vector<16x256xf32>
    %109 = arith.addf %102, %108 : vector<16x256xf32>
    %c1_79 = arith.constant 1 : index
    %c0_80 = arith.constant 0 : index
    %c0_81 = arith.constant 0 : index
    %110 = vector.load %arg8[%c1_79, %c0_80, %c0_81] : memref<9x16x20xf32, #tpu.memory_space<vmem>>, vector<1x16x20xf32>
    %111 = vector.shape_cast %110 : vector<1x16x20xf32> to vector<16x20xf32>
    %c0_82 = arith.constant 0 : index
    %c16_83 = arith.constant 16 : index
    %112 = vector.load %arg15[%c0_82, %c16_83] : memref<136x320xf32, #tpu.memory_space<vmem>>, vector<20x256xf32>
    %cst_84 = arith.constant dense<0.000000e+00> : vector<16x256xf32>
    %113 = tpu.matmul %111, %112, %cst_84 {dimension_numbers = #tpu.dot_dimension_numbers<[1], [0], [0], [1], [0, 0, 1, 1], [], []>} : vector<16x20xf32>, vector<20x256xf32>, vector<16x256xf32> -> vector<16x256xf32>
    %114 = arith.addf %103, %113 : vector<16x256xf32>
    %c2_85 = arith.constant 2 : index
    %c0_86 = arith.constant 0 : index
    %c0_87 = arith.constant 0 : index
    %115 = vector.load %arg8[%c2_85, %c0_86, %c0_87] : memref<9x16x20xf32, #tpu.memory_space<vmem>>, vector<1x16x20xf32>
    %116 = vector.shape_cast %115 : vector<1x16x20xf32> to vector<16x20xf32>
    %c0_88 = arith.constant 0 : index
    %c17_89 = arith.constant 17 : index
    %117 = vector.load %arg15[%c0_88, %c17_89] : memref<136x320xf32, #tpu.memory_space<vmem>>, vector<20x256xf32>
    %cst_90 = arith.constant dense<0.000000e+00> : vector<16x256xf32>
    %118 = tpu.matmul %116, %117, %cst_90 {dimension_numbers = #tpu.dot_dimension_numbers<[1], [0], [0], [1], [0, 0, 1, 1], [], []>} : vector<16x20xf32>, vector<20x256xf32>, vector<16x256xf32> -> vector<16x256xf32>
    %119 = arith.addf %104, %118 : vector<16x256xf32>
    %c3_91 = arith.constant 3 : index
    %c0_92 = arith.constant 0 : index
    %c0_93 = arith.constant 0 : index
    %120 = vector.load %arg8[%c3_91, %c0_92, %c0_93] : memref<9x16x20xf32, #tpu.memory_space<vmem>>, vector<1x16x20xf32>
    %121 = vector.shape_cast %120 : vector<1x16x20xf32> to vector<16x20xf32>
    %c0_94 = arith.constant 0 : index
    %c31_95 = arith.constant 31 : index
    %122 = vector.load %arg15[%c0_94, %c31_95] : memref<136x320xf32, #tpu.memory_space<vmem>>, vector<20x256xf32>
    %cst_96 = arith.constant dense<0.000000e+00> : vector<16x256xf32>
    %123 = tpu.matmul %121, %122, %cst_96 {dimension_numbers = #tpu.dot_dimension_numbers<[1], [0], [0], [1], [0, 0, 1, 1], [], []>} : vector<16x20xf32>, vector<20x256xf32>, vector<16x256xf32> -> vector<16x256xf32>
    %124 = arith.addf %109, %123 : vector<16x256xf32>
    %c4_97 = arith.constant 4 : index
    %c0_98 = arith.constant 0 : index
    %c0_99 = arith.constant 0 : index
    %125 = vector.load %arg8[%c4_97, %c0_98, %c0_99] : memref<9x16x20xf32, #tpu.memory_space<vmem>>, vector<1x16x20xf32>
    %126 = vector.shape_cast %125 : vector<1x16x20xf32> to vector<16x20xf32>
    %c0_100 = arith.constant 0 : index
    %c32_101 = arith.constant 32 : index
    %127 = vector.load %arg15[%c0_100, %c32_101] : memref<136x320xf32, #tpu.memory_space<vmem>>, vector<20x256xf32>
    %cst_102 = arith.constant dense<0.000000e+00> : vector<16x256xf32>
    %128 = tpu.matmul %126, %127, %cst_102 {dimension_numbers = #tpu.dot_dimension_numbers<[1], [0], [0], [1], [0, 0, 1, 1], [], []>} : vector<16x20xf32>, vector<20x256xf32>, vector<16x256xf32> -> vector<16x256xf32>
    %129 = arith.addf %114, %128 : vector<16x256xf32>
    %c5_103 = arith.constant 5 : index
    %c0_104 = arith.constant 0 : index
    %c0_105 = arith.constant 0 : index
    %130 = vector.load %arg8[%c5_103, %c0_104, %c0_105] : memref<9x16x20xf32, #tpu.memory_space<vmem>>, vector<1x16x20xf32>
    %131 = vector.shape_cast %130 : vector<1x16x20xf32> to vector<16x20xf32>
    %c0_106 = arith.constant 0 : index
    %c33_107 = arith.constant 33 : index
    %132 = vector.load %arg15[%c0_106, %c33_107] : memref<136x320xf32, #tpu.memory_space<vmem>>, vector<20x256xf32>
    %cst_108 = arith.constant dense<0.000000e+00> : vector<16x256xf32>
    %133 = tpu.matmul %131, %132, %cst_108 {dimension_numbers = #tpu.dot_dimension_numbers<[1], [0], [0], [1], [0, 0, 1, 1], [], []>} : vector<16x20xf32>, vector<20x256xf32>, vector<16x256xf32> -> vector<16x256xf32>
    %134 = arith.addf %119, %133 : vector<16x256xf32>
    %c6_109 = arith.constant 6 : index
    %c0_110 = arith.constant 0 : index
    %c0_111 = arith.constant 0 : index
    %135 = vector.load %arg8[%c6_109, %c0_110, %c0_111] : memref<9x16x20xf32, #tpu.memory_space<vmem>>, vector<1x16x20xf32>
    %136 = vector.shape_cast %135 : vector<1x16x20xf32> to vector<16x20xf32>
    %c0_112 = arith.constant 0 : index
    %c47_113 = arith.constant 47 : index
    %137 = vector.load %arg15[%c0_112, %c47_113] : memref<136x320xf32, #tpu.memory_space<vmem>>, vector<20x256xf32>
    %cst_114 = arith.constant dense<0.000000e+00> : vector<16x256xf32>
    %138 = tpu.matmul %136, %137, %cst_114 {dimension_numbers = #tpu.dot_dimension_numbers<[1], [0], [0], [1], [0, 0, 1, 1], [], []>} : vector<16x20xf32>, vector<20x256xf32>, vector<16x256xf32> -> vector<16x256xf32>
    %139 = arith.addf %124, %138 : vector<16x256xf32>
    %c7_115 = arith.constant 7 : index
    %c0_116 = arith.constant 0 : index
    %c0_117 = arith.constant 0 : index
    %140 = vector.load %arg8[%c7_115, %c0_116, %c0_117] : memref<9x16x20xf32, #tpu.memory_space<vmem>>, vector<1x16x20xf32>
    %141 = vector.shape_cast %140 : vector<1x16x20xf32> to vector<16x20xf32>
    %c0_118 = arith.constant 0 : index
    %c48_119 = arith.constant 48 : index
    %142 = vector.load %arg15[%c0_118, %c48_119] : memref<136x320xf32, #tpu.memory_space<vmem>>, vector<20x256xf32>
    %cst_120 = arith.constant dense<0.000000e+00> : vector<16x256xf32>
    %143 = tpu.matmul %141, %142, %cst_120 {dimension_numbers = #tpu.dot_dimension_numbers<[1], [0], [0], [1], [0, 0, 1, 1], [], []>} : vector<16x20xf32>, vector<20x256xf32>, vector<16x256xf32> -> vector<16x256xf32>
    %144 = arith.addf %129, %143 : vector<16x256xf32>
    %c8_121 = arith.constant 8 : index
    %c0_122 = arith.constant 0 : index
    %c0_123 = arith.constant 0 : index
    %145 = vector.load %arg8[%c8_121, %c0_122, %c0_123] : memref<9x16x20xf32, #tpu.memory_space<vmem>>, vector<1x16x20xf32>
    %146 = vector.shape_cast %145 : vector<1x16x20xf32> to vector<16x20xf32>
    %c0_124 = arith.constant 0 : index
    %c49_125 = arith.constant 49 : index
    %147 = vector.load %arg15[%c0_124, %c49_125] : memref<136x320xf32, #tpu.memory_space<vmem>>, vector<20x256xf32>
    %cst_126 = arith.constant dense<0.000000e+00> : vector<16x256xf32>
    %148 = tpu.matmul %146, %147, %cst_126 {dimension_numbers = #tpu.dot_dimension_numbers<[1], [0], [0], [1], [0, 0, 1, 1], [], []>} : vector<16x20xf32>, vector<20x256xf32>, vector<16x256xf32> -> vector<16x256xf32>
    %149 = arith.addf %134, %148 : vector<16x256xf32>
    %150 = vector.broadcast %24 : vector<1x256xf32> to vector<16x256xf32>
    %151 = arith.mulf %139, %150 : vector<16x256xf32>
    %152 = arith.addf %144, %151 : vector<16x256xf32>
    %153 = vector.broadcast %28 : vector<1x256xf32> to vector<16x256xf32>
    %154 = arith.mulf %149, %153 : vector<16x256xf32>
    %155 = arith.addf %152, %154 : vector<16x256xf32>
    %c0_127 = arith.constant 0 : index
    %c0_128 = arith.constant 0 : index
    %156 = vector.load %arg9[%c0_127, %c0_128] : memref<16x1xf32, #tpu.memory_space<vmem>>, vector<16x1xf32>
    %157 = vector.broadcast %156 : vector<16x1xf32> to vector<16x256xf32>
    %158 = arith.addf %155, %157 : vector<16x256xf32>
    %cst_129 = arith.constant 0.000000e+00 : f32
    %159 = vector.broadcast %cst_129 : f32 to vector<16x256xf32>
    %160 = arith.cmpf ogt, %158, %159 : vector<16x256xf32>
    %cst_130 = arith.constant 1.000000e-01 : f32
    %161 = vector.broadcast %cst_130 : f32 to vector<16x256xf32>
    %162 = arith.mulf %161, %158 : vector<16x256xf32>
    %163 = arith.select %160, %158, %162 : vector<16x256xi1>, vector<16x256xf32>
    %164 = vector.extract_strided_slice %163 {offsets = [0, 0], sizes = [8, 256], strides = [1, 1]} : vector<16x256xf32> to vector<8x256xf32>
    %165 = vector.extract_strided_slice %163 {offsets = [8, 0], sizes = [8, 256], strides = [1, 1]} : vector<16x256xf32> to vector<8x256xf32>
    %166 = arith.addf %164, %165 : vector<8x256xf32>
    %c0_131 = arith.constant 0 : index
    %c32_132 = arith.constant 32 : index
    %167 = vector.load %arg15[%c0_131, %c32_132] : memref<136x320xf32, #tpu.memory_space<vmem>>, vector<8x256xf32>
    tpu.vector_store %arg15[%c0_131, %c32_132], %166 {strides = array<i32>} : memref<136x320xf32, #tpu.memory_space<vmem>>, vector<8x256xf32>,
    %cst_133 = arith.constant 0.000000e+00 : f32
    %168 = vector.broadcast %cst_133 : f32 to vector<4x256xf32>
    %cst_134 = arith.constant 0.000000e+00 : f32
    %169 = vector.broadcast %cst_134 : f32 to vector<4x256xf32>
    %cst_135 = arith.constant 0.000000e+00 : f32
    %170 = vector.broadcast %cst_135 : f32 to vector<4x256xf32>
    %c0_136 = arith.constant 0 : index
    %c0_137 = arith.constant 0 : index
    %c0_138 = arith.constant 0 : index
    %171 = vector.load %arg10[%c0_136, %c0_137, %c0_138] : memref<9x4x8xf32, #tpu.memory_space<vmem>>, vector<1x4x8xf32>
    %172 = vector.shape_cast %171 : vector<1x4x8xf32> to vector<4x8xf32>
    %c0_139 = arith.constant 0 : index
    %c15_140 = arith.constant 15 : index
    %173 = vector.load %arg15[%c0_139, %c15_140] : memref<136x320xf32, #tpu.memory_space<vmem>>, vector<8x256xf32>
    %cst_141 = arith.constant dense<0.000000e+00> : vector<4x256xf32>
    %174 = tpu.matmul %172, %173, %cst_141 {dimension_numbers = #tpu.dot_dimension_numbers<[1], [0], [0], [1], [0, 0, 1, 1], [], []>} : vector<4x8xf32>, vector<8x256xf32>, vector<4x256xf32> -> vector<4x256xf32>
    %175 = arith.addf %168, %174 : vector<4x256xf32>
    %c1_142 = arith.constant 1 : index
    %c0_143 = arith.constant 0 : index
    %c0_144 = arith.constant 0 : index
    %176 = vector.load %arg10[%c1_142, %c0_143, %c0_144] : memref<9x4x8xf32, #tpu.memory_space<vmem>>, vector<1x4x8xf32>
    %177 = vector.shape_cast %176 : vector<1x4x8xf32> to vector<4x8xf32>
    %c0_145 = arith.constant 0 : index
    %c16_146 = arith.constant 16 : index
    %178 = vector.load %arg15[%c0_145, %c16_146] : memref<136x320xf32, #tpu.memory_space<vmem>>, vector<8x256xf32>
    %cst_147 = arith.constant dense<0.000000e+00> : vector<4x256xf32>
    %179 = tpu.matmul %177, %178, %cst_147 {dimension_numbers = #tpu.dot_dimension_numbers<[1], [0], [0], [1], [0, 0, 1, 1], [], []>} : vector<4x8xf32>, vector<8x256xf32>, vector<4x256xf32> -> vector<4x256xf32>
    %180 = arith.addf %169, %179 : vector<4x256xf32>
    %c2_148 = arith.constant 2 : index
    %c0_149 = arith.constant 0 : index
    %c0_150 = arith.constant 0 : index
    %181 = vector.load %arg10[%c2_148, %c0_149, %c0_150] : memref<9x4x8xf32, #tpu.memory_space<vmem>>, vector<1x4x8xf32>
    %182 = vector.shape_cast %181 : vector<1x4x8xf32> to vector<4x8xf32>
    %c0_151 = arith.constant 0 : index
    %c17_152 = arith.constant 17 : index
    %183 = vector.load %arg15[%c0_151, %c17_152] : memref<136x320xf32, #tpu.memory_space<vmem>>, vector<8x256xf32>
    %cst_153 = arith.constant dense<0.000000e+00> : vector<4x256xf32>
    %184 = tpu.matmul %182, %183, %cst_153 {dimension_numbers = #tpu.dot_dimension_numbers<[1], [0], [0], [1], [0, 0, 1, 1], [], []>} : vector<4x8xf32>, vector<8x256xf32>, vector<4x256xf32> -> vector<4x256xf32>
    %185 = arith.addf %170, %184 : vector<4x256xf32>
    %c3_154 = arith.constant 3 : index
    %c0_155 = arith.constant 0 : index
    %c0_156 = arith.constant 0 : index
    %186 = vector.load %arg10[%c3_154, %c0_155, %c0_156] : memref<9x4x8xf32, #tpu.memory_space<vmem>>, vector<1x4x8xf32>
    %187 = vector.shape_cast %186 : vector<1x4x8xf32> to vector<4x8xf32>
    %c0_157 = arith.constant 0 : index
    %c31_158 = arith.constant 31 : index
    %188 = vector.load %arg15[%c0_157, %c31_158] : memref<136x320xf32, #tpu.memory_space<vmem>>, vector<8x256xf32>
    %cst_159 = arith.constant dense<0.000000e+00> : vector<4x256xf32>
    %189 = tpu.matmul %187, %188, %cst_159 {dimension_numbers = #tpu.dot_dimension_numbers<[1], [0], [0], [1], [0, 0, 1, 1], [], []>} : vector<4x8xf32>, vector<8x256xf32>, vector<4x256xf32> -> vector<4x256xf32>
    %190 = arith.addf %175, %189 : vector<4x256xf32>
    %c4_160 = arith.constant 4 : index
    %c0_161 = arith.constant 0 : index
    %c0_162 = arith.constant 0 : index
    %191 = vector.load %arg10[%c4_160, %c0_161, %c0_162] : memref<9x4x8xf32, #tpu.memory_space<vmem>>, vector<1x4x8xf32>
    %192 = vector.shape_cast %191 : vector<1x4x8xf32> to vector<4x8xf32>
    %c0_163 = arith.constant 0 : index
    %c32_164 = arith.constant 32 : index
    %193 = vector.load %arg15[%c0_163, %c32_164] : memref<136x320xf32, #tpu.memory_space<vmem>>, vector<8x256xf32>
    %cst_165 = arith.constant dense<0.000000e+00> : vector<4x256xf32>
    %194 = tpu.matmul %192, %193, %cst_165 {dimension_numbers = #tpu.dot_dimension_numbers<[1], [0], [0], [1], [0, 0, 1, 1], [], []>} : vector<4x8xf32>, vector<8x256xf32>, vector<4x256xf32> -> vector<4x256xf32>
    %195 = arith.addf %180, %194 : vector<4x256xf32>
    %c5_166 = arith.constant 5 : index
    %c0_167 = arith.constant 0 : index
    %c0_168 = arith.constant 0 : index
    %196 = vector.load %arg10[%c5_166, %c0_167, %c0_168] : memref<9x4x8xf32, #tpu.memory_space<vmem>>, vector<1x4x8xf32>
    %197 = vector.shape_cast %196 : vector<1x4x8xf32> to vector<4x8xf32>
    %c0_169 = arith.constant 0 : index
    %c33_170 = arith.constant 33 : index
    %198 = vector.load %arg15[%c0_169, %c33_170] : memref<136x320xf32, #tpu.memory_space<vmem>>, vector<8x256xf32>
    %cst_171 = arith.constant dense<0.000000e+00> : vector<4x256xf32>
    %199 = tpu.matmul %197, %198, %cst_171 {dimension_numbers = #tpu.dot_dimension_numbers<[1], [0], [0], [1], [0, 0, 1, 1], [], []>} : vector<4x8xf32>, vector<8x256xf32>, vector<4x256xf32> -> vector<4x256xf32>
    %200 = arith.addf %185, %199 : vector<4x256xf32>
    %c6_172 = arith.constant 6 : index
    %c0_173 = arith.constant 0 : index
    %c0_174 = arith.constant 0 : index
    %201 = vector.load %arg10[%c6_172, %c0_173, %c0_174] : memref<9x4x8xf32, #tpu.memory_space<vmem>>, vector<1x4x8xf32>
    %202 = vector.shape_cast %201 : vector<1x4x8xf32> to vector<4x8xf32>
    %c0_175 = arith.constant 0 : index
    %c47_176 = arith.constant 47 : index
    %203 = vector.load %arg15[%c0_175, %c47_176] : memref<136x320xf32, #tpu.memory_space<vmem>>, vector<8x256xf32>
    %cst_177 = arith.constant dense<0.000000e+00> : vector<4x256xf32>
    %204 = tpu.matmul %202, %203, %cst_177 {dimension_numbers = #tpu.dot_dimension_numbers<[1], [0], [0], [1], [0, 0, 1, 1], [], []>} : vector<4x8xf32>, vector<8x256xf32>, vector<4x256xf32> -> vector<4x256xf32>
    %205 = arith.addf %190, %204 : vector<4x256xf32>
    %c7_178 = arith.constant 7 : index
    %c0_179 = arith.constant 0 : index
    %c0_180 = arith.constant 0 : index
    %206 = vector.load %arg10[%c7_178, %c0_179, %c0_180] : memref<9x4x8xf32, #tpu.memory_space<vmem>>, vector<1x4x8xf32>
    %207 = vector.shape_cast %206 : vector<1x4x8xf32> to vector<4x8xf32>
    %c0_181 = arith.constant 0 : index
    %c48_182 = arith.constant 48 : index
    %208 = vector.load %arg15[%c0_181, %c48_182] : memref<136x320xf32, #tpu.memory_space<vmem>>, vector<8x256xf32>
    %cst_183 = arith.constant dense<0.000000e+00> : vector<4x256xf32>
    %209 = tpu.matmul %207, %208, %cst_183 {dimension_numbers = #tpu.dot_dimension_numbers<[1], [0], [0], [1], [0, 0, 1, 1], [], []>} : vector<4x8xf32>, vector<8x256xf32>, vector<4x256xf32> -> vector<4x256xf32>
    %210 = arith.addf %195, %209 : vector<4x256xf32>
    %c8_184 = arith.constant 8 : index
    %c0_185 = arith.constant 0 : index
    %c0_186 = arith.constant 0 : index
    %211 = vector.load %arg10[%c8_184, %c0_185, %c0_186] : memref<9x4x8xf32, #tpu.memory_space<vmem>>, vector<1x4x8xf32>
    %212 = vector.shape_cast %211 : vector<1x4x8xf32> to vector<4x8xf32>
    %c0_187 = arith.constant 0 : index
    %c49_188 = arith.constant 49 : index
    %213 = vector.load %arg15[%c0_187, %c49_188] : memref<136x320xf32, #tpu.memory_space<vmem>>, vector<8x256xf32>
    %cst_189 = arith.constant dense<0.000000e+00> : vector<4x256xf32>
    %214 = tpu.matmul %212, %213, %cst_189 {dimension_numbers = #tpu.dot_dimension_numbers<[1], [0], [0], [1], [0, 0, 1, 1], [], []>} : vector<4x8xf32>, vector<8x256xf32>, vector<4x256xf32> -> vector<4x256xf32>
    %215 = arith.addf %200, %214 : vector<4x256xf32>
    %216 = vector.broadcast %24 : vector<1x256xf32> to vector<4x256xf32>
    %217 = arith.mulf %205, %216 : vector<4x256xf32>
    %218 = arith.addf %210, %217 : vector<4x256xf32>
    %219 = vector.broadcast %28 : vector<1x256xf32> to vector<4x256xf32>
    %220 = arith.mulf %215, %219 : vector<4x256xf32>
    %221 = arith.addf %218, %220 : vector<4x256xf32>
    %c0_190 = arith.constant 0 : index
    %c0_191 = arith.constant 0 : index
    %222 = vector.load %arg11[%c0_190, %c0_191] : memref<4x1xf32, #tpu.memory_space<vmem>>, vector<4x1xf32>
    %223 = vector.broadcast %222 : vector<4x1xf32> to vector<4x256xf32>
    %224 = arith.addf %221, %223 : vector<4x256xf32>
    %cst_192 = arith.constant dense<0.000000e+00> : vector<4xf32>
    %225 = vector.multi_reduction <add>, %224, %cst_192 [1] : vector<4x256xf32> to vector<4xf32>
    %226 = vector.shape_cast %225 : vector<4xf32> to vector<4x1xf32>
    %cst_193 = arith.constant 2.560000e+02 : f32
    %227 = vector.broadcast %cst_193 : f32 to vector<4x1xf32>
    %228 = arith.divf %226, %227 : vector<4x1xf32>
    %229 = arith.mulf %224, %224 : vector<4x256xf32>
    %cst_194 = arith.constant dense<0.000000e+00> : vector<4xf32>
    %230 = vector.multi_reduction <add>, %229, %cst_194 [1] : vector<4x256xf32> to vector<4xf32>
    %231 = vector.shape_cast %230 : vector<4xf32> to vector<4x1xf32>
    %cst_195 = arith.constant 2.560000e+02 : f32
    %232 = vector.broadcast %cst_195 : f32 to vector<4x1xf32>
    %233 = arith.divf %231, %232 : vector<4x1xf32>
    %234 = arith.mulf %228, %228 : vector<4x1xf32>
    %235 = arith.subf %233, %234 : vector<4x1xf32>
    %236 = vector.broadcast %228 : vector<4x1xf32> to vector<4x256xf32>
    %237 = arith.subf %224, %236 : vector<4x256xf32>
    %cst_196 = arith.constant 9.99999974E-6 : f32
    %238 = vector.broadcast %cst_196 : f32 to vector<4x1xf32>
    %239 = arith.addf %235, %238 : vector<4x1xf32>
    %240 = math.rsqrt %239 : vector<4x1xf32>
    %241 = vector.broadcast %240 : vector<4x1xf32> to vector<4x256xf32>
    %242 = arith.mulf %237, %241 : vector<4x256xf32>
    %c0_197 = arith.constant 0 : index
    %c0_198 = arith.constant 0 : index
    %c0_199 = arith.constant 0 : index
    %243 = vector.load %arg5[%c0_197, %c0_198, %c0_199] : memref<1x3x256xf32, #tpu.memory_space<vmem>>, vector<1x3x256xf32>
    %244 = vector.shape_cast %243 : vector<1x3x256xf32> to vector<3x256xf32>
    %c0_200 = arith.constant 0 : index
    %c0_201 = arith.constant 0 : index
    %245 = vector.load %arg12[%c0_200, %c0_201] : memref<8x3xf32, #tpu.memory_space<vmem>>, vector<8x3xf32>
    %cst_202 = arith.constant dense<0.000000e+00> : vector<8x256xf32>
    %246 = tpu.matmul %245, %244, %cst_202 {dimension_numbers = #tpu.dot_dimension_numbers<[1], [0], [0], [1], [0, 0, 1, 1], [], []>} : vector<8x3xf32>, vector<3x256xf32>, vector<8x256xf32> -> vector<8x256xf32>
    %c0_203 = arith.constant 0 : index
    %c0_204 = arith.constant 0 : index
    %247 = vector.load %arg13[%c0_203, %c0_204] : memref<8x1xf32, #tpu.memory_space<vmem>>, vector<8x1xf32>
    %248 = vector.broadcast %247 : vector<8x1xf32> to vector<8x256xf32>
    %249 = arith.addf %246, %248 : vector<8x256xf32>
    %250 = vector.extract_strided_slice %249 {offsets = [0, 0], sizes = [4, 256], strides = [1, 1]} : vector<8x256xf32> to vector<4x256xf32>
    %251 = vector.extract_strided_slice %249 {offsets = [4, 0], sizes = [4, 256], strides = [1, 1]} : vector<8x256xf32> to vector<4x256xf32>
    %252 = arith.mulf %250, %242 : vector<4x256xf32>
    %253 = arith.addf %252, %251 : vector<4x256xf32>
    %c0_205 = arith.constant 0 : index
    %c0_206 = arith.constant 0 : index
    %c0_207 = arith.constant 0 : index
    %254 = vector.load %arg14[%c0_205, %c0_206, %c0_207] : memref<1x4x256xf32, #tpu.memory_space<vmem>>, vector<1x4x256xf32>
    %255 = vector.shape_cast %254 : vector<1x4x256xf32> to vector<4x256xf32>
    %256 = vector.shape_cast %253 : vector<4x256xf32> to vector<1x4x256xf32>
    tpu.vector_store %arg14[%c0_205, %c0_206, %c0_207], %256 {strides = array<i32>} : memref<1x4x256xf32, #tpu.memory_space<vmem>>, vector<1x4x256xf32>,
    return
  }
  func.func @transform_0(%arg0: i32) -> (i32, i32, i32) {
    %c0_i32 = arith.constant 0 : i32
    %c0_i32_0 = arith.constant 0 : i32
    %c0_i32_1 = arith.constant 0 : i32
    return %arg0, %c0_i32, %c0_i32_0 : i32, i32, i32
  }
  func.func @transform_1(%arg0: i32) -> (i32, i32, i32) {
    %c0_i32 = arith.constant 0 : i32
    %c0_i32_0 = arith.constant 0 : i32
    %c0_i32_1 = arith.constant 0 : i32
    return %arg0, %c0_i32, %c0_i32_0 : i32, i32, i32
  }
  func.func @transform_2(%arg0: i32) -> (i32, i32, i32) {
    %c0_i32 = arith.constant 0 : i32
    %c0_i32_0 = arith.constant 0 : i32
    %c0_i32_1 = arith.constant 0 : i32
    return %arg0, %c0_i32, %c0_i32_0 : i32, i32, i32
  }
  func.func @transform_3(%arg0: i32) -> (i32, i32, i32) {
    %c0_i32 = arith.constant 0 : i32
    %c0_i32_0 = arith.constant 0 : i32
    %c0_i32_1 = arith.constant 0 : i32
    return %arg0, %c0_i32, %c0_i32_0 : i32, i32, i32
  }
  func.func @transform_4(%arg0: i32) -> (i32, i32, i32) {
    %c0_i32 = arith.constant 0 : i32
    %c0_i32_0 = arith.constant 0 : i32
    %c0_i32_1 = arith.constant 0 : i32
    return %arg0, %c0_i32, %c0_i32_0 : i32, i32, i32
  }
  func.func @transform_5(%arg0: i32) -> (i32, i32, i32) {
    %c0_i32 = arith.constant 0 : i32
    %c0_i32_0 = arith.constant 0 : i32
    %c0_i32_1 = arith.constant 0 : i32
    %c0_i32_2 = arith.constant 0 : i32
    return %c0_i32, %c0_i32_0, %c0_i32_1 : i32, i32, i32
  }
  func.func @transform_6(%arg0: i32) -> (i32, i32) {
    %c0_i32 = arith.constant 0 : i32
    %c0_i32_0 = arith.constant 0 : i32
    %c0_i32_1 = arith.constant 0 : i32
    return %c0_i32, %c0_i32_0 : i32, i32
  }
  func.func @transform_7(%arg0: i32) -> (i32, i32, i32) {
    %c0_i32 = arith.constant 0 : i32
    %c0_i32_0 = arith.constant 0 : i32
    %c0_i32_1 = arith.constant 0 : i32
    %c0_i32_2 = arith.constant 0 : i32
    return %c0_i32, %c0_i32_0, %c0_i32_1 : i32, i32, i32
  }
  func.func @transform_8(%arg0: i32) -> (i32, i32) {
    %c0_i32 = arith.constant 0 : i32
    %c0_i32_0 = arith.constant 0 : i32
    %c0_i32_1 = arith.constant 0 : i32
    return %c0_i32, %c0_i32_0 : i32, i32
  }
  func.func @transform_9(%arg0: i32) -> (i32, i32, i32) {
    %c0_i32 = arith.constant 0 : i32
    %c0_i32_0 = arith.constant 0 : i32
    %c0_i32_1 = arith.constant 0 : i32
    %c0_i32_2 = arith.constant 0 : i32
    return %c0_i32, %c0_i32_0, %c0_i32_1 : i32, i32, i32
  }
  func.func @transform_10(%arg0: i32) -> (i32, i32) {
    %c0_i32 = arith.constant 0 : i32
    %c0_i32_0 = arith.constant 0 : i32
    %c0_i32_1 = arith.constant 0 : i32
    return %c0_i32, %c0_i32_0 : i32, i32
  }
  func.func @transform_11(%arg0: i32) -> (i32, i32) {
    %c0_i32 = arith.constant 0 : i32
    %c0_i32_0 = arith.constant 0 : i32
    %c0_i32_1 = arith.constant 0 : i32
    return %c0_i32, %c0_i32_0 : i32, i32
  }
  func.func @transform_12(%arg0: i32) -> (i32, i32) {
    %c0_i32 = arith.constant 0 : i32
    %c0_i32_0 = arith.constant 0 : i32
    %c0_i32_1 = arith.constant 0 : i32
    return %c0_i32, %c0_i32_0 : i32, i32
  }
  func.func @transform_13(%arg0: i32) -> (i32, i32, i32) {
    %c0_i32 = arith.constant 0 : i32
    %c0_i32_0 = arith.constant 0 : i32
    %c0_i32_1 = arith.constant 0 : i32
    return %arg0, %c0_i32, %c0_i32_0 : i32, i32, i32
  }
}

</mosaic_0001>

<llo_original>
// kernel: ssa_forward.1
$region0: #{ssa_forward.1}
  #allocation0 [shape = 'u32[]', space=smem, size = 0x4, offset = 0x4, fixed_abs, tag = 'smem constant byte address 0x4 - core index']
  #allocation1 [shape = 'u32[72,128]{1,0:T(1,128)}', space=vmem, size = 0x9000, scoped, tag = 'internal scratch']
  #allocation2 [shape = 'f32[136,320]{1,0:T(8,128)}', space=vmem, size = 0x33000, scoped, tag = 'scratch operand']
  %s0 = inlined_call_operand.vmem [shape: f32[2,68,256], index: 0, kind: input, shape index: {}]
  %s1 = inlined_call_operand.vmem [shape: f32[2,68,256], index: 1, kind: input, shape index: {}]
  %s2 = inlined_call_operand.vmem [shape: f32[2,8,256], index: 2, kind: input, shape index: {}]
  %s3 = inlined_call_operand.vmem [shape: f32[2,4,256], index: 3, kind: input, shape index: {}]
  %s4 = inlined_call_operand.vmem [shape: f32[2,3,256], index: 4, kind: input, shape index: {}]
  %s5 = inlined_call_operand.vmem [shape: f32[9,16,136], index: 5, kind: input, shape index: {}]
  %s6 = inlined_call_operand.vmem [shape: f32[16,1], index: 6, kind: input, shape index: {}]
  %s7 = inlined_call_operand.vmem [shape: f32[9,16,20], index: 7, kind: input, shape index: {}]
  %s8 = inlined_call_operand.vmem [shape: f32[16,1], index: 8, kind: input, shape index: {}]
  %s9 = inlined_call_operand.vmem [shape: f32[9,4,8], index: 9, kind: input, shape index: {}]
  %s10 = inlined_call_operand.vmem [shape: f32[4,1], index: 10, kind: input, shape index: {}]
  %s11 = inlined_call_operand.vmem [shape: f32[8,3], index: 11, kind: input, shape index: {}]
  %s12 = inlined_call_operand.vmem [shape: f32[8,1], index: 12, kind: input, shape index: {}]
  %s13 = inlined_call_operand.vmem [shape: f32[2,4,256], index: 13, kind: output, shape index: {}]
  %s14 = sld [smem:[#allocation0]]
  $region85: #{ssa_forward.1} parent=0
    _
  %s16 = ssub.s32 1, %s14
  %s17 = scalar_select 0, %s16, %s14
  loop: start=0, step=1, limit=4
  $region2: #{ssa_forward.1} parent=0 // loop_pre_header
    _
  $region3: #{ssa_forward.1} parent=0 // loop_header
    %s19 = sphi 0, %s23
    %p20 = scmp.ge.s32.totalorder %s19, 4
    %s29 = sphi 0, %s31
    %s32 = sphi 0, %s29
    %s33 = sphi 0, %s32
    %s49 = sphi 0, %s33
    %s55 = sphi 0, %s57
    %s58 = sphi 0, %s55
    %s59 = sphi 0, %s58
    %s75 = sphi 0, %s59
    %s81 = sphi 0, %s83
    %s84 = sphi 0, %s81
    %s85 = sphi 0, %s84
    %s101 = sphi 0, %s85
    %s107 = sphi 0, %s109
    %s110 = sphi 0, %s107
    %s111 = sphi 0, %s110
    %s127 = sphi 0, %s111
    %s133 = sphi 0, %s135
    %s136 = sphi 0, %s133
    %s137 = sphi 0, %s136
    %s153 = sphi 0, %s137
    %s157 = sphi 0, %s157
    %s159 = sphi 0, %s157
    %s160 = sphi 0, %s159
    %s174 = sphi 0, %s160
    %s178 = sphi 0, %s178
    %s180 = sphi 0, %s178
    %s181 = sphi 0, %s180
    %s195 = sphi 0, %s181
    %s199 = sphi 0, %s199
    %s201 = sphi 0, %s199
    %s202 = sphi 0, %s201
    %s216 = sphi 0, %s202
    %s220 = sphi 0, %s220
    %s222 = sphi 0, %s220
    %s223 = sphi 0, %s222
    %s237 = sphi 0, %s223
    %s241 = sphi 0, %s241
    %s243 = sphi 0, %s241
    %s244 = sphi 0, %s243
    %s258 = sphi 0, %s244
    %s262 = sphi 0, %s262
    %s264 = sphi 0, %s262
    %s265 = sphi 0, %s264
    %s279 = sphi 0, %s265
    %s283 = sphi 0, %s283
    %s285 = sphi 0, %s283
    %s286 = sphi 0, %s285
    %s300 = sphi 0, %s286
    %s304 = sphi 0, %s304
    %s306 = sphi 0, %s304
    %s307 = sphi 0, %s306
    %s321 = sphi 0, %s307
    %s327 = sphi 0, %s329
    %s330 = sphi 0, %s327
    %s331 = sphi 0, %s330
    %s347 = sphi 0, %s331
  $region4: #{ssa_forward.1} parent=0 // loop_header_branch
    %22 = sbr.rel (%p20) target = $region8
  $region5: #{ssa_forward.1} parent=0 // loop_body
    %s24 = ssub.s32 %s19, 1
    %s25 = ssub.s32 %s19, 2
    %s26 = sadd.s32 %s19, 1
    %s27 = ssub.s32 %s19, %s26
    %p28 = scmp.eq.s32.totalorder %s27, 0
    %s30 = sadd.s32 %s29, 1
    %s31 = scalar_select %p28, %s29, %s30
    %p34 = pneg %p28
    %p35 = scmp.eq.s32.totalorder %s19, 1
    %p36 = por %p34, %p35
    %p37 = scmp.ne.s32.totalorder %s29, %s32
    %p38 = scmp.eq.s32.totalorder %s19, 0
    %p39 = por %p37, %p38
    %p40 = scmp.ne.s32.totalorder %s29, %s32
    %p41 = scmp.eq.s32.totalorder %s24, 1
    %p42 = por %p40, %p41
    %p43 = scmp.ne.s32.totalorder %s32, %s33
    %p44 = scmp.eq.s32.totalorder %s24, 0
    %p45 = por %p43, %p44
    %p46 = scmp.ne.s32.totalorder %s32, %s33
    %p47 = scmp.eq.s32.totalorder %s25, 1
    %p48 = por %p46, %p47
    %p50 = scmp.ne.s32.totalorder %s33, %s49
    %p51 = scmp.eq.s32.totalorder %s25, 0
    %p52 = por %p50, %p51
    %s53 = ssub.s32 %s19, %s26
    %p54 = scmp.eq.s32.totalorder %s53, 0
    %s56 = sadd.s32 %s55, 1
    %s57 = scalar_select %p54, %s55, %s56
    %p60 = pneg %p54
    %p61 = scmp.eq.s32.totalorder %s19, 1
    %p62 = por %p60, %p61
    %p63 = scmp.ne.s32.totalorder %s55, %s58
    %p64 = scmp.eq.s32.totalorder %s19, 0
    %p65 = por %p63, %p64
    %p66 = scmp.ne.s32.totalorder %s55, %s58
    %p67 = scmp.eq.s32.totalorder %s24, 1
    %p68 = por %p66, %p67
    %p69 = scmp.ne.s32.totalorder %s58, %s59
    %p70 = scmp.eq.s32.totalorder %s24, 0
    %p71 = por %p69, %p70
    %p72 = scmp.ne.s32.totalorder %s58, %s59
    %p73 = scmp.eq.s32.totalorder %s25, 1
    %p74 = por %p72, %p73
    %p76 = scmp.ne.s32.totalorder %s59, %s75
    %p77 = scmp.eq.s32.totalorder %s25, 0
    %p78 = por %p76, %p77
    %s79 = ssub.s32 %s19, %s26
    %p80 = scmp.eq.s32.totalorder %s79, 0
    %s82 = sadd.s32 %s81, 1
    %s83 = scalar_select %p80, %s81, %s82
    %p86 = pneg %p80
    %p87 = scmp.eq.s32.totalorder %s19, 1
    %p88 = por %p86, %p87
    %p89 = scmp.ne.s32.totalorder %s81, %s84
    %p90 = scmp.eq.s32.totalorder %s19, 0
    %p91 = por %p89, %p90
    %p92 = scmp.ne.s32.totalorder %s81, %s84
    %p93 = scmp.eq.s32.totalorder %s24, 1
    %p94 = por %p92, %p93
    %p95 = scmp.ne.s32.totalorder %s84, %s85
    %p96 = scmp.eq.s32.totalorder %s24, 0
    %p97 = por %p95, %p96
    %p98 = scmp.ne.s32.totalorder %s84, %s85
    %p99 = scmp.eq.s32.totalorder %s25, 1
    %p100 = por %p98, %p99
    %p102 = scmp.ne.s32.totalorder %s85, %s101
    %p103 = scmp.eq.s32.totalorder %s25, 0
    %p104 = por %p102, %p103
    %s105 = ssub.s32 %s19, %s26
    %p106 = scmp.eq.s32.totalorder %s105, 0
    %s108 = sadd.s32 %s107, 1
    %s109 = scalar_select %p106, %s107, %s108
    %p112 = pneg %p106
    %p113 = scmp.eq.s32.totalorder %s19, 1
    %p114 = por %p112, %p113
    %p115 = scmp.ne.s32.totalorder %s107, %s110
    %p116 = scmp.eq.s32.totalorder %s19, 0
    %p117 = por %p115, %p116
    %p118 = scmp.ne.s32.totalorder %s107, %s110
    %p119 = scmp.eq.s32.totalorder %s24, 1
    %p120 = por %p118, %p119
    %p121 = scmp.ne.s32.totalorder %s110, %s111
    %p122 = scmp.eq.s32.totalorder %s24, 0
    %p123 = por %p121, %p122
    %p124 = scmp.ne.s32.totalorder %s110, %s111
    %p125 = scmp.eq.s32.totalorder %s25, 1
    %p126 = por %p124, %p125
    %p128 = scmp.ne.s32.totalorder %s111, %s127
    %p129 = scmp.eq.s32.totalorder %s25, 0
    %p130 = por %p128, %p129
    %s131 = ssub.s32 %s19, %s26
    %p132 = scmp.eq.s32.totalorder %s131, 0
    %s134 = sadd.s32 %s133, 1
    %s135 = scalar_select %p132, %s133, %s134
    %p138 = pneg %p132
    %p139 = scmp.eq.s32.totalorder %s19, 1
    %p140 = por %p138, %p139
    %p141 = scmp.ne.s32.totalorder %s133, %s136
    %p142 = scmp.eq.s32.totalorder %s19, 0
    %p143 = por %p141, %p142
    %p144 = scmp.ne.s32.totalorder %s133, %s136
    %p145 = scmp.eq.s32.totalorder %s24, 1
    %p146 = por %p144, %p145
    %p147 = scmp.ne.s32.totalorder %s136, %s137
    %p148 = scmp.eq.s32.totalorder %s24, 0
    %p149 = por %p147, %p148
    %p150 = scmp.ne.s32.totalorder %s136, %s137
    %p151 = scmp.eq.s32.totalorder %s25, 1
    %p152 = por %p150, %p151
    %p154 = scmp.ne.s32.totalorder %s137, %s153
    %p155 = scmp.eq.s32.totalorder %s25, 0
    %p156 = por %p154, %p155
    %s158 = sadd.s32 %s157, 1
    %p161 = scmp.eq.s32.totalorder %s19, 1
    %p162 = scmp.ne.s32.totalorder %s157, %s159
    %p163 = scmp.eq.s32.totalorder %s19, 0
    %p164 = por %p162, %p163
    %p165 = scmp.ne.s32.totalorder %s157, %s159
    %p166 = scmp.eq.s32.totalorder %s24, 1
    %p167 = por %p165, %p166
    %p168 = scmp.ne.s32.totalorder %s159, %s160
    %p169 = scmp.eq.s32.totalorder %s24, 0
    %p170 = por %p168, %p169
    %p171 = scmp.ne.s32.totalorder %s159, %s160
    %p172 = scmp.eq.s32.totalorder %s25, 1
    %p173 = por %p171, %p172
    %p175 = scmp.ne.s32.totalorder %s160, %s174
    %p176 = scmp.eq.s32.totalorder %s25, 0
    %p177 = por %p175, %p176
    %s179 = sadd.s32 %s178, 1
    %p182 = scmp.eq.s32.totalorder %s19, 1
    %p183 = scmp.ne.s32.totalorder %s178, %s180
    %p184 = scmp.eq.s32.totalorder %s19, 0
    %p185 = por %p183, %p184
    %p186 = scmp.ne.s32.totalorder %s178, %s180
    %p187 = scmp.eq.s32.totalorder %s24, 1
    %p188 = por %p186, %p187
    %p189 = scmp.ne.s32.totalorder %s180, %s181
    %p190 = scmp.eq.s32.totalorder %s24, 0
    %p191 = por %p189, %p190
    %p192 = scmp.ne.s32.totalorder %s180, %s181
    %p193 = scmp.eq.s32.totalorder %s25, 1
    %p194 = por %p192, %p193
    %p196 = scmp.ne.s32.totalorder %s181, %s195
    %p197 = scmp.eq.s32.totalorder %s25, 0
    %p198 = por %p196, %p197
    %s200 = sadd.s32 %s199, 1
    %p203 = scmp.eq.s32.totalorder %s19, 1
    %p204 = scmp.ne.s32.totalorder %s199, %s201
    %p205 = scmp.eq.s32.totalorder %s19, 0
    %p206 = por %p204, %p205
    %p207 = scmp.ne.s32.totalorder %s199, %s201
    %p208 = scmp.eq.s32.totalorder %s24, 1
    %p209 = por %p207, %p208
    %p210 = scmp.ne.s32.totalorder %s201, %s202
    %p211 = scmp.eq.s32.totalorder %s24, 0
    %p212 = por %p210, %p211
    %p213 = scmp.ne.s32.totalorder %s201, %s202
    %p214 = scmp.eq.s32.totalorder %s25, 1
    %p215 = por %p213, %p214
    %p217 = scmp.ne.s32.totalorder %s202, %s216
    %p218 = scmp.eq.s32.totalorder %s25, 0
    %p219 = por %p217, %p218
    %s221 = sadd.s32 %s220, 1
    %p224 = scmp.eq.s32.totalorder %s19, 1
    %p225 = scmp.ne.s32.totalorder %s220, %s222
    %p226 = scmp.eq.s32.totalorder %s19, 0
    %p227 = por %p225, %p226
    %p228 = scmp.ne.s32.totalorder %s220, %s222
    %p229 = scmp.eq.s32.totalorder %s24, 1
    %p230 = por %p228, %p229
    %p231 = scmp.ne.s32.totalorder %s222, %s223
    %p232 = scmp.eq.s32.totalorder %s24, 0
    %p233 = por %p231, %p232
    %p234 = scmp.ne.s32.totalorder %s222, %s223
    %p235 = scmp.eq.s32.totalorder %s25, 1
    %p236 = por %p234, %p235
    %p238 = scmp.ne.s32.totalorder %s223, %s237
    %p239 = scmp.eq.s32.totalorder %s25, 0
    %p240 = por %p238, %p239
    %s242 = sadd.s32 %s241, 1
    %p245 = scmp.eq.s32.totalorder %s19, 1
    %p246 = scmp.ne.s32.totalorder %s241, %s243
    %p247 = scmp.eq.s32.totalorder %s19, 0
    %p248 = por %p246, %p247
    %p249 = scmp.ne.s32.totalorder %s241, %s243
    %p250 = scmp.eq.s32.totalorder %s24, 1
    %p251 = por %p249, %p250
    %p252 = scmp.ne.s32.totalorder %s243, %s244
    %p253 = scmp.eq.s32.totalorder %s24, 0
    %p254 = por %p252, %p253
    %p255 = scmp.ne.s32.totalorder %s243, %s244
    %p256 = scmp.eq.s32.totalorder %s25, 1
    %p257 = por %p255, %p256
    %p259 = scmp.ne.s32.totalorder %s244, %s258
    %p260 = scmp.eq.s32.totalorder %s25, 0
    %p261 = por %p259, %p260
    %s263 = sadd.s32 %s262, 1
    %p266 = scmp.eq.s32.totalorder %s19, 1
    %p267 = scmp.ne.s32.totalorder %s262, %s264
    %p268 = scmp.eq.s32.totalorder %s19, 0
    %p269 = por %p267, %p268
    %p270 = scmp.ne.s32.totalorder %s262, %s264
    %p271 = scmp.eq.s32.totalorder %s24, 1
    %p272 = por %p270, %p271
    %p273 = scmp.ne.s32.totalorder %s264, %s265
    %p274 = scmp.eq.s32.totalorder %s24, 0
    %p275 = por %p273, %p274
    %p276 = scmp.ne.s32.totalorder %s264, %s265
    %p277 = scmp.eq.s32.totalorder %s25, 1
    %p278 = por %p276, %p277
    %p280 = scmp.ne.s32.totalorder %s265, %s279
    %p281 = scmp.eq.s32.totalorder %s25, 0
    %p282 = por %p280, %p281
    %s284 = sadd.s32 %s283, 1
    %p287 = scmp.eq.s32.totalorder %s19, 1
    %p288 = scmp.ne.s32.totalorder %s283, %s285
    %p289 = scmp.eq.s32.totalorder %s19, 0
    %p290 = por %p288, %p289
    %p291 = scmp.ne.s32.totalorder %s283, %s285
    %p292 = scmp.eq.s32.totalorder %s24, 1
    %p293 = por %p291, %p292
    %p294 = scmp.ne.s32.totalorder %s285, %s286
    %p295 = scmp.eq.s32.totalorder %s24, 0
    %p296 = por %p294, %p295
    %p297 = scmp.ne.s32.totalorder %s285, %s286
    %p298 = scmp.eq.s32.totalorder %s25, 1
    %p299 = por %p297, %p298
    %p301 = scmp.ne.s32.totalorder %s286, %s300
    %p302 = scmp.eq.s32.totalorder %s25, 0
    %p303 = por %p301, %p302
    %s305 = sadd.s32 %s304, 1
    %p308 = scmp.eq.s32.totalorder %s19, 1
    %p309 = scmp.ne.s32.totalorder %s304, %s306
    %p310 = scmp.eq.s32.totalorder %s19, 0
    %p311 = por %p309, %p310
    %p312 = scmp.ne.s32.totalorder %s304, %s306
    %p313 = scmp.eq.s32.totalorder %s24, 1
    %p314 = por %p312, %p313
    %p315 = scmp.ne.s32.totalorder %s306, %s307
    %p316 = scmp.eq.s32.totalorder %s24, 0
    %p317 = por %p315, %p316
    %p318 = scmp.ne.s32.totalorder %s306, %s307
    %p319 = scmp.eq.s32.totalorder %s25, 1
    %p320 = por %p318, %p319
    %p322 = scmp.ne.s32.totalorder %s307, %s321
    %p323 = scmp.eq.s32.totalorder %s25, 0
    %p324 = por %p322, %p323
    %s325 = ssub.s32 %s19, %s26
    %p326 = scmp.eq.s32.totalorder %s325, 0
    %s328 = sadd.s32 %s327, 1
    %s329 = scalar_select %p326, %s327, %s328
    %p332 = pneg %p326
    %p333 = scmp.eq.s32.totalorder %s19, 1
    %p334 = por %p332, %p333
    %p335 = scmp.ne.s32.totalorder %s327, %s330
    %p336 = scmp.eq.s32.totalorder %s19, 0
    %p337 = por %p335, %p336
    %p338 = scmp.ne.s32.totalorder %s327, %s330
    %p339 = scmp.eq.s32.totalorder %s24, 1
    %p340 = por %p338, %p339
    %p341 = scmp.ne.s32.totalorder %s330, %s331
    %p342 = scmp.eq.s32.totalorder %s24, 0
    %p343 = por %p341, %p342
    %p344 = scmp.ne.s32.totalorder %s330, %s331
    %p345 = scmp.eq.s32.totalorder %s25, 1
    %p346 = por %p344, %p345
    %p348 = scmp.ne.s32.totalorder %s331, %s347
    %p349 = scmp.eq.s32.totalorder %s25, 0
    %p350 = por %p348, %p349
    %p351 = scmp.le.s32.totalorder 1, %s19
    %p352 = scmp.lt.s32.totalorder %s19, 3
    %p353 = pnand %p351, %p352
    %p354 = pneg %p353
    // Predicated region
    $region9: #{ssa_forward.1} parent=5 // pred_check
      _
    $region10: #{ssa_forward.1} parent=5 // pred_check_branch
      %356 = sbr.rel (%p353) target = $region12
    $region11: #{ssa_forward.1} parent=5 // pred_region
      %s357 = ssub.s32 %s19, 1
      // Predicated region
      $region13: #{ssa_forward.1} parent=11 // pred_check
        %p358 = pneg %p170
      $region14: #{ssa_forward.1} parent=11 // pred_check_branch
        %360 = sbr.rel (%p358) target = $region16
      $region15: #{ssa_forward.1} parent=11 // pred_region
        _
      $region16: #{ssa_forward.1} parent=11 // pred_fallthru
        _
      // Predicated region
      $region17: #{ssa_forward.1} parent=11 // pred_check
        %p361 = pneg %p191
      $region18: #{ssa_forward.1} parent=11 // pred_check_branch
        %363 = sbr.rel (%p361) target = $region20
      $region19: #{ssa_forward.1} parent=11 // pred_region
        _
      $region20: #{ssa_forward.1} parent=11 // pred_fallthru
        _
      // Predicated region
      $region21: #{ssa_forward.1} parent=11 // pred_check
        %p364 = pneg %p212
      $region22: #{ssa_forward.1} parent=11 // pred_check_branch
        %366 = sbr.rel (%p364) target = $region24
      $region23: #{ssa_forward.1} parent=11 // pred_region
        _
      $region24: #{ssa_forward.1} parent=11 // pred_fallthru
        _
      // Predicated region
      $region25: #{ssa_forward.1} parent=11 // pred_check
        %p367 = pneg %p233
      $region26: #{ssa_forward.1} parent=11 // pred_check_branch
        %369 = sbr.rel (%p367) target = $region28
      $region27: #{ssa_forward.1} parent=11 // pred_region
        _
      $region28: #{ssa_forward.1} parent=11 // pred_fallthru
        _
      // Predicated region
      $region29: #{ssa_forward.1} parent=11 // pred_check
        %p370 = pneg %p254
      $region30: #{ssa_forward.1} parent=11 // pred_check_branch
        %372 = sbr.rel (%p370) target = $region32
      $region31: #{ssa_forward.1} parent=11 // pred_region
        _
      $region32: #{ssa_forward.1} parent=11 // pred_fallthru
        _
      // Predicated region
      $region33: #{ssa_forward.1} parent=11 // pred_check
        %p373 = pneg %p275
      $region34: #{ssa_forward.1} parent=11 // pred_check_branch
        %375 = sbr.rel (%p373) target = $region36
      $region35: #{ssa_forward.1} parent=11 // pred_region
        _
      $region36: #{ssa_forward.1} parent=11 // pred_fallthru
        _
      // Predicated region
      $region37: #{ssa_forward.1} parent=11 // pred_check
        %p376 = pneg %p296
      $region38: #{ssa_forward.1} parent=11 // pred_check_branch
        %378 = sbr.rel (%p376) target = $region40
      $region39: #{ssa_forward.1} parent=11 // pred_region
        _
      $region40: #{ssa_forward.1} parent=11 // pred_fallthru
        _
      // Predicated region
      $region41: #{ssa_forward.1} parent=11 // pred_check
        %p379 = pneg %p317
      $region42: #{ssa_forward.1} parent=11 // pred_check_branch
        %381 = sbr.rel (%p379) target = $region44
      $region43: #{ssa_forward.1} parent=11 // pred_region
        _
      $region44: #{ssa_forward.1} parent=11 // pred_fallthru
        _
    $region12: #{ssa_forward.1} parent=5 // pred_fallthru
      _
    %p382 = scmp.lt.s32.totalorder %s19, 2
    // Predicated region
    $region45: #{ssa_forward.1} parent=5 // pred_check
      %p383 = pneg %p382
    $region46: #{ssa_forward.1} parent=5 // pred_check_branch
      %385 = sbr.rel (%p383) target = $region48
    $region47: #{ssa_forward.1} parent=5 // pred_region
      // Predicated region
      $region49: #{ssa_forward.1} parent=47 // pred_check
        %p386 = pneg %p39
      $region50: #{ssa_forward.1} parent=47 // pred_check_branch
        %388 = sbr.rel (%p386) target = $region52
      $region51: #{ssa_forward.1} parent=47 // pred_region
        %p389 = scmp.lt.s32.totalorder %s19, 1
        %s390 = scalar_select %p389, %s19, 1
        %s391 = smul.addr %s390, 18
        %s392 = smul.addr %s391, 8
        %s393 = scalar_lea.vmem %s0, %s392
      $region52: #{ssa_forward.1} parent=47 // pred_fallthru
        _
      // Predicated region
      $region53: #{ssa_forward.1} parent=47 // pred_check
        %p394 = pneg %p65
      $region54: #{ssa_forward.1} parent=47 // pred_check_branch
        %396 = sbr.rel (%p394) target = $region56
      $region55: #{ssa_forward.1} parent=47 // pred_region
        %p397 = scmp.lt.s32.totalorder %s19, 1
        %s398 = scalar_select %p397, %s19, 1
        %s399 = smul.addr %s398, 18
        %s400 = smul.addr %s399, 8
        %s401 = scalar_lea.vmem %s1, %s400
      $region56: #{ssa_forward.1} parent=47 // pred_fallthru
        _
      // Predicated region
      $region57: #{ssa_forward.1} parent=47 // pred_check
        %p402 = pneg %p91
      $region58: #{ssa_forward.1} parent=47 // pred_check_branch
        %404 = sbr.rel (%p402) target = $region60
      $region59: #{ssa_forward.1} parent=47 // pred_region
        %p405 = scmp.lt.s32.totalorder %s19, 1
        %s406 = scalar_select %p405, %s19, 1
        %s407 = smul.addr %s406, 2
        %s408 = smul.addr %s407, 8
        %s409 = scalar_lea.vmem %s2, %s408
      $region60: #{ssa_forward.1} parent=47 // pred_fallthru
        _
      // Predicated region
      $region61: #{ssa_forward.1} parent=47 // pred_check
        %p410 = pneg %p117
      $region62: #{ssa_forward.1} parent=47 // pred_check_branch
        %412 = sbr.rel (%p410) target = $region64
      $region63: #{ssa_forward.1} parent=47 // pred_region
        %p413 = scmp.lt.s32.totalorder %s19, 1
        %s414 = scalar_select %p413, %s19, 1
        %s415 = smul.addr %s414, 2
        %s416 = smul.addr %s415, 4
        %s417 = scalar_lea.vmem %s3, %s416
      $region64: #{ssa_forward.1} parent=47 // pred_fallthru
        _
      // Predicated region
      $region65: #{ssa_forward.1} parent=47 // pred_check
        %p418 = pneg %p143
      $region66: #{ssa_forward.1} parent=47 // pred_check_branch
        %420 = sbr.rel (%p418) target = $region68
      $region67: #{ssa_forward.1} parent=47 // pred_region
        %p421 = scmp.lt.s32.totalorder %s19, 1
        %s422 = scalar_select %p421, %s19, 1
        %s423 = smul.addr %s422, 2
        %s424 = smul.addr %s423, 4
        %s425 = scalar_lea.vmem %s4, %s424
      $region68: #{ssa_forward.1} parent=47 // pred_fallthru
        _
    $region48: #{ssa_forward.1} parent=5 // pred_fallthru
      _
    %p426 = scmp.le.s32.totalorder 1, %s19
    %p427 = scmp.lt.s32.totalorder %s19, 3
    %p428 = pnand %p426, %p427
    %p429 = pneg %p428
    // Predicated region
    $region69: #{ssa_forward.1} parent=5 // pred_check
      _
    $region70: #{ssa_forward.1} parent=5 // pred_check_branch
      %431 = sbr.rel (%p428) target = $region72
    $region71: #{ssa_forward.1} parent=5 // pred_region
      %s432 = ssub.s32 %s19, 1
      %p433 = scmp.lt.s32.totalorder %s24, 1
      %s434 = scalar_select %p433, %s24, 1
      %s435 = smul.addr %s434, 18
      %s436 = smul.addr %s435, 8
      %s437 = scalar_lea.vmem %s0, %s436
      %p438 = pneg %p45
      %p439 = pneg %p42
      %p440 = scmp.lt.s32.totalorder %s24, 1
      %s441 = scalar_select %p440, %s24, 1
      %s442 = smul.addr %s441, 18
      %s443 = smul.addr %s442, 8
      %s444 = scalar_lea.vmem %s1, %s443
      %p445 = pneg %p71
      %p446 = pneg %p68
      %p447 = scmp.lt.s32.totalorder %s24, 1
      %s448 = scalar_select %p447, %s24, 1
      %s449 = smul.addr %s448, 2
      %s450 = smul.addr %s449, 8
      %s451 = scalar_lea.vmem %s2, %s450
      %p452 = pneg %p97
      %p453 = pneg %p94
      %p454 = scmp.lt.s32.totalorder %s24, 1
      %s455 = scalar_select %p454, %s24, 1
      %s456 = smul.addr %s455, 2
      %s457 = smul.addr %s456, 4
      %s458 = scalar_lea.vmem %s3, %s457
      %p459 = pneg %p123
      %p460 = pneg %p120
      %p461 = scmp.lt.s32.totalorder %s24, 1
      %s462 = scalar_select %p461, %s24, 1
      %s463 = smul.addr %s462, 2
      %s464 = smul.addr %s463, 4
      %s465 = scalar_lea.vmem %s4, %s464
      %p466 = pneg %p149
      %p467 = pneg %p146
      %p468 = pneg %p170
      %p469 = pneg %p167
      %p470 = pneg %p191
      %p471 = pneg %p188
      %p472 = pneg %p212
      %p473 = pneg %p209
      %p474 = pneg %p233
      %p475 = pneg %p230
      %p476 = pneg %p254
      %p477 = pneg %p251
      %p478 = pneg %p275
      %p479 = pneg %p272
      %p480 = pneg %p296
      %p481 = pneg %p293
      %p482 = pneg %p317
      %p483 = pneg %p314
      %p484 = pneg %p343
      %p485 = pneg %p340
      %p486 = scmp.lt.s32.totalorder %s24, 1
      %s487 = scalar_select %p486, %s24, 1
      %s488 = smul.addr %s487, 2
      %s489 = smul.addr %s488, 4
      %s490 = scalar_lea.vmem %s13, %s489
      %p491 = scmp.lt.s32.totalorder %s24, 1
      %s492 = scalar_select %p491, %s24, 1
      %s493 = smul.addr %s492, 18
      %s494 = smul.addr %s493, 8
      %s495 = scalar_lea.vmem %s0, %s494
      %p496 = scmp.lt.s32.totalorder %s24, 1
      %s497 = scalar_select %p496, %s24, 1
      %s498 = smul.addr %s497, 18
      %s499 = smul.addr %s498, 8
      %s500 = scalar_lea.vmem %s1, %s499
      %p501 = scmp.lt.s32.totalorder %s24, 1
      %s502 = scalar_select %p501, %s24, 1
      %s503 = smul.addr %s502, 2
      %s504 = smul.addr %s503, 8
      %s505 = scalar_lea.vmem %s2, %s504
      %p506 = scmp.lt.s32.totalorder %s24, 1
      %s507 = scalar_select %p506, %s24, 1
      %s508 = smul.addr %s507, 2
      %s509 = smul.addr %s508, 4
      %s510 = scalar_lea.vmem %s3, %s509
      %p511 = scmp.lt.s32.totalorder %s24, 1
      %s512 = scalar_select %p511, %s24, 1
      %s513 = smul.addr %s512, 2
      %s514 = smul.addr %s513, 4
      %s515 = scalar_lea.vmem %s4, %s514
      %p516 = scmp.lt.s32.totalorder %s24, 1
      %s517 = scalar_select %p516, %s24, 1
      %s518 = smul.addr %s517, 2
      %s519 = smul.addr %s518, 4
      %s520 = scalar_lea.vmem %s13, %s519
      %vm521 = vcmask 261120
      %522 = vst.msk [vmem:[#allocation2] sm:$0xff] %vm521, 0.0
      %523 = vst.msk [vmem:[#allocation2 + $0x18] sm:$0xff] %vm521, 0.0
      %524 = vst.msk [vmem:[#allocation2 + $0x30] sm:$0xff] %vm521, 0.0
      %525 = vst.msk [vmem:[#allocation2 + $0x48] sm:$0xff] %vm521, 0.0
      %526 = vst.msk [vmem:[#allocation2 + $0x60] sm:$0xff] %vm521, 0.0
      %527 = vst.msk [vmem:[#allocation2 + $0x78] sm:$0xff] %vm521, 0.0
      %528 = vst.msk [vmem:[#allocation2 + $0x90] sm:$0xff] %vm521, 0.0
      %529 = vst.msk [vmem:[#allocation2 + $0xa8] sm:$0xff] %vm521, 0.0
      %530 = vst.msk [vmem:[#allocation2 + $0xc0] sm:$0xff] %vm521, 0.0
      %531 = vst.msk [vmem:[#allocation2 + $0xd8] sm:$0xff] %vm521, 0.0
      %532 = vst.msk [vmem:[#allocation2 + $0xf0] sm:$0xff] %vm521, 0.0
      %533 = vst.msk [vmem:[#allocation2 + $0x108] sm:$0xff] %vm521, 0.0
      %534 = vst.msk [vmem:[#allocation2 + $0x120] sm:$0xff] %vm521, 0.0
      %535 = vst.msk [vmem:[#allocation2 + $0x138] sm:$0xff] %vm521, 0.0
      %536 = vst.msk [vmem:[#allocation2 + $0x150] sm:$0xff] %vm521, 0.0
      %537 = vst.msk [vmem:[#allocation2 + $0x168] sm:$0xff] %vm521, 0.0
      %538 = vst.msk [vmem:[#allocation2 + $0x180] sm:$0xff] %vm521, 0.0
      %vm539 = vcmask 523520
      %540 = vst.msk [vmem:[#allocation2 + $0x10] sm:$0xff] %vm539, 0.0
      %541 = vst.msk [vmem:[#allocation2 + $0x28] sm:$0xff] %vm539, 0.0
      %542 = vst.msk [vmem:[#allocation2 + $0x40] sm:$0xff] %vm539, 0.0
      %543 = vst.msk [vmem:[#allocation2 + $0x58] sm:$0xff] %vm539, 0.0
      %544 = vst.msk [vmem:[#allocation2 + $0x70] sm:$0xff] %vm539, 0.0
      %545 = vst.msk [vmem:[#allocation2 + $0x88] sm:$0xff] %vm539, 0.0
      %546 = vst.msk [vmem:[#allocation2 + $0xa0] sm:$0xff] %vm539, 0.0
      %547 = vst.msk [vmem:[#allocation2 + $0xb8] sm:$0xff] %vm539, 0.0
      %548 = vst.msk [vmem:[#allocation2 + $0xd0] sm:$0xff] %vm539, 0.0
      %549 = vst.msk [vmem:[#allocation2 + $0xe8] sm:$0xff] %vm539, 0.0
      %550 = vst.msk [vmem:[#allocation2 + $0x100] sm:$0xff] %vm539, 0.0
      %551 = vst.msk [vmem:[#allocation2 + $0x118] sm:$0xff] %vm539, 0.0
      %552 = vst.msk [vmem:[#allocation2 + $0x130] sm:$0xff] %vm539, 0.0
      %553 = vst.msk [vmem:[#allocation2 + $0x148] sm:$0xff] %vm539, 0.0
      %554 = vst.msk [vmem:[#allocation2 + $0x160] sm:$0xff] %vm539, 0.0
      %555 = vst.msk [vmem:[#allocation2 + $0x178] sm:$0xff] %vm539, 0.0
      %556 = vst.msk [vmem:[#allocation2 + $0x190] sm:$0xff] %vm539, 0.0
      %v557 = vlaneseq
      %v558 = vand.u32 %v557, 127
      %v559 = vadd.s32 %v558, 128
      %vm560 = vcmp.lt.s32.totalorder %v558, 0
      %v561 = vsub.s32 0, %v558
      %v562 = vsel %vm560, %v561, %v558
      %v563 = vshrl.u32 %v562, 4
      %v564 = vand.u32 %v562, 15
      %v565 = vsub.s32 0, %v564
      %v566 = vsel %vm560, %v565, %v564
      %vm567 = vcmp.lt.s32.totalorder %v559, 0
      %v568 = vsub.s32 0, %v559
      %v569 = vsel %vm567, %v568, %v559
      %v570 = vshrl.u32 %v569, 4
      %v571 = vand.u32 %v569, 15
      %v572 = vsub.s32 0, %v571
      %v573 = vsel %vm567, %v572, %v571
      %vm574 = vcmp.ne.s32.totalorder %v566, 0
      %vm575 = vcmp.ne.s32.totalorder %v573, 0
      %vm576 = vcmp.lt.s32.totalorder %v566, 0
      %vm577 = vcmp.lt.s32.totalorder %v573, 0
      %vm578 = vmand %vm576, %vm574
      %vm579 = vmand %vm577, %vm575
      %v580 = vadd.s32 %v566, 16
      %v581 = vadd.s32 %v573, 16
      %v582 = vsel %vm578, %v580, %v566
      %v583 = vsel %vm579, %v581, %v573
      %vm584 = vcmp.ge.s32.totalorder %v582, 1
      %vm585 = vcmp.ge.s32.totalorder %v583, 1
      %v586 = vsel %vm584, 1, 0
      %v587 = vsel %vm585, 1, 0
      %v588 = vcvt.s32.f32 %v586
      %v589 = vcvt.s32.f32 %v587
      %vm590 = vcmp.le.s32.totalorder %v582, 14
      %vm591 = vcmp.le.s32.totalorder %v583, 14
      %v592 = vsel %vm590, 1, 0
      %v593 = vsel %vm591, 1, 0
      %v594 = vcvt.s32.f32 %v592
      %v595 = vcvt.s32.f32 %v593
      %v596 = vld [vmem:[%s495] sm:$0xff]
      %v597 = vld [vmem:[%s495 + $0x8] sm:$0xff]
      %v598 = vld [vmem:[%s495 + $0x10] sm:$0xff]
      %v599 = vld [vmem:[%s495 + $0x18] sm:$0xff]
      %v600 = vld [vmem:[%s495 + $0x20] sm:$0xff]
      %v601 = vld [vmem:[%s495 + $0x28] sm:$0xff]
      %v602 = vld [vmem:[%s495 + $0x30] sm:$0xff]
      %v603 = vld [vmem:[%s495 + $0x38] sm:$0xff]
      %v604 = vld [vmem:[%s495 + $0x40] sm:$0xff]
      %v605 = vld [vmem:[%s495 + $0x48] sm:$0xff]
      %v606 = vld [vmem:[%s495 + $0x50] sm:$0xff]
      %v607 = vld [vmem:[%s495 + $0x58] sm:$0xff]
      %v608 = vld [vmem:[%s495 + $0x60] sm:$0xff]
      %v609 = vld [vmem:[%s495 + $0x68] sm:$0xff]
      %v610 = vld [vmem:[%s495 + $0x70] sm:$0xff]
      %v611 = vld [vmem:[%s495 + $0x78] sm:$0xff]
      %v612 = vld [vmem:[%s495 + $0x80] sm:$0xf]
      %v613 = vld [vmem:[%s495 + $0x88] sm:$0xf]
      %632 = vrot.lane.b32.xlu0 %v596, 32
      %v633 = vpop.permute.xlu0 %632
      %634 = vrot.lane.b32.xlu0 %v597, 32
      %v635 = vpop.permute.xlu0 %634
      %636 = vrot.lane.b32.xlu0 %v598, 32
      %v637 = vpop.permute.xlu0 %636
      %638 = vrot.lane.b32.xlu0 %v599, 32
      %v639 = vpop.permute.xlu0 %638
      %640 = vrot.lane.b32.xlu0 %v600, 32
      %v641 = vpop.permute.xlu0 %640
      %642 = vrot.lane.b32.xlu0 %v601, 32
      %v643 = vpop.permute.xlu0 %642
      %644 = vrot.lane.b32.xlu0 %v602, 32
      %v645 = vpop.permute.xlu0 %644
      %646 = vrot.lane.b32.xlu0 %v603, 32
      %v647 = vpop.permute.xlu0 %646
      %648 = vrot.lane.b32.xlu0 %v604, 32
      %v649 = vpop.permute.xlu0 %648
      %650 = vrot.lane.b32.xlu0 %v605, 32
      %v651 = vpop.permute.xlu0 %650
      %652 = vrot.lane.b32.xlu0 %v606, 32
      %v653 = vpop.permute.xlu0 %652
      %654 = vrot.lane.b32.xlu0 %v607, 32
      %v655 = vpop.permute.xlu0 %654
      %656 = vrot.lane.b32.xlu0 %v608, 32
      %v657 = vpop.permute.xlu0 %656
      %658 = vrot.lane.b32.xlu0 %v609, 32
      %v659 = vpop.permute.xlu0 %658
      %660 = vrot.lane.b32.xlu0 %v610, 32
      %v661 = vpop.permute.xlu0 %660
      %662 = vrot.lane.b32.xlu0 %v611, 32
      %v663 = vpop.permute.xlu0 %662
      %664 = vrot.lane.b32.xlu0 %v612, 32
      %v665 = vpop.permute.xlu0 %664
      %666 = vrot.lane.b32.xlu0 %v613, 32
      %v667 = vpop.permute.xlu0 %666
      %v668 = vsel %vm521, %v633, %v635
      %v669 = vsel %vm521, %v637, %v639
      %v670 = vsel %vm521, %v641, %v643
      %v671 = vsel %vm521, %v645, %v647
      %v672 = vsel %vm521, %v649, %v651
      %v673 = vsel %vm521, %v653, %v655
      %v674 = vsel %vm521, %v657, %v659
      %v675 = vsel %vm521, %v661, %v663
      %v676 = vsel %vm521, %v665, %v667
      %vm704 = vcmask 1047808
      %705 = vst.msk [vmem:[#allocation2] sm:$0xff] %vm704, %v633
      %706 = vst [vmem:[#allocation2 + $0x8] sm:$0xff] %v668
      %707 = vst.msk [vmem:[#allocation2 + $0x10] sm:$0xff] %vm521, %v635
      %708 = vst.msk [vmem:[#allocation2 + $0x18] sm:$0xff] %vm704, %v637
      %709 = vst [vmem:[#allocation2 + $0x20] sm:$0xff] %v669
      %710 = vst.msk [vmem:[#allocation2 + $0x28] sm:$0xff] %vm521, %v639
      %711 = vst.msk [vmem:[#allocation2 + $0x30] sm:$0xff] %vm704, %v641
      %712 = vst [vmem:[#allocation2 + $0x38] sm:$0xff] %v670
      %713 = vst.msk [vmem:[#allocation2 + $0x40] sm:$0xff] %vm521, %v643
      %714 = vst.msk [vmem:[#allocation2 + $0x48] sm:$0xff] %vm704, %v645
      %715 = vst [vmem:[#allocation2 + $0x50] sm:$0xff] %v671
      %716 = vst.msk [vmem:[#allocation2 + $0x58] sm:$0xff] %vm521, %v647
      %717 = vst.msk [vmem:[#allocation2 + $0x60] sm:$0xff] %vm704, %v649
      %718 = vst [vmem:[#allocation2 + $0x68] sm:$0xff] %v672
      %719 = vst.msk [vmem:[#allocation2 + $0x70] sm:$0xff] %vm521, %v651
      %720 = vst.msk [vmem:[#allocation2 + $0x78] sm:$0xff] %vm704, %v653
      %721 = vst [vmem:[#allocation2 + $0x80] sm:$0xff] %v673
      %722 = vst.msk [vmem:[#allocation2 + $0x88] sm:$0xff] %vm521, %v655
      %723 = vst.msk [vmem:[#allocation2 + $0x90] sm:$0xff] %vm704, %v657
      %724 = vst [vmem:[#allocation2 + $0x98] sm:$0xff] %v674
      %725 = vst.msk [vmem:[#allocation2 + $0xa0] sm:$0xff] %vm521, %v659
      %726 = vst.msk [vmem:[#allocation2 + $0xa8] sm:$0xff] %vm704, %v661
      %727 = vst [vmem:[#allocation2 + $0xb0] sm:$0xff] %v675
      %728 = vst.msk [vmem:[#allocation2 + $0xb8] sm:$0xff] %vm521, %v663
      %vm729 = vcmask 1043712
      %730 = vst.msk [vmem:[#allocation2 + $0xc0] sm:$0xf] %vm729, %v665
      %731 = vst [vmem:[#allocation2 + $0xc8] sm:$0xf] %v676
      %vm732 = vcmask 257024
      %733 = vst.msk [vmem:[#allocation2 + $0xd0] sm:$0xf] %vm732, %v667
      %v734 = vld [vmem:[%s500] sm:$0xff]
      %v735 = vld [vmem:[%s500 + $0x8] sm:$0xff]
      %v736 = vld [vmem:[%s500 + $0x10] sm:$0xff]
      %v737 = vld [vmem:[%s500 + $0x18] sm:$0xff]
      %v738 = vld [vmem:[%s500 + $0x20] sm:$0xff]
      %v739 = vld [vmem:[%s500 + $0x28] sm:$0xff]
      %v740 = vld [vmem:[%s500 + $0x30] sm:$0xff]
      %v741 = vld [vmem:[%s500 + $0x38] sm:$0xff]
      %v742 = vld [vmem:[%s500 + $0x40] sm:$0xff]
      %v743 = vld [vmem:[%s500 + $0x48] sm:$0xff]
      %v744 = vld [vmem:[%s500 + $0x50] sm:$0xff]
      %v745 = vld [vmem:[%s500 + $0x58] sm:$0xff]
      %v746 = vld [vmem:[%s500 + $0x60] sm:$0xff]
      %v747 = vld [vmem:[%s500 + $0x68] sm:$0xff]
      %v748 = vld [vmem:[%s500 + $0x70] sm:$0xff]
      %v749 = vld [vmem:[%s500 + $0x78] sm:$0xff]
      %v750 = vld [vmem:[%s500 + $0x80] sm:$0xf]
      %v751 = vld [vmem:[%s500 + $0x88] sm:$0xf]
      %vm770 = vcmask 1043456
      %v771 = vrot.slane %v734, 4
      %v772 = vrot.slane %v735, 4
      %v773 = vrot.slane %v736, 4
      %v774 = vsel %vm770, %v771, %v773
      %v775 = vrot.slane %v737, 4
      %v776 = vsel %vm770, %v772, %v775
      %v777 = vrot.slane %v738, 4
      %v778 = vsel %vm770, %v773, %v777
      %v779 = vrot.slane %v739, 4
      %v780 = vsel %vm770, %v775, %v779
      %v781 = vrot.slane %v740, 4
      %v782 = vsel %vm770, %v777, %v781
      %v783 = vrot.slane %v741, 4
      %v784 = vsel %vm770, %v779, %v783
      %v785 = vrot.slane %v742, 4
      %v786 = vsel %vm770, %v781, %v785
      %v787 = vrot.slane %v743, 4
      %v788 = vsel %vm770, %v783, %v787
      %v789 = vrot.slane %v744, 4
      %v790 = vsel %vm770, %v785, %v789
      %v791 = vrot.slane %v745, 4
      %v792 = vsel %vm770, %v787, %v791
      %v793 = vrot.slane %v746, 4
      %v794 = vsel %vm770, %v789, %v793
      %v795 = vrot.slane %v747, 4
      %v796 = vsel %vm770, %v791, %v795
      %v797 = vrot.slane %v748, 4
      %v798 = vsel %vm770, %v793, %v797
      %v799 = vrot.slane %v749, 4
      %v800 = vsel %vm770, %v795, %v799
      %v801 = vrot.slane %v750, 4
      %v802 = vsel %vm770, %v797, %v801
      %v803 = vrot.slane %v751, 4
      %v804 = vsel %vm770, %v799, %v803
      %805 = vrot.lane.b32.xlu0 %v771, 32
      %v806 = vpop.permute.xlu0 %805
      %807 = vrot.lane.b32.xlu0 %v772, 32
      %v808 = vpop.permute.xlu0 %807
      %809 = vrot.lane.b32.xlu0 %v774, 32
      %v810 = vpop.permute.xlu0 %809
      %811 = vrot.lane.b32.xlu0 %v776, 32
      %v812 = vpop.permute.xlu0 %811
      %813 = vrot.lane.b32.xlu0 %v778, 32
      %v814 = vpop.permute.xlu0 %813
      %815 = vrot.lane.b32.xlu0 %v780, 32
      %v816 = vpop.permute.xlu0 %815
      %817 = vrot.lane.b32.xlu0 %v782, 32
      %v818 = vpop.permute.xlu0 %817
      %819 = vrot.lane.b32.xlu0 %v784, 32
      %v820 = vpop.permute.xlu0 %819
      %821 = vrot.lane.b32.xlu0 %v786, 32
      %v822 = vpop.permute.xlu0 %821
      %823 = vrot.lane.b32.xlu0 %v788, 32
      %v824 = vpop.permute.xlu0 %823
      %825 = vrot.lane.b32.xlu0 %v790, 32
      %v826 = vpop.permute.xlu0 %825
      %827 = vrot.lane.b32.xlu0 %v792, 32
      %v828 = vpop.permute.xlu0 %827
      %829 = vrot.lane.b32.xlu0 %v794, 32
      %v830 = vpop.permute.xlu0 %829
      %831 = vrot.lane.b32.xlu0 %v796, 32
      %v832 = vpop.permute.xlu0 %831
      %833 = vrot.lane.b32.xlu0 %v798, 32
      %v834 = vpop.permute.xlu0 %833
      %835 = vrot.lane.b32.xlu0 %v800, 32
      %v836 = vpop.permute.xlu0 %835
      %837 = vrot.lane.b32.xlu0 %v802, 32
      %v838 = vpop.permute.xlu0 %837
      %839 = vrot.lane.b32.xlu0 %v804, 32
      %v840 = vpop.permute.xlu0 %839
      %v841 = vsel %vm521, %v806, %v808
      %v842 = vsel %vm521, %v810, %v812
      %v843 = vsel %vm521, %v814, %v816
      %v844 = vsel %vm521, %v818, %v820
      %v845 = vsel %vm521, %v822, %v824
      %v846 = vsel %vm521, %v826, %v828
      %v847 = vsel %vm521, %v830, %v832
      %v848 = vsel %vm521, %v834, %v836
      %v849 = vsel %vm521, %v838, %v840
      %vm877 = vcmask 1047812
      %878 = vst.msk [vmem:[#allocation2 + $0xc0] sm:$0xf0] %vm877, %v806
      %879 = vst [vmem:[#allocation2 + $0xc8] sm:$0xf0] %v841
      %vm880 = vcmask 261124
      %881 = vst.msk [vmem:[#allocation2 + $0xd0] sm:$0xf0] %vm880, %v808
      %882 = vst.msk [vmem:[#allocation2 + $0xd8] sm:$0xff] %vm704, %v810
      %883 = vst [vmem:[#allocation2 + $0xe0] sm:$0xff] %v842
      %884 = vst.msk [vmem:[#allocation2 + $0xe8] sm:$0xff] %vm521, %v812
      %885 = vst.msk [vmem:[#allocation2 + $0xf0] sm:$0xff] %vm704, %v814
      %886 = vst [vmem:[#allocation2 + $0xf8] sm:$0xff] %v843
      %887 = vst.msk [vmem:[#allocation2 + $0x100] sm:$0xff] %vm521, %v816
      %888 = vst.msk [vmem:[#allocation2 + $0x108] sm:$0xff] %vm704, %v818
      %889 = vst [vmem:[#allocation2 + $0x110] sm:$0xff] %v844
      %890 = vst.msk [vmem:[#allocation2 + $0x118] sm:$0xff] %vm521, %v820
      %891 = vst.msk [vmem:[#allocation2 + $0x120] sm:$0xff] %vm704, %v822
      %892 = vst [vmem:[#allocation2 + $0x128] sm:$0xff] %v845
      %893 = vst.msk [vmem:[#allocation2 + $0x130] sm:$0xff] %vm521, %v824
      %894 = vst.msk [vmem:[#allocation2 + $0x138] sm:$0xff] %vm704, %v826
      %895 = vst [vmem:[#allocation2 + $0x140] sm:$0xff] %v846
      %896 = vst.msk [vmem:[#allocation2 + $0x148] sm:$0xff] %vm521, %v828
      %897 = vst.msk [vmem:[#allocation2 + $0x150] sm:$0xff] %vm704, %v830
      %898 = vst [vmem:[#allocation2 + $0x158] sm:$0xff] %v847
      %899 = vst.msk [vmem:[#allocation2 + $0x160] sm:$0xff] %vm521, %v832
      %900 = vst.msk [vmem:[#allocation2 + $0x168] sm:$0xff] %vm704, %v834
      %901 = vst [vmem:[#allocation2 + $0x170] sm:$0xff] %v848
      %902 = vst.msk [vmem:[#allocation2 + $0x178] sm:$0xff] %vm521, %v836
      %903 = vst.msk [vmem:[#allocation2 + $0x180] sm:$0xff] %vm704, %v838
      %904 = vst [vmem:[#allocation2 + $0x188] sm:$0xff] %v849
      %905 = vst.msk [vmem:[#allocation2 + $0x190] sm:$0xff] %vm521, %v840
      %v906 = vld [vmem:[%s5] sm:$0xff]
      %v907 = vld [vmem:[%s5 + $0x8] sm:$0xff]
      %v908 = vld [vmem:[%s5 + $0x10] sm:$0xff]
      %v909 = vld [vmem:[%s5 + $0x18] sm:$0xff]
      %v910 = vld [vmem:[#allocation2] sm:$0xff]
      %v911 = vld [vmem:[#allocation2 + $0x8] sm:$0xff]
      %v912 = vld [vmem:[#allocation2 + $0x10] sm:$0xff]
      %v913 = vld [vmem:[#allocation2 + $0x18] sm:$0xff]
      %v914 = vld [vmem:[#allocation2 + $0x20] sm:$0xff]
      %v915 = vld [vmem:[#allocation2 + $0x28] sm:$0xff]
      %v916 = vld [vmem:[#allocation2 + $0x30] sm:$0xff]
      %v917 = vld [vmem:[#allocation2 + $0x38] sm:$0xff]
      %v918 = vld [vmem:[#allocation2 + $0x40] sm:$0xff]
      %v919 = vld [vmem:[#allocation2 + $0x48] sm:$0xff]
      %v920 = vld [vmem:[#allocation2 + $0x50] sm:$0xff]
      %v921 = vld [vmem:[#allocation2 + $0x58] sm:$0xff]
      %v922 = vld [vmem:[#allocation2 + $0x60] sm:$0xff]
      %v923 = vld [vmem:[#allocation2 + $0x68] sm:$0xff]
      %v924 = vld [vmem:[#allocation2 + $0x70] sm:$0xff]
      %v925 = vld [vmem:[#allocation2 + $0x78] sm:$0xff]
      %v926 = vld [vmem:[#allocation2 + $0x80] sm:$0xff]
      %v927 = vld [vmem:[#allocation2 + $0x88] sm:$0xff]
      %v928 = vld [vmem:[#allocation2 + $0x90] sm:$0xff]
      %v929 = vld [vmem:[#allocation2 + $0x98] sm:$0xff]
      %v930 = vld [vmem:[#allocation2 + $0xa0] sm:$0xff]
      %v931 = vld [vmem:[#allocation2 + $0xa8] sm:$0xff]
      %v932 = vld [vmem:[#allocation2 + $0xb0] sm:$0xff]
      %v933 = vld [vmem:[#allocation2 + $0xb8] sm:$0xff]
      %v934 = vld [vmem:[#allocation2 + $0xc0] sm:$0xff]
      %v935 = vld [vmem:[#allocation2 + $0xc8] sm:$0xff]
      %v936 = vld [vmem:[#allocation2 + $0xd0] sm:$0xff]
      %v937 = vld [vmem:[#allocation2 + $0xd8] sm:$0xff]
      %v938 = vld [vmem:[#allocation2 + $0xe0] sm:$0xff]
      %v939 = vld [vmem:[#allocation2 + $0xe8] sm:$0xff]
      %v940 = vld [vmem:[#allocation2 + $0xf0] sm:$0xff]
      %v941 = vld [vmem:[#allocation2 + $0xf8] sm:$0xff]
      %v942 = vld [vmem:[#allocation2 + $0x100] sm:$0xff]
      %v943 = vld [vmem:[#allocation2 + $0x108] sm:$0xff]
      %v944 = vld [vmem:[#allocation2 + $0x110] sm:$0xff]
      %v945 = vld [vmem:[#allocation2 + $0x118] sm:$0xff]
      %v946 = vld [vmem:[#allocation2 + $0x120] sm:$0xff]
      %v947 = vld [vmem:[#allocation2 + $0x128] sm:$0xff]
      %v948 = vld [vmem:[#allocation2 + $0x130] sm:$0xff]
      %v949 = vld [vmem:[#allocation2 + $0x138] sm:$0xff]
      %v950 = vld [vmem:[#allocation2 + $0x140] sm:$0xff]
      %v951 = vld [vmem:[#allocation2 + $0x148] sm:$0xff]
      %v952 = vld [vmem:[#allocation2 + $0x150] sm:$0xff]
      %v953 = vld [vmem:[#allocation2 + $0x158] sm:$0xff]
      %v954 = vld [vmem:[#allocation2 + $0x160] sm:$0xff]
      %v955 = vld [vmem:[#allocation2 + $0x168] sm:$0xff]
      %v956 = vld [vmem:[#allocation2 + $0x170] sm:$0xff]
      %v957 = vld [vmem:[#allocation2 + $0x178] sm:$0xff]
      %v958 = vld [vmem:[#allocation2 + $0x180] sm:$0xff]
      %v959 = vld [vmem:[#allocation2 + $0x188] sm:$0xff]
      %v960 = vld [vmem:[#allocation2 + $0x190] sm:$0xff]
      %s961 = scalar_lea.vmem %s5, 32
      %v962 = vld [vmem:[%s961] sm:$0xff]
      %v963 = vld [vmem:[%s961 + $0x8] sm:$0xff]
      %v964 = vld [vmem:[%s961 + $0x10] sm:$0xff]
      %v965 = vld [vmem:[%s961 + $0x18] sm:$0xff]
      %s966 = scalar_lea.vmem %s5, 64
      %v967 = vld [vmem:[%s966] sm:$0xff]
      %v968 = vld [vmem:[%s966 + $0x8] sm:$0xff]
      %v969 = vld [vmem:[%s966 + $0x10] sm:$0xff]
      %v970 = vld [vmem:[%s966 + $0x18] sm:$0xff]
      %s971 = scalar_lea.vmem %s5, 96
      %v972 = vld [vmem:[%s971] sm:$0xff]
      %v973 = vld [vmem:[%s971 + $0x8] sm:$0xff]
      %v974 = vld [vmem:[%s971 + $0x10] sm:$0xff]
      %v975 = vld [vmem:[%s971 + $0x18] sm:$0xff]
      %1027 = vrot.lane.b32.xlu0 %v910, 97
      %v1028 = vpop.permute.xlu0 %1027
      %1029 = vrot.lane.b32.xlu0 %v911, 97
      %v1030 = vpop.permute.xlu0 %1029
      %1031 = vrot.lane.b32.xlu0 %v912, 97
      %v1032 = vpop.permute.xlu0 %1031
      %1033 = vrot.lane.b32.xlu0 %v913, 97
      %v1034 = vpop.permute.xlu0 %1033
      %1035 = vrot.lane.b32.xlu0 %v914, 97
      %v1036 = vpop.permute.xlu0 %1035
      %1037 = vrot.lane.b32.xlu0 %v915, 97
      %v1038 = vpop.permute.xlu0 %1037
      %1039 = vrot.lane.b32.xlu0 %v916, 97
      %v1040 = vpop.permute.xlu0 %1039
      %1041 = vrot.lane.b32.xlu0 %v917, 97
      %v1042 = vpop.permute.xlu0 %1041
      %1043 = vrot.lane.b32.xlu0 %v918, 97
      %v1044 = vpop.permute.xlu0 %1043
      %1045 = vrot.lane.b32.xlu0 %v919, 97
      %v1046 = vpop.permute.xlu0 %1045
      %1047 = vrot.lane.b32.xlu0 %v920, 97
      %v1048 = vpop.permute.xlu0 %1047
      %1049 = vrot.lane.b32.xlu0 %v921, 97
      %v1050 = vpop.permute.xlu0 %1049
      %1051 = vrot.lane.b32.xlu0 %v922, 97
      %v1052 = vpop.permute.xlu0 %1051
      %1053 = vrot.lane.b32.xlu0 %v923, 97
      %v1054 = vpop.permute.xlu0 %1053
      %1055 = vrot.lane.b32.xlu0 %v924, 97
      %v1056 = vpop.permute.xlu0 %1055
      %1057 = vrot.lane.b32.xlu0 %v925, 97
      %v1058 = vpop.permute.xlu0 %1057
      %1059 = vrot.lane.b32.xlu0 %v926, 97
      %v1060 = vpop.permute.xlu0 %1059
      %1061 = vrot.lane.b32.xlu0 %v927, 97
      %v1062 = vpop.permute.xlu0 %1061
      %1063 = vrot.lane.b32.xlu0 %v928, 97
      %v1064 = vpop.permute.xlu0 %1063
      %1065 = vrot.lane.b32.xlu0 %v929, 97
      %v1066 = vpop.permute.xlu0 %1065
      %1067 = vrot.lane.b32.xlu0 %v930, 97
      %v1068 = vpop.permute.xlu0 %1067
      %1069 = vrot.lane.b32.xlu0 %v931, 97
      %v1070 = vpop.permute.xlu0 %1069
      %1071 = vrot.lane.b32.xlu0 %v932, 97
      %v1072 = vpop.permute.xlu0 %1071
      %1073 = vrot.lane.b32.xlu0 %v933, 97
      %v1074 = vpop.permute.xlu0 %1073
      %1075 = vrot.lane.b32.xlu0 %v934, 97
      %v1076 = vpop.permute.xlu0 %1075
      %1077 = vrot.lane.b32.xlu0 %v935, 97
      %v1078 = vpop.permute.xlu0 %1077
      %1079 = vrot.lane.b32.xlu0 %v936, 97
      %v1080 = vpop.permute.xlu0 %1079
      %1081 = vrot.lane.b32.xlu0 %v937, 97
      %v1082 = vpop.permute.xlu0 %1081
      %1083 = vrot.lane.b32.xlu0 %v938, 97
      %v1084 = vpop.permute.xlu0 %1083
      %1085 = vrot.lane.b32.xlu0 %v939, 97
      %v1086 = vpop.permute.xlu0 %1085
      %1087 = vrot.lane.b32.xlu0 %v940, 97
      %v1088 = vpop.permute.xlu0 %1087
      %1089 = vrot.lane.b32.xlu0 %v941, 97
      %v1090 = vpop.permute.xlu0 %1089
      %1091 = vrot.lane.b32.xlu0 %v942, 97
      %v1092 = vpop.permute.xlu0 %1091
      %1093 = vrot.lane.b32.xlu0 %v943, 97
      %v1094 = vpop.permute.xlu0 %1093
      %1095 = vrot.lane.b32.xlu0 %v944, 97
      %v1096 = vpop.permute.xlu0 %1095
      %1097 = vrot.lane.b32.xlu0 %v945, 97
      %v1098 = vpop.permute.xlu0 %1097
      %1099 = vrot.lane.b32.xlu0 %v946, 97
      %v1100 = vpop.permute.xlu0 %1099
      %1101 = vrot.lane.b32.xlu0 %v947, 97
      %v1102 = vpop.permute.xlu0 %1101
      %1103 = vrot.lane.b32.xlu0 %v948, 97
      %v1104 = vpop.permute.xlu0 %1103
      %1105 = vrot.lane.b32.xlu0 %v949, 97
      %v1106 = vpop.permute.xlu0 %1105
      %1107 = vrot.lane.b32.xlu0 %v950, 97
      %v1108 = vpop.permute.xlu0 %1107
      %1109 = vrot.lane.b32.xlu0 %v951, 97
      %v1110 = vpop.permute.xlu0 %1109
      %1111 = vrot.lane.b32.xlu0 %v952, 97
      %v1112 = vpop.permute.xlu0 %1111
      %1113 = vrot.lane.b32.xlu0 %v953, 97
      %v1114 = vpop.permute.xlu0 %1113
      %1115 = vrot.lane.b32.xlu0 %v954, 97
      %v1116 = vpop.permute.xlu0 %1115
      %1117 = vrot.lane.b32.xlu0 %v955, 97
      %v1118 = vpop.permute.xlu0 %1117
      %1119 = vrot.lane.b32.xlu0 %v956, 97
      %v1120 = vpop.permute.xlu0 %1119
      %1121 = vrot.lane.b32.xlu0 %v957, 97
      %v1122 = vpop.permute.xlu0 %1121
      %1123 = vrot.lane.b32.xlu0 %v958, 97
      %v1124 = vpop.permute.xlu0 %1123
      %1125 = vrot.lane.b32.xlu0 %v959, 97
      %v1126 = vpop.permute.xlu0 %1125
      %1127 = vrot.lane.b32.xlu0 %v960, 97
      %v1128 = vpop.permute.xlu0 %1127
      %vm1129 = vcmask 793600
      %v1130 = vsel %vm1129, %v1028, %v1030
      %v1131 = vsel %vm1129, %v1030, %v1032
      %v1132 = vsel %vm1129, %v1034, %v1036
      %v1133 = vsel %vm1129, %v1036, %v1038
      %v1134 = vsel %vm1129, %v1040, %v1042
      %v1135 = vsel %vm1129, %v1042, %v1044
      %v1136 = vsel %vm1129, %v1046, %v1048
      %v1137 = vsel %vm1129, %v1048, %v1050
      %v1138 = vsel %vm1129, %v1052, %v1054
      %v1139 = vsel %vm1129, %v1054, %v1056
      %v1140 = vsel %vm1129, %v1058, %v1060
      %v1141 = vsel %vm1129, %v1060, %v1062
      %v1142 = vsel %vm1129, %v1064, %v1066
      %v1143 = vsel %vm1129, %v1066, %v1068
      %v1144 = vsel %vm1129, %v1070, %v1072
      %v1145 = vsel %vm1129, %v1072, %v1074
      %v1146 = vsel %vm1129, %v1076, %v1078
      %v1147 = vsel %vm1129, %v1078, %v1080
      %v1148 = vsel %vm1129, %v1082, %v1084
      %v1149 = vsel %vm1129, %v1084, %v1086
      %v1150 = vsel %vm1129, %v1088, %v1090
      %v1151 = vsel %vm1129, %v1090, %v1092
      %v1152 = vsel %vm1129, %v1094, %v1096
      %v1153 = vsel %vm1129, %v1096, %v1098
      %v1154 = vsel %vm1129, %v1100, %v1102
      %v1155 = vsel %vm1129, %v1102, %v1104
      %v1156 = vsel %vm1129, %v1106, %v1108
      %v1157 = vsel %vm1129, %v1108, %v1110
      %v1158 = vsel %vm1129, %v1112, %v1114
      %v1159 = vsel %vm1129, %v1114, %v1116
      %v1160 = vsel %vm1129, %v1118, %v1120
      %v1161 = vsel %vm1129, %v1120, %v1122
      %v1162 = vsel %vm1129, %v1124, %v1126
      %v1163 = vsel %vm1129, %v1126, %v1128
      %vm1198 = vcmask 64512
      %v1200 = vsel %vm1198, %v973, 0
      %v1203 = vsel %vm1198, %v975, 0
      %1205 = vmatpush.msra.mxu0 %v1160
      %1206 = vmatpush.msra.mxu0 %v1158
      %1207 = vmatpush.msra.mxu0 %v1156
      %1208 = vmatpush.msra.mxu0 %v1154
      %1209 = vmatpush.msra.mxu0 %v1152
      %1210 = vmatpush.msra.mxu0 %v1150
      %1211 = vmatpush.msra.mxu0 %v1148
      %1212 = vmatpush.msra.mxu0 %v1146
      %1213 = vmatpush.msra.mxu0 %v1144
      %1214 = vmatpush.msra.mxu0 %v1142
      %1215 = vmatpush.msra.mxu0 %v1140
      %1216 = vmatpush.msra.mxu0 %v1138
      %1217 = vmatpush.msra.mxu0 %v1136
      %1218 = vmatpush.msra.mxu0 %v1134
      %1219 = vmatpush.msra.mxu0 %v1132
      %1220 = vmatpush.msra.mxu0 %v1130
      %1221 = vmatmul.f32.gmra.mxu0 %v972
      %v1222 = vpop.f32.mrf.mxu0
      %v1223 = vadd.f32 0.0, %v1222
      %1224 = vmatmul.f32.gmra.mxu0 %v974
      %v1225 = vpop.f32.mrf.mxu0
      %v1226 = vadd.f32 0.0, %v1225
      %1227 = vdwg.mxu0
      %1228 = vmatpush.msra.mxu0 0.0
      %1229 = vmatpush.msra.mxu0 0.0
      %1230 = vmatpush.msra.mxu0 0.0
      %1231 = vmatpush.msra.mxu0 0.0
      %1232 = vmatpush.msra.mxu0 0.0
      %1233 = vmatpush.msra.mxu0 0.0
      %1234 = vmatpush.msra.mxu0 0.0
      %1235 = vmatpush.msra.mxu0 0.0
      %1236 = vmatpush.msra.mxu0 0.0
      %1237 = vmatpush.msra.mxu0 0.0
      %1238 = vmatpush.msra.mxu0 0.0
      %1239 = vmatpush.msra.mxu0 0.0
      %1240 = vmatpush.msra.mxu0 0.0
      %1241 = vmatpush.msra.mxu0 0.0
      %1242 = vmatpush.msra.mxu0 0.0
      %1243 = vmatpush.msra.mxu0 %v1162
      %1244 = vmatmul.f32.gmra.mxu0 %v1200
      %v1245 = vpop.f32.mrf.mxu0
      %v1246 = vadd.f32 %v1223, %v1245
      %1247 = vmatmul.f32.gmra.mxu0 %v1203
      %v1248 = vpop.f32.mrf.mxu0
      %v1249 = vadd.f32 %v1226, %v1248
      %1250 = vdwg.mxu0
      %1251 = vmatpush.msra.mxu0 %v1161
      %1252 = vmatpush.msra.mxu0 %v1159
      %1253 = vmatpush.msra.mxu0 %v1157
      %1254 = vmatpush.msra.mxu0 %v1155
      %1255 = vmatpush.msra.mxu0 %v1153
      %1256 = vmatpush.msra.mxu0 %v1151
      %1257 = vmatpush.msra.mxu0 %v1149
      %1258 = vmatpush.msra.mxu0 %v1147
      %1259 = vmatpush.msra.mxu0 %v1145
      %1260 = vmatpush.msra.mxu0 %v1143
      %1261 = vmatpush.msra.mxu0 %v1141
      %1262 = vmatpush.msra.mxu0 %v1139
      %1263 = vmatpush.msra.mxu0 %v1137
      %1264 = vmatpush.msra.mxu0 %v1135
      %1265 = vmatpush.msra.mxu0 %v1133
      %1266 = vmatpush.msra.mxu0 %v1131
      %1267 = vmatmul.f32.gmra.mxu0 %v972
      %v1268 = vpop.f32.mrf.mxu0
      %v1269 = vadd.f32 0.0, %v1268
      %1270 = vmatmul.f32.gmra.mxu0 %v974
      %v1271 = vpop.f32.mrf.mxu0
      %v1272 = vadd.f32 0.0, %v1271
      %1273 = vdwg.mxu0
      %1274 = vmatpush.msra.mxu0 0.0
      %1275 = vmatpush.msra.mxu0 0.0
      %1276 = vmatpush.msra.mxu0 0.0
      %1277 = vmatpush.msra.mxu0 0.0
      %1278 = vmatpush.msra.mxu0 0.0
      %1279 = vmatpush.msra.mxu0 0.0
      %1280 = vmatpush.msra.mxu0 0.0
      %1281 = vmatpush.msra.mxu0 0.0
      %1282 = vmatpush.msra.mxu0 0.0
      %1283 = vmatpush.msra.mxu0 0.0
      %1284 = vmatpush.msra.mxu0 0.0
      %1285 = vmatpush.msra.mxu0 0.0
      %1286 = vmatpush.msra.mxu0 0.0
      %1287 = vmatpush.msra.mxu0 0.0
      %1288 = vmatpush.msra.mxu0 0.0
      %1289 = vmatpush.msra.mxu0 %v1163
      %1290 = vmatmul.f32.gmra.mxu0 %v1200
      %v1291 = vpop.f32.mrf.mxu0
      %v1292 = vadd.f32 %v1269, %v1291
      %1293 = vmatmul.f32.gmra.mxu0 %v1203
      %v1294 = vpop.f32.mrf.mxu0
      %v1295 = vadd.f32 %v1272, %v1294
      %1296 = vdwg.mxu0
      %1297 = vrot.lane.b32.xlu0 %v910, 113
      %v1298 = vpop.permute.xlu0 %1297
      %1299 = vrot.lane.b32.xlu0 %v911, 113
      %v1300 = vpop.permute.xlu0 %1299
      %1301 = vrot.lane.b32.xlu0 %v912, 113
      %v1302 = vpop.permute.xlu0 %1301
      %1303 = vrot.lane.b32.xlu0 %v913, 113
      %v1304 = vpop.permute.xlu0 %1303
      %1305 = vrot.lane.b32.xlu0 %v914, 113
      %v1306 = vpop.permute.xlu0 %1305
      %1307 = vrot.lane.b32.xlu0 %v915, 113
      %v1308 = vpop.permute.xlu0 %1307
      %1309 = vrot.lane.b32.xlu0 %v916, 113
      %v1310 = vpop.permute.xlu0 %1309
      %1311 = vrot.lane.b32.xlu0 %v917, 113
      %v1312 = vpop.permute.xlu0 %1311
      %1313 = vrot.lane.b32.xlu0 %v918, 113
      %v1314 = vpop.permute.xlu0 %1313
      %1315 = vrot.lane.b32.xlu0 %v919, 113
      %v1316 = vpop.permute.xlu0 %1315
      %1317 = vrot.lane.b32.xlu0 %v920, 113
      %v1318 = vpop.permute.xlu0 %1317
      %1319 = vrot.lane.b32.xlu0 %v921, 113
      %v1320 = vpop.permute.xlu0 %1319
      %1321 = vrot.lane.b32.xlu0 %v922, 113
      %v1322 = vpop.permute.xlu0 %1321
      %1323 = vrot.lane.b32.xlu0 %v923, 113
      %v1324 = vpop.permute.xlu0 %1323
      %1325 = vrot.lane.b32.xlu0 %v924, 113
      %v1326 = vpop.permute.xlu0 %1325
      %1327 = vrot.lane.b32.xlu0 %v925, 113
      %v1328 = vpop.permute.xlu0 %1327
      %1329 = vrot.lane.b32.xlu0 %v926, 113
      %v1330 = vpop.permute.xlu0 %1329
      %1331 = vrot.lane.b32.xlu0 %v927, 113
      %v1332 = vpop.permute.xlu0 %1331
      %1333 = vrot.lane.b32.xlu0 %v928, 113
      %v1334 = vpop.permute.xlu0 %1333
      %1335 = vrot.lane.b32.xlu0 %v929, 113
      %v1336 = vpop.permute.xlu0 %1335
      %1337 = vrot.lane.b32.xlu0 %v930, 113
      %v1338 = vpop.permute.xlu0 %1337
      %1339 = vrot.lane.b32.xlu0 %v931, 113
      %v1340 = vpop.permute.xlu0 %1339
      %1341 = vrot.lane.b32.xlu0 %v932, 113
      %v1342 = vpop.permute.xlu0 %1341
      %1343 = vrot.lane.b32.xlu0 %v933, 113
      %v1344 = vpop.permute.xlu0 %1343
      %1345 = vrot.lane.b32.xlu0 %v934, 113
      %v1346 = vpop.permute.xlu0 %1345
      %1347 = vrot.lane.b32.xlu0 %v935, 113
      %v1348 = vpop.permute.xlu0 %1347
      %1349 = vrot.lane.b32.xlu0 %v936, 113
      %v1350 = vpop.permute.xlu0 %1349
      %1351 = vrot.lane.b32.xlu0 %v937, 113
      %v1352 = vpop.permute.xlu0 %1351
      %1353 = vrot.lane.b32.xlu0 %v938, 113
      %v1354 = vpop.permute.xlu0 %1353
      %1355 = vrot.lane.b32.xlu0 %v939, 113
      %v1356 = vpop.permute.xlu0 %1355
      %1357 = vrot.lane.b32.xlu0 %v940, 113
      %v1358 = vpop.permute.xlu0 %1357
      %1359 = vrot.lane.b32.xlu0 %v941, 113
      %v1360 = vpop.permute.xlu0 %1359
      %1361 = vrot.lane.b32.xlu0 %v942, 113
      %v1362 = vpop.permute.xlu0 %1361
      %1363 = vrot.lane.b32.xlu0 %v943, 113
      %v1364 = vpop.permute.xlu0 %1363
      %1365 = vrot.lane.b32.xlu0 %v944, 113
      %v1366 = vpop.permute.xlu0 %1365
      %1367 = vrot.lane.b32.xlu0 %v945, 113
      %v1368 = vpop.permute.xlu0 %1367
      %1369 = vrot.lane.b32.xlu0 %v946, 113
      %v1370 = vpop.permute.xlu0 %1369
      %1371 = vrot.lane.b32.xlu0 %v947, 113
      %v1372 = vpop.permute.xlu0 %1371
      %1373 = vrot.lane.b32.xlu0 %v948, 113
      %v1374 = vpop.permute.xlu0 %1373
      %1375 = vrot.lane.b32.xlu0 %v949, 113
      %v1376 = vpop.permute.xlu0 %1375
      %1377 = vrot.lane.b32.xlu0 %v950, 113
      %v1378 = vpop.permute.xlu0 %1377
      %1379 = vrot.lane.b32.xlu0 %v951, 113
      %v1380 = vpop.permute.xlu0 %1379
      %1381 = vrot.lane.b32.xlu0 %v952, 113
      %v1382 = vpop.permute.xlu0 %1381
      %1383 = vrot.lane.b32.xlu0 %v953, 113
      %v1384 = vpop.permute.xlu0 %1383
      %1385 = vrot.lane.b32.xlu0 %v954, 113
      %v1386 = vpop.permute.xlu0 %1385
      %1387 = vrot.lane.b32.xlu0 %v955, 113
      %v1388 = vpop.permute.xlu0 %1387
      %1389 = vrot.lane.b32.xlu0 %v956, 113
      %v1390 = vpop.permute.xlu0 %1389
      %1391 = vrot.lane.b32.xlu0 %v957, 113
      %v1392 = vpop.permute.xlu0 %1391
      %1393 = vrot.lane.b32.xlu0 %v958, 113
      %v1394 = vpop.permute.xlu0 %1393
      %1395 = vrot.lane.b32.xlu0 %v959, 113
      %v1396 = vpop.permute.xlu0 %1395
      %1397 = vrot.lane.b32.xlu0 %v960, 113
      %v1398 = vpop.permute.xlu0 %1397
      %vm1399 = vcmask 924672
      %v1400 = vsel %vm1399, %v1298, %v1300
      %v1401 = vsel %vm1399, %v1300, %v1302
      %v1402 = vsel %vm1399, %v1304, %v1306
      %v1403 = vsel %vm1399, %v1306, %v1308
      %v1404 = vsel %vm1399, %v1310, %v1312
      %v1405 = vsel %vm1399, %v1312, %v1314
      %v1406 = vsel %vm1399, %v1316, %v1318
      %v1407 = vsel %vm1399, %v1318, %v1320
      %v1408 = vsel %vm1399, %v1322, %v1324
      %v1409 = vsel %vm1399, %v1324, %v1326
      %v1410 = vsel %vm1399, %v1328, %v1330
      %v1411 = vsel %vm1399, %v1330, %v1332
      %v1412 = vsel %vm1399, %v1334, %v1336
      %v1413 = vsel %vm1399, %v1336, %v1338
      %v1414 = vsel %vm1399, %v1340, %v1342
      %v1415 = vsel %vm1399, %v1342, %v1344
      %v1416 = vsel %vm1399, %v1346, %v1348
      %v1417 = vsel %vm1399, %v1348, %v1350
      %v1418 = vsel %vm1399, %v1352, %v1354
      %v1419 = vsel %vm1399, %v1354, %v1356
      %v1420 = vsel %vm1399, %v1358, %v1360
      %v1421 = vsel %vm1399, %v1360, %v1362
      %v1422 = vsel %vm1399, %v1364, %v1366
      %v1423 = vsel %vm1399, %v1366, %v1368
      %v1424 = vsel %vm1399, %v1370, %v1372
      %v1425 = vsel %vm1399, %v1372, %v1374
      %v1426 = vsel %vm1399, %v1376, %v1378
      %v1427 = vsel %vm1399, %v1378, %v1380
      %v1428 = vsel %vm1399, %v1382, %v1384
      %v1429 = vsel %vm1399, %v1384, %v1386
      %v1430 = vsel %vm1399, %v1388, %v1390
      %v1431 = vsel %vm1399, %v1390, %v1392
      %v1432 = vsel %vm1399, %v1394, %v1396
      %v1433 = vsel %vm1399, %v1396, %v1398
      %v1469 = vsel %vm1198, %v907, 0
      %v1472 = vsel %vm1198, %v909, 0
      %1474 = vmatpush.msra.mxu0 %v1430
      %1475 = vmatpush.msra.mxu0 %v1428
      %1476 = vmatpush.msra.mxu0 %v1426
      %1477 = vmatpush.msra.mxu0 %v1424
      %1478 = vmatpush.msra.mxu0 %v1422
      %1479 = vmatpush.msra.mxu0 %v1420
      %1480 = vmatpush.msra.mxu0 %v1418
      %1481 = vmatpush.msra.mxu0 %v1416
      %1482 = vmatpush.msra.mxu0 %v1414
      %1483 = vmatpush.msra.mxu0 %v1412
      %1484 = vmatpush.msra.mxu0 %v1410
      %1485 = vmatpush.msra.mxu0 %v1408
      %1486 = vmatpush.msra.mxu0 %v1406
      %1487 = vmatpush.msra.mxu0 %v1404
      %1488 = vmatpush.msra.mxu0 %v1402
      %1489 = vmatpush.msra.mxu0 %v1400
      %1490 = vmatmul.f32.gmra.mxu0 %v906
      %v1491 = vpop.f32.mrf.mxu0
      %v1492 = vadd.f32 %v1246, %v1491
      %1493 = vmatmul.f32.gmra.mxu0 %v908
      %v1494 = vpop.f32.mrf.mxu0
      %v1495 = vadd.f32 %v1249, %v1494
      %1496 = vdwg.mxu0
      %1497 = vmatpush.msra.mxu0 0.0
      %1498 = vmatpush.msra.mxu0 0.0
      %1499 = vmatpush.msra.mxu0 0.0
      %1500 = vmatpush.msra.mxu0 0.0
      %1501 = vmatpush.msra.mxu0 0.0
      %1502 = vmatpush.msra.mxu0 0.0
      %1503 = vmatpush.msra.mxu0 0.0
      %1504 = vmatpush.msra.mxu0 0.0
      %1505 = vmatpush.msra.mxu0 0.0
      %1506 = vmatpush.msra.mxu0 0.0
      %1507 = vmatpush.msra.mxu0 0.0
      %1508 = vmatpush.msra.mxu0 0.0
      %1509 = vmatpush.msra.mxu0 0.0
      %1510 = vmatpush.msra.mxu0 0.0
      %1511 = vmatpush.msra.mxu0 0.0
      %1512 = vmatpush.msra.mxu0 %v1432
      %1513 = vmatmul.f32.gmra.mxu0 %v1469
      %v1514 = vpop.f32.mrf.mxu0
      %v1515 = vadd.f32 %v1492, %v1514
      %1516 = vmatmul.f32.gmra.mxu0 %v1472
      %v1517 = vpop.f32.mrf.mxu0
      %v1518 = vadd.f32 %v1495, %v1517
      %1519 = vdwg.mxu0
      %1520 = vmatpush.msra.mxu0 %v1431
      %1521 = vmatpush.msra.mxu0 %v1429
      %1522 = vmatpush.msra.mxu0 %v1427
      %1523 = vmatpush.msra.mxu0 %v1425
      %1524 = vmatpush.msra.mxu0 %v1423
      %1525 = vmatpush.msra.mxu0 %v1421
      %1526 = vmatpush.msra.mxu0 %v1419
      %1527 = vmatpush.msra.mxu0 %v1417
      %1528 = vmatpush.msra.mxu0 %v1415
      %1529 = vmatpush.msra.mxu0 %v1413
      %1530 = vmatpush.msra.mxu0 %v1411
      %1531 = vmatpush.msra.mxu0 %v1409
      %1532 = vmatpush.msra.mxu0 %v1407
      %1533 = vmatpush.msra.mxu0 %v1405
      %1534 = vmatpush.msra.mxu0 %v1403
      %1535 = vmatpush.msra.mxu0 %v1401
      %1536 = vmatmul.f32.gmra.mxu0 %v906
      %v1537 = vpop.f32.mrf.mxu0
      %v1538 = vadd.f32 %v1292, %v1537
      %1539 = vmatmul.f32.gmra.mxu0 %v908
      %v1540 = vpop.f32.mrf.mxu0
      %v1541 = vadd.f32 %v1295, %v1540
      %1542 = vdwg.mxu0
      %1543 = vmatpush.msra.mxu0 0.0
      %1544 = vmatpush.msra.mxu0 0.0
      %1545 = vmatpush.msra.mxu0 0.0
      %1546 = vmatpush.msra.mxu0 0.0
      %1547 = vmatpush.msra.mxu0 0.0
      %1548 = vmatpush.msra.mxu0 0.0
      %1549 = vmatpush.msra.mxu0 0.0
      %1550 = vmatpush.msra.mxu0 0.0
      %1551 = vmatpush.msra.mxu0 0.0
      %1552 = vmatpush.msra.mxu0 0.0
      %1553 = vmatpush.msra.mxu0 0.0
      %1554 = vmatpush.msra.mxu0 0.0
      %1555 = vmatpush.msra.mxu0 0.0
      %1556 = vmatpush.msra.mxu0 0.0
      %1557 = vmatpush.msra.mxu0 0.0
      %1558 = vmatpush.msra.mxu0 %v1433
      %1559 = vmatmul.f32.gmra.mxu0 %v1469
      %v1560 = vpop.f32.mrf.mxu0
      %v1561 = vadd.f32 %v1538, %v1560
      %1562 = vmatmul.f32.gmra.mxu0 %v1472
      %v1563 = vpop.f32.mrf.mxu0
      %v1564 = vadd.f32 %v1541, %v1563
      %1565 = vdwg.mxu0
      %s1566 = scalar_lea.vmem %s5, 128
      %v1567 = vld [vmem:[%s1566] sm:$0xff]
      %v1568 = vld [vmem:[%s1566 + $0x8] sm:$0xff]
      %v1569 = vld [vmem:[%s1566 + $0x10] sm:$0xff]
      %v1570 = vld [vmem:[%s1566 + $0x18] sm:$0xff]
      %1571 = vrot.lane.b32.xlu0 %v910, 96
      %v1572 = vpop.permute.xlu0 %1571
      %1573 = vrot.lane.b32.xlu0 %v911, 96
      %v1574 = vpop.permute.xlu0 %1573
      %1575 = vrot.lane.b32.xlu0 %v912, 96
      %v1576 = vpop.permute.xlu0 %1575
      %1577 = vrot.lane.b32.xlu0 %v913, 96
      %v1578 = vpop.permute.xlu0 %1577
      %1579 = vrot.lane.b32.xlu0 %v914, 96
      %v1580 = vpop.permute.xlu0 %1579
      %1581 = vrot.lane.b32.xlu0 %v915, 96
      %v1582 = vpop.permute.xlu0 %1581
      %1583 = vrot.lane.b32.xlu0 %v916, 96
      %v1584 = vpop.permute.xlu0 %1583
      %1585 = vrot.lane.b32.xlu0 %v917, 96
      %v1586 = vpop.permute.xlu0 %1585
      %1587 = vrot.lane.b32.xlu0 %v918, 96
      %v1588 = vpop.permute.xlu0 %1587
      %1589 = vrot.lane.b32.xlu0 %v919, 96
      %v1590 = vpop.permute.xlu0 %1589
      %1591 = vrot.lane.b32.xlu0 %v920, 96
      %v1592 = vpop.permute.xlu0 %1591
      %1593 = vrot.lane.b32.xlu0 %v921, 96
      %v1594 = vpop.permute.xlu0 %1593
      %1595 = vrot.lane.b32.xlu0 %v922, 96
      %v1596 = vpop.permute.xlu0 %1595
      %1597 = vrot.lane.b32.xlu0 %v923, 96
      %v1598 = vpop.permute.xlu0 %1597
      %1599 = vrot.lane.b32.xlu0 %v924, 96
      %v1600 = vpop.permute.xlu0 %1599
      %1601 = vrot.lane.b32.xlu0 %v925, 96
      %v1602 = vpop.permute.xlu0 %1601
      %1603 = vrot.lane.b32.xlu0 %v926, 96
      %v1604 = vpop.permute.xlu0 %1603
      %1605 = vrot.lane.b32.xlu0 %v927, 96
      %v1606 = vpop.permute.xlu0 %1605
      %1607 = vrot.lane.b32.xlu0 %v928, 96
      %v1608 = vpop.permute.xlu0 %1607
      %1609 = vrot.lane.b32.xlu0 %v929, 96
      %v1610 = vpop.permute.xlu0 %1609
      %1611 = vrot.lane.b32.xlu0 %v930, 96
      %v1612 = vpop.permute.xlu0 %1611
      %1613 = vrot.lane.b32.xlu0 %v931, 96
      %v1614 = vpop.permute.xlu0 %1613
      %1615 = vrot.lane.b32.xlu0 %v932, 96
      %v1616 = vpop.permute.xlu0 %1615
      %1617 = vrot.lane.b32.xlu0 %v933, 96
      %v1618 = vpop.permute.xlu0 %1617
      %1619 = vrot.lane.b32.xlu0 %v934, 96
      %v1620 = vpop.permute.xlu0 %1619
      %1621 = vrot.lane.b32.xlu0 %v935, 96
      %v1622 = vpop.permute.xlu0 %1621
      %1623 = vrot.lane.b32.xlu0 %v936, 96
      %v1624 = vpop.permute.xlu0 %1623
      %1625 = vrot.lane.b32.xlu0 %v937, 96
      %v1626 = vpop.permute.xlu0 %1625
      %1627 = vrot.lane.b32.xlu0 %v938, 96
      %v1628 = vpop.permute.xlu0 %1627
      %1629 = vrot.lane.b32.xlu0 %v939, 96
      %v1630 = vpop.permute.xlu0 %1629
      %1631 = vrot.lane.b32.xlu0 %v940, 96
      %v1632 = vpop.permute.xlu0 %1631
      %1633 = vrot.lane.b32.xlu0 %v941, 96
      %v1634 = vpop.permute.xlu0 %1633
      %1635 = vrot.lane.b32.xlu0 %v942, 96
      %v1636 = vpop.permute.xlu0 %1635
      %1637 = vrot.lane.b32.xlu0 %v943, 96
      %v1638 = vpop.permute.xlu0 %1637
      %1639 = vrot.lane.b32.xlu0 %v944, 96
      %v1640 = vpop.permute.xlu0 %1639
      %1641 = vrot.lane.b32.xlu0 %v945, 96
      %v1642 = vpop.permute.xlu0 %1641
      %1643 = vrot.lane.b32.xlu0 %v946, 96
      %v1644 = vpop.permute.xlu0 %1643
      %1645 = vrot.lane.b32.xlu0 %v947, 96
      %v1646 = vpop.permute.xlu0 %1645
      %1647 = vrot.lane.b32.xlu0 %v948, 96
      %v1648 = vpop.permute.xlu0 %1647
      %1649 = vrot.lane.b32.xlu0 %v949, 96
      %v1650 = vpop.permute.xlu0 %1649
      %1651 = vrot.lane.b32.xlu0 %v950, 96
      %v1652 = vpop.permute.xlu0 %1651
      %1653 = vrot.lane.b32.xlu0 %v951, 96
      %v1654 = vpop.permute.xlu0 %1653
      %1655 = vrot.lane.b32.xlu0 %v952, 96
      %v1656 = vpop.permute.xlu0 %1655
      %1657 = vrot.lane.b32.xlu0 %v953, 96
      %v1658 = vpop.permute.xlu0 %1657
      %1659 = vrot.lane.b32.xlu0 %v954, 96
      %v1660 = vpop.permute.xlu0 %1659
      %1661 = vrot.lane.b32.xlu0 %v955, 96
      %v1662 = vpop.permute.xlu0 %1661
      %1663 = vrot.lane.b32.xlu0 %v956, 96
      %v1664 = vpop.permute.xlu0 %1663
      %1665 = vrot.lane.b32.xlu0 %v957, 96
      %v1666 = vpop.permute.xlu0 %1665
      %1667 = vrot.lane.b32.xlu0 %v958, 96
      %v1668 = vpop.permute.xlu0 %1667
      %1669 = vrot.lane.b32.xlu0 %v959, 96
      %v1670 = vpop.permute.xlu0 %1669
      %1671 = vrot.lane.b32.xlu0 %v960, 96
      %v1672 = vpop.permute.xlu0 %1671
      %vm1673 = vcmask 785408
      %v1674 = vsel %vm1673, %v1572, %v1574
      %v1675 = vsel %vm1673, %v1574, %v1576
      %v1676 = vsel %vm1673, %v1578, %v1580
      %v1677 = vsel %vm1673, %v1580, %v1582
      %v1678 = vsel %vm1673, %v1584, %v1586
      %v1679 = vsel %vm1673, %v1586, %v1588
      %v1680 = vsel %vm1673, %v1590, %v1592
      %v1681 = vsel %vm1673, %v1592, %v1594
      %v1682 = vsel %vm1673, %v1596, %v1598
      %v1683 = vsel %vm1673, %v1598, %v1600
      %v1684 = vsel %vm1673, %v1602, %v1604
      %v1685 = vsel %vm1673, %v1604, %v1606
      %v1686 = vsel %vm1673, %v1608, %v1610
      %v1687 = vsel %vm1673, %v1610, %v1612
      %v1688 = vsel %vm1673, %v1614, %v1616
      %v1689 = vsel %vm1673, %v1616, %v1618
      %v1690 = vsel %vm1673, %v1620, %v1622
      %v1691 = vsel %vm1673, %v1622, %v1624
      %v1692 = vsel %vm1673, %v1626, %v1628
      %v1693 = vsel %vm1673, %v1628, %v1630
      %v1694 = vsel %vm1673, %v1632, %v1634
      %v1695 = vsel %vm1673, %v1634, %v1636
      %v1696 = vsel %vm1673, %v1638, %v1640
      %v1697 = vsel %vm1673, %v1640, %v1642
      %v1698 = vsel %vm1673, %v1644, %v1646
      %v1699 = vsel %vm1673, %v1646, %v1648
      %v1700 = vsel %vm1673, %v1650, %v1652
      %v1701 = vsel %vm1673, %v1652, %v1654
      %v1702 = vsel %vm1673, %v1656, %v1658
      %v1703 = vsel %vm1673, %v1658, %v1660
      %v1704 = vsel %vm1673, %v1662, %v1664
      %v1705 = vsel %vm1673, %v1664, %v1666
      %v1706 = vsel %vm1673, %v1668, %v1670
      %v1707 = vsel %vm1673, %v1670, %v1672
      %v1743 = vsel %vm1198, %v1568, 0
      %v1746 = vsel %vm1198, %v1570, 0
      %1748 = vmatpush.msra.mxu0 %v1704
      %1749 = vmatpush.msra.mxu0 %v1702
      %1750 = vmatpush.msra.mxu0 %v1700
      %1751 = vmatpush.msra.mxu0 %v1698
      %1752 = vmatpush.msra.mxu0 %v1696
      %1753 = vmatpush.msra.mxu0 %v1694
      %1754 = vmatpush.msra.mxu0 %v1692
      %1755 = vmatpush.msra.mxu0 %v1690
      %1756 = vmatpush.msra.mxu0 %v1688
      %1757 = vmatpush.msra.mxu0 %v1686
      %1758 = vmatpush.msra.mxu0 %v1684
      %1759 = vmatpush.msra.mxu0 %v1682
      %1760 = vmatpush.msra.mxu0 %v1680
      %1761 = vmatpush.msra.mxu0 %v1678
      %1762 = vmatpush.msra.mxu0 %v1676
      %1763 = vmatpush.msra.mxu0 %v1674
      %1764 = vmatmul.f32.gmra.mxu0 %v1567
      %v1765 = vpop.f32.mrf.mxu0
      %v1766 = vadd.f32 0.0, %v1765
      %1767 = vmatmul.f32.gmra.mxu0 %v1569
      %v1768 = vpop.f32.mrf.mxu0
      %v1769 = vadd.f32 0.0, %v1768
      %1770 = vdwg.mxu0
      %1771 = vmatpush.msra.mxu0 0.0
      %1772 = vmatpush.msra.mxu0 0.0
      %1773 = vmatpush.msra.mxu0 0.0
      %1774 = vmatpush.msra.mxu0 0.0
      %1775 = vmatpush.msra.mxu0 0.0
      %1776 = vmatpush.msra.mxu0 0.0
      %1777 = vmatpush.msra.mxu0 0.0
      %1778 = vmatpush.msra.mxu0 0.0
      %1779 = vmatpush.msra.mxu0 0.0
      %1780 = vmatpush.msra.mxu0 0.0
      %1781 = vmatpush.msra.mxu0 0.0
      %1782 = vmatpush.msra.mxu0 0.0
      %1783 = vmatpush.msra.mxu0 0.0
      %1784 = vmatpush.msra.mxu0 0.0
      %1785 = vmatpush.msra.mxu0 0.0
      %1786 = vmatpush.msra.mxu0 %v1706
      %1787 = vmatmul.f32.gmra.mxu0 %v1743
      %v1788 = vpop.f32.mrf.mxu0
      %v1789 = vadd.f32 %v1766, %v1788
      %1790 = vmatmul.f32.gmra.mxu0 %v1746
      %v1791 = vpop.f32.mrf.mxu0
      %v1792 = vadd.f32 %v1769, %v1791
      %1793 = vdwg.mxu0
      %1794 = vmatpush.msra.mxu0 %v1705
      %1795 = vmatpush.msra.mxu0 %v1703
      %1796 = vmatpush.msra.mxu0 %v1701
      %1797 = vmatpush.msra.mxu0 %v1699
      %1798 = vmatpush.msra.mxu0 %v1697
      %1799 = vmatpush.msra.mxu0 %v1695
      %1800 = vmatpush.msra.mxu0 %v1693
      %1801 = vmatpush.msra.mxu0 %v1691
      %1802 = vmatpush.msra.mxu0 %v1689
      %1803 = vmatpush.msra.mxu0 %v1687
      %1804 = vmatpush.msra.mxu0 %v1685
      %1805 = vmatpush.msra.mxu0 %v1683
      %1806 = vmatpush.msra.mxu0 %v1681
      %1807 = vmatpush.msra.mxu0 %v1679
      %1808 = vmatpush.msra.mxu0 %v1677
      %1809 = vmatpush.msra.mxu0 %v1675
      %1810 = vmatmul.f32.gmra.mxu0 %v1567
      %v1811 = vpop.f32.mrf.mxu0
      %v1812 = vadd.f32 0.0, %v1811
      %1813 = vmatmul.f32.gmra.mxu0 %v1569
      %v1814 = vpop.f32.mrf.mxu0
      %v1815 = vadd.f32 0.0, %v1814
      %1816 = vdwg.mxu0
      %1817 = vmatpush.msra.mxu0 0.0
      %1818 = vmatpush.msra.mxu0 0.0
      %1819 = vmatpush.msra.mxu0 0.0
      %1820 = vmatpush.msra.mxu0 0.0
      %1821 = vmatpush.msra.mxu0 0.0
      %1822 = vmatpush.msra.mxu0 0.0
      %1823 = vmatpush.msra.mxu0 0.0
      %1824 = vmatpush.msra.mxu0 0.0
      %1825 = vmatpush.msra.mxu0 0.0
      %1826 = vmatpush.msra.mxu0 0.0
      %1827 = vmatpush.msra.mxu0 0.0
      %1828 = vmatpush.msra.mxu0 0.0
      %1829 = vmatpush.msra.mxu0 0.0
      %1830 = vmatpush.msra.mxu0 0.0
      %1831 = vmatpush.msra.mxu0 0.0
      %1832 = vmatpush.msra.mxu0 %v1707
      %1833 = vmatmul.f32.gmra.mxu0 %v1743
      %v1834 = vpop.f32.mrf.mxu0
      %v1835 = vadd.f32 %v1812, %v1834
      %1836 = vmatmul.f32.gmra.mxu0 %v1746
      %v1837 = vpop.f32.mrf.mxu0
      %v1838 = vadd.f32 %v1815, %v1837
      %1839 = vdwg.mxu0
      %1840 = vrot.lane.b32.xlu0 %v910, 112
      %v1841 = vpop.permute.xlu0 %1840
      %1842 = vrot.lane.b32.xlu0 %v911, 112
      %v1843 = vpop.permute.xlu0 %1842
      %1844 = vrot.lane.b32.xlu0 %v912, 112
      %v1845 = vpop.permute.xlu0 %1844
      %1846 = vrot.lane.b32.xlu0 %v913, 112
      %v1847 = vpop.permute.xlu0 %1846
      %1848 = vrot.lane.b32.xlu0 %v914, 112
      %v1849 = vpop.permute.xlu0 %1848
      %1850 = vrot.lane.b32.xlu0 %v915, 112
      %v1851 = vpop.permute.xlu0 %1850
      %1852 = vrot.lane.b32.xlu0 %v916, 112
      %v1853 = vpop.permute.xlu0 %1852
      %1854 = vrot.lane.b32.xlu0 %v917, 112
      %v1855 = vpop.permute.xlu0 %1854
      %1856 = vrot.lane.b32.xlu0 %v918, 112
      %v1857 = vpop.permute.xlu0 %1856
      %1858 = vrot.lane.b32.xlu0 %v919, 112
      %v1859 = vpop.permute.xlu0 %1858
      %1860 = vrot.lane.b32.xlu0 %v920, 112
      %v1861 = vpop.permute.xlu0 %1860
      %1862 = vrot.lane.b32.xlu0 %v921, 112
      %v1863 = vpop.permute.xlu0 %1862
      %1864 = vrot.lane.b32.xlu0 %v922, 112
      %v1865 = vpop.permute.xlu0 %1864
      %1866 = vrot.lane.b32.xlu0 %v923, 112
      %v1867 = vpop.permute.xlu0 %1866
      %1868 = vrot.lane.b32.xlu0 %v924, 112
      %v1869 = vpop.permute.xlu0 %1868
      %1870 = vrot.lane.b32.xlu0 %v925, 112
      %v1871 = vpop.permute.xlu0 %1870
      %1872 = vrot.lane.b32.xlu0 %v926, 112
      %v1873 = vpop.permute.xlu0 %1872
      %1874 = vrot.lane.b32.xlu0 %v927, 112
      %v1875 = vpop.permute.xlu0 %1874
      %1876 = vrot.lane.b32.xlu0 %v928, 112
      %v1877 = vpop.permute.xlu0 %1876
      %1878 = vrot.lane.b32.xlu0 %v929, 112
      %v1879 = vpop.permute.xlu0 %1878
      %1880 = vrot.lane.b32.xlu0 %v930, 112
      %v1881 = vpop.permute.xlu0 %1880
      %1882 = vrot.lane.b32.xlu0 %v931, 112
      %v1883 = vpop.permute.xlu0 %1882
      %1884 = vrot.lane.b32.xlu0 %v932, 112
      %v1885 = vpop.permute.xlu0 %1884
      %1886 = vrot.lane.b32.xlu0 %v933, 112
      %v1887 = vpop.permute.xlu0 %1886
      %1888 = vrot.lane.b32.xlu0 %v934, 112
      %v1889 = vpop.permute.xlu0 %1888
      %1890 = vrot.lane.b32.xlu0 %v935, 112
      %v1891 = vpop.permute.xlu0 %1890
      %1892 = vrot.lane.b32.xlu0 %v936, 112
      %v1893 = vpop.permute.xlu0 %1892
      %1894 = vrot.lane.b32.xlu0 %v937, 112
      %v1895 = vpop.permute.xlu0 %1894
      %1896 = vrot.lane.b32.xlu0 %v938, 112
      %v1897 = vpop.permute.xlu0 %1896
      %1898 = vrot.lane.b32.xlu0 %v939, 112
      %v1899 = vpop.permute.xlu0 %1898
      %1900 = vrot.lane.b32.xlu0 %v940, 112
      %v1901 = vpop.permute.xlu0 %1900
      %1902 = vrot.lane.b32.xlu0 %v941, 112
      %v1903 = vpop.permute.xlu0 %1902
      %1904 = vrot.lane.b32.xlu0 %v942, 112
      %v1905 = vpop.permute.xlu0 %1904
      %1906 = vrot.lane.b32.xlu0 %v943, 112
      %v1907 = vpop.permute.xlu0 %1906
      %1908 = vrot.lane.b32.xlu0 %v944, 112
      %v1909 = vpop.permute.xlu0 %1908
      %1910 = vrot.lane.b32.xlu0 %v945, 112
      %v1911 = vpop.permute.xlu0 %1910
      %1912 = vrot.lane.b32.xlu0 %v946, 112
      %v1913 = vpop.permute.xlu0 %1912
      %1914 = vrot.lane.b32.xlu0 %v947, 112
      %v1915 = vpop.permute.xlu0 %1914
      %1916 = vrot.lane.b32.xlu0 %v948, 112
      %v1917 = vpop.permute.xlu0 %1916
      %1918 = vrot.lane.b32.xlu0 %v949, 112
      %v1919 = vpop.permute.xlu0 %1918
      %1920 = vrot.lane.b32.xlu0 %v950, 112
      %v1921 = vpop.permute.xlu0 %1920
      %1922 = vrot.lane.b32.xlu0 %v951, 112
      %v1923 = vpop.permute.xlu0 %1922
      %1924 = vrot.lane.b32.xlu0 %v952, 112
      %v1925 = vpop.permute.xlu0 %1924
      %1926 = vrot.lane.b32.xlu0 %v953, 112
      %v1927 = vpop.permute.xlu0 %1926
      %1928 = vrot.lane.b32.xlu0 %v954, 112
      %v1929 = vpop.permute.xlu0 %1928
      %1930 = vrot.lane.b32.xlu0 %v955, 112
      %v1931 = vpop.permute.xlu0 %1930
      %1932 = vrot.lane.b32.xlu0 %v956, 112
      %v1933 = vpop.permute.xlu0 %1932
      %1934 = vrot.lane.b32.xlu0 %v957, 112
      %v1935 = vpop.permute.xlu0 %1934
      %1936 = vrot.lane.b32.xlu0 %v958, 112
      %v1937 = vpop.permute.xlu0 %1936
      %1938 = vrot.lane.b32.xlu0 %v959, 112
      %v1939 = vpop.permute.xlu0 %1938
      %1940 = vrot.lane.b32.xlu0 %v960, 112
      %v1941 = vpop.permute.xlu0 %1940
      %vm1942 = vcmask 916480
      %v1943 = vsel %vm1942, %v1841, %v1843
      %v1944 = vsel %vm1942, %v1843, %v1845
      %v1945 = vsel %vm1942, %v1847, %v1849
      %v1946 = vsel %vm1942, %v1849, %v1851
      %v1947 = vsel %vm1942, %v1853, %v1855
      %v1948 = vsel %vm1942, %v1855, %v1857
      %v1949 = vsel %vm1942, %v1859, %v1861
      %v1950 = vsel %vm1942, %v1861, %v1863
      %v1951 = vsel %vm1942, %v1865, %v1867
      %v1952 = vsel %vm1942, %v1867, %v1869
      %v1953 = vsel %vm1942, %v1871, %v1873
      %v1954 = vsel %vm1942, %v1873, %v1875
      %v1955 = vsel %vm1942, %v1877, %v1879
      %v1956 = vsel %vm1942, %v1879, %v1881
      %v1957 = vsel %vm1942, %v1883, %v1885
      %v1958 = vsel %vm1942, %v1885, %v1887
      %v1959 = vsel %vm1942, %v1889, %v1891
      %v1960 = vsel %vm1942, %v1891, %v1893
      %v1961 = vsel %vm1942, %v1895, %v1897
      %v1962 = vsel %vm1942, %v1897, %v1899
      %v1963 = vsel %vm1942, %v1901, %v1903
      %v1964 = vsel %vm1942, %v1903, %v1905
      %v1965 = vsel %vm1942, %v1907, %v1909
      %v1966 = vsel %vm1942, %v1909, %v1911
      %v1967 = vsel %vm1942, %v1913, %v1915
      %v1968 = vsel %vm1942, %v1915, %v1917
      %v1969 = vsel %vm1942, %v1919, %v1921
      %v1970 = vsel %vm1942, %v1921, %v1923
      %v1971 = vsel %vm1942, %v1925, %v1927
      %v1972 = vsel %vm1942, %v1927, %v1929
      %v1973 = vsel %vm1942, %v1931, %v1933
      %v1974 = vsel %vm1942, %v1933, %v1935
      %v1975 = vsel %vm1942, %v1937, %v1939
      %v1976 = vsel %vm1942, %v1939, %v1941
      %v2012 = vsel %vm1198, %v963, 0
      %v2015 = vsel %vm1198, %v965, 0
      %2017 = vmatpush.msra.mxu0 %v1973
      %2018 = vmatpush.msra.mxu0 %v1971
      %2019 = vmatpush.msra.mxu0 %v1969
      %2020 = vmatpush.msra.mxu0 %v1967
      %2021 = vmatpush.msra.mxu0 %v1965
      %2022 = vmatpush.msra.mxu0 %v1963
      %2023 = vmatpush.msra.mxu0 %v1961
      %2024 = vmatpush.msra.mxu0 %v1959
      %2025 = vmatpush.msra.mxu0 %v1957
      %2026 = vmatpush.msra.mxu0 %v1955
      %2027 = vmatpush.msra.mxu0 %v1953
      %2028 = vmatpush.msra.mxu0 %v1951
      %2029 = vmatpush.msra.mxu0 %v1949
      %2030 = vmatpush.msra.mxu0 %v1947
      %2031 = vmatpush.msra.mxu0 %v1945
      %2032 = vmatpush.msra.mxu0 %v1943
      %2033 = vmatmul.f32.gmra.mxu0 %v962
      %v2034 = vpop.f32.mrf.mxu0
      %v2035 = vadd.f32 %v1789, %v2034
      %2036 = vmatmul.f32.gmra.mxu0 %v964
      %v2037 = vpop.f32.mrf.mxu0
      %v2038 = vadd.f32 %v1792, %v2037
      %2039 = vdwg.mxu0
      %2040 = vmatpush.msra.mxu0 0.0
      %2041 = vmatpush.msra.mxu0 0.0
      %2042 = vmatpush.msra.mxu0 0.0
      %2043 = vmatpush.msra.mxu0 0.0
      %2044 = vmatpush.msra.mxu0 0.0
      %2045 = vmatpush.msra.mxu0 0.0
      %2046 = vmatpush.msra.mxu0 0.0
      %2047 = vmatpush.msra.mxu0 0.0
      %2048 = vmatpush.msra.mxu0 0.0
      %2049 = vmatpush.msra.mxu0 0.0
      %2050 = vmatpush.msra.mxu0 0.0
      %2051 = vmatpush.msra.mxu0 0.0
      %2052 = vmatpush.msra.mxu0 0.0
      %2053 = vmatpush.msra.mxu0 0.0
      %2054 = vmatpush.msra.mxu0 0.0
      %2055 = vmatpush.msra.mxu0 %v1975
      %2056 = vmatmul.f32.gmra.mxu0 %v2012
      %v2057 = vpop.f32.mrf.mxu0
      %v2058 = vadd.f32 %v2035, %v2057
      %2059 = vmatmul.f32.gmra.mxu0 %v2015
      %v2060 = vpop.f32.mrf.mxu0
      %v2061 = vadd.f32 %v2038, %v2060
      %2062 = vdwg.mxu0
      %2063 = vmatpush.msra.mxu0 %v1974
      %2064 = vmatpush.msra.mxu0 %v1972
      %2065 = vmatpush.msra.mxu0 %v1970
      %2066 = vmatpush.msra.mxu0 %v1968
      %2067 = vmatpush.msra.mxu0 %v1966
      %2068 = vmatpush.msra.mxu0 %v1964
      %2069 = vmatpush.msra.mxu0 %v1962
      %2070 = vmatpush.msra.mxu0 %v1960
      %2071 = vmatpush.msra.mxu0 %v1958
      %2072 = vmatpush.msra.mxu0 %v1956
      %2073 = vmatpush.msra.mxu0 %v1954
      %2074 = vmatpush.msra.mxu0 %v1952
      %2075 = vmatpush.msra.mxu0 %v1950
      %2076 = vmatpush.msra.mxu0 %v1948
      %2077 = vmatpush.msra.mxu0 %v1946
      %2078 = vmatpush.msra.mxu0 %v1944
      %2079 = vmatmul.f32.gmra.mxu0 %v962
      %v2080 = vpop.f32.mrf.mxu0
      %v2081 = vadd.f32 %v1835, %v2080
      %2082 = vmatmul.f32.gmra.mxu0 %v964
      %v2083 = vpop.f32.mrf.mxu0
      %v2084 = vadd.f32 %v1838, %v2083
      %2085 = vdwg.mxu0
      %2086 = vmatpush.msra.mxu0 0.0
      %2087 = vmatpush.msra.mxu0 0.0
      %2088 = vmatpush.msra.mxu0 0.0
      %2089 = vmatpush.msra.mxu0 0.0
      %2090 = vmatpush.msra.mxu0 0.0
      %2091 = vmatpush.msra.mxu0 0.0
      %2092 = vmatpush.msra.mxu0 0.0
      %2093 = vmatpush.msra.mxu0 0.0
      %2094 = vmatpush.msra.mxu0 0.0
      %2095 = vmatpush.msra.mxu0 0.0
      %2096 = vmatpush.msra.mxu0 0.0
      %2097 = vmatpush.msra.mxu0 0.0
      %2098 = vmatpush.msra.mxu0 0.0
      %2099 = vmatpush.msra.mxu0 0.0
      %2100 = vmatpush.msra.mxu0 0.0
      %2101 = vmatpush.msra.mxu0 %v1976
      %2102 = vmatmul.f32.gmra.mxu0 %v2012
      %v2103 = vpop.f32.mrf.mxu0
      %v2104 = vadd.f32 %v2081, %v2103
      %2105 = vmatmul.f32.gmra.mxu0 %v2015
      %v2106 = vpop.f32.mrf.mxu0
      %v2107 = vadd.f32 %v2084, %v2106
      %2108 = vdwg.mxu0
      %s2109 = scalar_lea.vmem %s5, 160
      %v2110 = vld [vmem:[%s2109] sm:$0xff]
      %v2111 = vld [vmem:[%s2109 + $0x8] sm:$0xff]
      %v2112 = vld [vmem:[%s2109 + $0x10] sm:$0xff]
      %v2113 = vld [vmem:[%s2109 + $0x18] sm:$0xff]
      %2114 = vrot.lane.b32.xlu0 %v910, 95
      %v2115 = vpop.permute.xlu0 %2114
      %2116 = vrot.lane.b32.xlu0 %v911, 95
      %v2117 = vpop.permute.xlu0 %2116
      %2118 = vrot.lane.b32.xlu0 %v912, 95
      %v2119 = vpop.permute.xlu0 %2118
      %2120 = vrot.lane.b32.xlu0 %v913, 95
      %v2121 = vpop.permute.xlu0 %2120
      %2122 = vrot.lane.b32.xlu0 %v914, 95
      %v2123 = vpop.permute.xlu0 %2122
      %2124 = vrot.lane.b32.xlu0 %v915, 95
      %v2125 = vpop.permute.xlu0 %2124
      %2126 = vrot.lane.b32.xlu0 %v916, 95
      %v2127 = vpop.permute.xlu0 %2126
      %2128 = vrot.lane.b32.xlu0 %v917, 95
      %v2129 = vpop.permute.xlu0 %2128
      %2130 = vrot.lane.b32.xlu0 %v918, 95
      %v2131 = vpop.permute.xlu0 %2130
      %2132 = vrot.lane.b32.xlu0 %v919, 95
      %v2133 = vpop.permute.xlu0 %2132
      %2134 = vrot.lane.b32.xlu0 %v920, 95
      %v2135 = vpop.permute.xlu0 %2134
      %2136 = vrot.lane.b32.xlu0 %v921, 95
      %v2137 = vpop.permute.xlu0 %2136
      %2138 = vrot.lane.b32.xlu0 %v922, 95
      %v2139 = vpop.permute.xlu0 %2138
      %2140 = vrot.lane.b32.xlu0 %v923, 95
      %v2141 = vpop.permute.xlu0 %2140
      %2142 = vrot.lane.b32.xlu0 %v924, 95
      %v2143 = vpop.permute.xlu0 %2142
      %2144 = vrot.lane.b32.xlu0 %v925, 95
      %v2145 = vpop.permute.xlu0 %2144
      %2146 = vrot.lane.b32.xlu0 %v926, 95
      %v2147 = vpop.permute.xlu0 %2146
      %2148 = vrot.lane.b32.xlu0 %v927, 95
      %v2149 = vpop.permute.xlu0 %2148
      %2150 = vrot.lane.b32.xlu0 %v928, 95
      %v2151 = vpop.permute.xlu0 %2150
      %2152 = vrot.lane.b32.xlu0 %v929, 95
      %v2153 = vpop.permute.xlu0 %2152
      %2154 = vrot.lane.b32.xlu0 %v930, 95
      %v2155 = vpop.permute.xlu0 %2154
      %2156 = vrot.lane.b32.xlu0 %v931, 95
      %v2157 = vpop.permute.xlu0 %2156
      %2158 = vrot.lane.b32.xlu0 %v932, 95
      %v2159 = vpop.permute.xlu0 %2158
      %2160 = vrot.lane.b32.xlu0 %v933, 95
      %v2161 = vpop.permute.xlu0 %2160
      %2162 = vrot.lane.b32.xlu0 %v934, 95
      %v2163 = vpop.permute.xlu0 %2162
      %2164 = vrot.lane.b32.xlu0 %v935, 95
      %v2165 = vpop.permute.xlu0 %2164
      %2166 = vrot.lane.b32.xlu0 %v936, 95
      %v2167 = vpop.permute.xlu0 %2166
      %2168 = vrot.lane.b32.xlu0 %v937, 95
      %v2169 = vpop.permute.xlu0 %2168
      %2170 = vrot.lane.b32.xlu0 %v938, 95
      %v2171 = vpop.permute.xlu0 %2170
      %2172 = vrot.lane.b32.xlu0 %v939, 95
      %v2173 = vpop.permute.xlu0 %2172
      %2174 = vrot.lane.b32.xlu0 %v940, 95
      %v2175 = vpop.permute.xlu0 %2174
      %2176 = vrot.lane.b32.xlu0 %v941, 95
      %v2177 = vpop.permute.xlu0 %2176
      %2178 = vrot.lane.b32.xlu0 %v942, 95
      %v2179 = vpop.permute.xlu0 %2178
      %2180 = vrot.lane.b32.xlu0 %v943, 95
      %v2181 = vpop.permute.xlu0 %2180
      %2182 = vrot.lane.b32.xlu0 %v944, 95
      %v2183 = vpop.permute.xlu0 %2182
      %2184 = vrot.lane.b32.xlu0 %v945, 95
      %v2185 = vpop.permute.xlu0 %2184
      %2186 = vrot.lane.b32.xlu0 %v946, 95
      %v2187 = vpop.permute.xlu0 %2186
      %2188 = vrot.lane.b32.xlu0 %v947, 95
      %v2189 = vpop.permute.xlu0 %2188
      %2190 = vrot.lane.b32.xlu0 %v948, 95
      %v2191 = vpop.permute.xlu0 %2190
      %2192 = vrot.lane.b32.xlu0 %v949, 95
      %v2193 = vpop.permute.xlu0 %2192
      %2194 = vrot.lane.b32.xlu0 %v950, 95
      %v2195 = vpop.permute.xlu0 %2194
      %2196 = vrot.lane.b32.xlu0 %v951, 95
      %v2197 = vpop.permute.xlu0 %2196
      %2198 = vrot.lane.b32.xlu0 %v952, 95
      %v2199 = vpop.permute.xlu0 %2198
      %2200 = vrot.lane.b32.xlu0 %v953, 95
      %v2201 = vpop.permute.xlu0 %2200
      %2202 = vrot.lane.b32.xlu0 %v954, 95
      %v2203 = vpop.permute.xlu0 %2202
      %2204 = vrot.lane.b32.xlu0 %v955, 95
      %v2205 = vpop.permute.xlu0 %2204
      %2206 = vrot.lane.b32.xlu0 %v956, 95
      %v2207 = vpop.permute.xlu0 %2206
      %2208 = vrot.lane.b32.xlu0 %v957, 95
      %v2209 = vpop.permute.xlu0 %2208
      %2210 = vrot.lane.b32.xlu0 %v958, 95
      %v2211 = vpop.permute.xlu0 %2210
      %2212 = vrot.lane.b32.xlu0 %v959, 95
      %v2213 = vpop.permute.xlu0 %2212
      %2214 = vrot.lane.b32.xlu0 %v960, 95
      %v2215 = vpop.permute.xlu0 %2214
      %vm2216 = vcmask 777216
      %v2217 = vsel %vm2216, %v2115, %v2117
      %v2218 = vsel %vm2216, %v2117, %v2119
      %v2219 = vsel %vm2216, %v2121, %v2123
      %v2220 = vsel %vm2216, %v2123, %v2125
      %v2221 = vsel %vm2216, %v2127, %v2129
      %v2222 = vsel %vm2216, %v2129, %v2131
      %v2223 = vsel %vm2216, %v2133, %v2135
      %v2224 = vsel %vm2216, %v2135, %v2137
      %v2225 = vsel %vm2216, %v2139, %v2141
      %v2226 = vsel %vm2216, %v2141, %v2143
      %v2227 = vsel %vm2216, %v2145, %v2147
      %v2228 = vsel %vm2216, %v2147, %v2149
      %v2229 = vsel %vm2216, %v2151, %v2153
      %v2230 = vsel %vm2216, %v2153, %v2155
      %v2231 = vsel %vm2216, %v2157, %v2159
      %v2232 = vsel %vm2216, %v2159, %v2161
      %v2233 = vsel %vm2216, %v2163, %v2165
      %v2234 = vsel %vm2216, %v2165, %v2167
      %v2235 = vsel %vm2216, %v2169, %v2171
      %v2236 = vsel %vm2216, %v2171, %v2173
      %v2237 = vsel %vm2216, %v2175, %v2177
      %v2238 = vsel %vm2216, %v2177, %v2179
      %v2239 = vsel %vm2216, %v2181, %v2183
      %v2240 = vsel %vm2216, %v2183, %v2185
      %v2241 = vsel %vm2216, %v2187, %v2189
      %v2242 = vsel %vm2216, %v2189, %v2191
      %v2243 = vsel %vm2216, %v2193, %v2195
      %v2244 = vsel %vm2216, %v2195, %v2197
      %v2245 = vsel %vm2216, %v2199, %v2201
      %v2246 = vsel %vm2216, %v2201, %v2203
      %v2247 = vsel %vm2216, %v2205, %v2207
      %v2248 = vsel %vm2216, %v2207, %v2209
      %v2249 = vsel %vm2216, %v2211, %v2213
      %v2250 = vsel %vm2216, %v2213, %v2215
      %v2286 = vsel %vm1198, %v2111, 0
      %v2289 = vsel %vm1198, %v2113, 0
      %2291 = vmatpush.msra.mxu0 %v2247
      %2292 = vmatpush.msra.mxu0 %v2245
      %2293 = vmatpush.msra.mxu0 %v2243
      %2294 = vmatpush.msra.mxu0 %v2241
      %2295 = vmatpush.msra.mxu0 %v2239
      %2296 = vmatpush.msra.mxu0 %v2237
      %2297 = vmatpush.msra.mxu0 %v2235
      %2298 = vmatpush.msra.mxu0 %v2233
      %2299 = vmatpush.msra.mxu0 %v2231
      %2300 = vmatpush.msra.mxu0 %v2229
      %2301 = vmatpush.msra.mxu0 %v2227
      %2302 = vmatpush.msra.mxu0 %v2225
      %2303 = vmatpush.msra.mxu0 %v2223
      %2304 = vmatpush.msra.mxu0 %v2221
      %2305 = vmatpush.msra.mxu0 %v2219
      %2306 = vmatpush.msra.mxu0 %v2217
      %2307 = vmatmul.f32.gmra.mxu0 %v2110
      %v2308 = vpop.f32.mrf.mxu0
      %v2309 = vadd.f32 0.0, %v2308
      %2310 = vmatmul.f32.gmra.mxu0 %v2112
      %v2311 = vpop.f32.mrf.mxu0
      %v2312 = vadd.f32 0.0, %v2311
      %2313 = vdwg.mxu0
      %2314 = vmatpush.msra.mxu0 0.0
      %2315 = vmatpush.msra.mxu0 0.0
      %2316 = vmatpush.msra.mxu0 0.0
      %2317 = vmatpush.msra.mxu0 0.0
      %2318 = vmatpush.msra.mxu0 0.0
      %2319 = vmatpush.msra.mxu0 0.0
      %2320 = vmatpush.msra.mxu0 0.0
      %2321 = vmatpush.msra.mxu0 0.0
      %2322 = vmatpush.msra.mxu0 0.0
      %2323 = vmatpush.msra.mxu0 0.0
      %2324 = vmatpush.msra.mxu0 0.0
      %2325 = vmatpush.msra.mxu0 0.0
      %2326 = vmatpush.msra.mxu0 0.0
      %2327 = vmatpush.msra.mxu0 0.0
      %2328 = vmatpush.msra.mxu0 0.0
      %2329 = vmatpush.msra.mxu0 %v2249
      %2330 = vmatmul.f32.gmra.mxu0 %v2286
      %v2331 = vpop.f32.mrf.mxu0
      %v2332 = vadd.f32 %v2309, %v2331
      %2333 = vmatmul.f32.gmra.mxu0 %v2289
      %v2334 = vpop.f32.mrf.mxu0
      %v2335 = vadd.f32 %v2312, %v2334
      %2336 = vdwg.mxu0
      %2337 = vmatpush.msra.mxu0 %v2248
      %2338 = vmatpush.msra.mxu0 %v2246
      %2339 = vmatpush.msra.mxu0 %v2244
      %2340 = vmatpush.msra.mxu0 %v2242
      %2341 = vmatpush.msra.mxu0 %v2240
      %2342 = vmatpush.msra.mxu0 %v2238
      %2343 = vmatpush.msra.mxu0 %v2236
      %2344 = vmatpush.msra.mxu0 %v2234
      %2345 = vmatpush.msra.mxu0 %v2232
      %2346 = vmatpush.msra.mxu0 %v2230
      %2347 = vmatpush.msra.mxu0 %v2228
      %2348 = vmatpush.msra.mxu0 %v2226
      %2349 = vmatpush.msra.mxu0 %v2224
      %2350 = vmatpush.msra.mxu0 %v2222
      %2351 = vmatpush.msra.mxu0 %v2220
      %2352 = vmatpush.msra.mxu0 %v2218
      %2353 = vmatmul.f32.gmra.mxu0 %v2110
      %v2354 = vpop.f32.mrf.mxu0
      %v2355 = vadd.f32 0.0, %v2354
      %2356 = vmatmul.f32.gmra.mxu0 %v2112
      %v2357 = vpop.f32.mrf.mxu0
      %v2358 = vadd.f32 0.0, %v2357
      %2359 = vdwg.mxu0
      %2360 = vmatpush.msra.mxu0 0.0
      %2361 = vmatpush.msra.mxu0 0.0
      %2362 = vmatpush.msra.mxu0 0.0
      %2363 = vmatpush.msra.mxu0 0.0
      %2364 = vmatpush.msra.mxu0 0.0
      %2365 = vmatpush.msra.mxu0 0.0
      %2366 = vmatpush.msra.mxu0 0.0
      %2367 = vmatpush.msra.mxu0 0.0
      %2368 = vmatpush.msra.mxu0 0.0
      %2369 = vmatpush.msra.mxu0 0.0
      %2370 = vmatpush.msra.mxu0 0.0
      %2371 = vmatpush.msra.mxu0 0.0
      %2372 = vmatpush.msra.mxu0 0.0
      %2373 = vmatpush.msra.mxu0 0.0
      %2374 = vmatpush.msra.mxu0 0.0
      %2375 = vmatpush.msra.mxu0 %v2250
      %2376 = vmatmul.f32.gmra.mxu0 %v2286
      %v2377 = vpop.f32.mrf.mxu0
      %v2378 = vadd.f32 %v2355, %v2377
      %2379 = vmatmul.f32.gmra.mxu0 %v2289
      %v2380 = vpop.f32.mrf.mxu0
      %v2381 = vadd.f32 %v2358, %v2380
      %2382 = vdwg.mxu0
      %2383 = vrot.lane.b32.xlu0 %v910, 111
      %v2384 = vpop.permute.xlu0 %2383
      %2385 = vrot.lane.b32.xlu0 %v911, 111
      %v2386 = vpop.permute.xlu0 %2385
      %2387 = vrot.lane.b32.xlu0 %v912, 111
      %v2388 = vpop.permute.xlu0 %2387
      %2389 = vrot.lane.b32.xlu0 %v913, 111
      %v2390 = vpop.permute.xlu0 %2389
      %2391 = vrot.lane.b32.xlu0 %v914, 111
      %v2392 = vpop.permute.xlu0 %2391
      %2393 = vrot.lane.b32.xlu0 %v915, 111
      %v2394 = vpop.permute.xlu0 %2393
      %2395 = vrot.lane.b32.xlu0 %v916, 111
      %v2396 = vpop.permute.xlu0 %2395
      %2397 = vrot.lane.b32.xlu0 %v917, 111
      %v2398 = vpop.permute.xlu0 %2397
      %2399 = vrot.lane.b32.xlu0 %v918, 111
      %v2400 = vpop.permute.xlu0 %2399
      %2401 = vrot.lane.b32.xlu0 %v919, 111
      %v2402 = vpop.permute.xlu0 %2401
      %2403 = vrot.lane.b32.xlu0 %v920, 111
      %v2404 = vpop.permute.xlu0 %2403
      %2405 = vrot.lane.b32.xlu0 %v921, 111
      %v2406 = vpop.permute.xlu0 %2405
      %2407 = vrot.lane.b32.xlu0 %v922, 111
      %v2408 = vpop.permute.xlu0 %2407
      %2409 = vrot.lane.b32.xlu0 %v923, 111
      %v2410 = vpop.permute.xlu0 %2409
      %2411 = vrot.lane.b32.xlu0 %v924, 111
      %v2412 = vpop.permute.xlu0 %2411
      %2413 = vrot.lane.b32.xlu0 %v925, 111
      %v2414 = vpop.permute.xlu0 %2413
      %2415 = vrot.lane.b32.xlu0 %v926, 111
      %v2416 = vpop.permute.xlu0 %2415
      %2417 = vrot.lane.b32.xlu0 %v927, 111
      %v2418 = vpop.permute.xlu0 %2417
      %2419 = vrot.lane.b32.xlu0 %v928, 111
      %v2420 = vpop.permute.xlu0 %2419
      %2421 = vrot.lane.b32.xlu0 %v929, 111
      %v2422 = vpop.permute.xlu0 %2421
      %2423 = vrot.lane.b32.xlu0 %v930, 111
      %v2424 = vpop.permute.xlu0 %2423
      %2425 = vrot.lane.b32.xlu0 %v931, 111
      %v2426 = vpop.permute.xlu0 %2425
      %2427 = vrot.lane.b32.xlu0 %v932, 111
      %v2428 = vpop.permute.xlu0 %2427
      %2429 = vrot.lane.b32.xlu0 %v933, 111
      %v2430 = vpop.permute.xlu0 %2429
      %2431 = vrot.lane.b32.xlu0 %v934, 111
      %v2432 = vpop.permute.xlu0 %2431
      %2433 = vrot.lane.b32.xlu0 %v935, 111
      %v2434 = vpop.permute.xlu0 %2433
      %2435 = vrot.lane.b32.xlu0 %v936, 111
      %v2436 = vpop.permute.xlu0 %2435
      %2437 = vrot.lane.b32.xlu0 %v937, 111
      %v2438 = vpop.permute.xlu0 %2437
      %2439 = vrot.lane.b32.xlu0 %v938, 111
      %v2440 = vpop.permute.xlu0 %2439
      %2441 = vrot.lane.b32.xlu0 %v939, 111
      %v2442 = vpop.permute.xlu0 %2441
      %2443 = vrot.lane.b32.xlu0 %v940, 111
      %v2444 = vpop.permute.xlu0 %2443
      %2445 = vrot.lane.b32.xlu0 %v941, 111
      %v2446 = vpop.permute.xlu0 %2445
      %2447 = vrot.lane.b32.xlu0 %v942, 111
      %v2448 = vpop.permute.xlu0 %2447
      %2449 = vrot.lane.b32.xlu0 %v943, 111
      %v2450 = vpop.permute.xlu0 %2449
      %2451 = vrot.lane.b32.xlu0 %v944, 111
      %v2452 = vpop.permute.xlu0 %2451
      %2453 = vrot.lane.b32.xlu0 %v945, 111
      %v2454 = vpop.permute.xlu0 %2453
      %2455 = vrot.lane.b32.xlu0 %v946, 111
      %v2456 = vpop.permute.xlu0 %2455
      %2457 = vrot.lane.b32.xlu0 %v947, 111
      %v2458 = vpop.permute.xlu0 %2457
      %2459 = vrot.lane.b32.xlu0 %v948, 111
      %v2460 = vpop.permute.xlu0 %2459
      %2461 = vrot.lane.b32.xlu0 %v949, 111
      %v2462 = vpop.permute.xlu0 %2461
      %2463 = vrot.lane.b32.xlu0 %v950, 111
      %v2464 = vpop.permute.xlu0 %2463
      %2465 = vrot.lane.b32.xlu0 %v951, 111
      %v2466 = vpop.permute.xlu0 %2465
      %2467 = vrot.lane.b32.xlu0 %v952, 111
      %v2468 = vpop.permute.xlu0 %2467
      %2469 = vrot.lane.b32.xlu0 %v953, 111
      %v2470 = vpop.permute.xlu0 %2469
      %2471 = vrot.lane.b32.xlu0 %v954, 111
      %v2472 = vpop.permute.xlu0 %2471
      %2473 = vrot.lane.b32.xlu0 %v955, 111
      %v2474 = vpop.permute.xlu0 %2473
      %2475 = vrot.lane.b32.xlu0 %v956, 111
      %v2476 = vpop.permute.xlu0 %2475
      %2477 = vrot.lane.b32.xlu0 %v957, 111
      %v2478 = vpop.permute.xlu0 %2477
      %2479 = vrot.lane.b32.xlu0 %v958, 111
      %v2480 = vpop.permute.xlu0 %2479
      %2481 = vrot.lane.b32.xlu0 %v959, 111
      %v2482 = vpop.permute.xlu0 %2481
      %2483 = vrot.lane.b32.xlu0 %v960, 111
      %v2484 = vpop.permute.xlu0 %2483
      %vm2485 = vcmask 908288
      %v2486 = vsel %vm2485, %v2384, %v2386
      %v2487 = vsel %vm2485, %v2386, %v2388
      %v2488 = vsel %vm2485, %v2390, %v2392
      %v2489 = vsel %vm2485, %v2392, %v2394
      %v2490 = vsel %vm2485, %v2396, %v2398
      %v2491 = vsel %vm2485, %v2398, %v2400
      %v2492 = vsel %vm2485, %v2402, %v2404
      %v2493 = vsel %vm2485, %v2404, %v2406
      %v2494 = vsel %vm2485, %v2408, %v2410
      %v2495 = vsel %vm2485, %v2410, %v2412
      %v2496 = vsel %vm2485, %v2414, %v2416
      %v2497 = vsel %vm2485, %v2416, %v2418
      %v2498 = vsel %vm2485, %v2420, %v2422
      %v2499 = vsel %vm2485, %v2422, %v2424
      %v2500 = vsel %vm2485, %v2426, %v2428
      %v2501 = vsel %vm2485, %v2428, %v2430
      %v2502 = vsel %vm2485, %v2432, %v2434
      %v2503 = vsel %vm2485, %v2434, %v2436
      %v2504 = vsel %vm2485, %v2438, %v2440
      %v2505 = vsel %vm2485, %v2440, %v2442
      %v2506 = vsel %vm2485, %v2444, %v2446
      %v2507 = vsel %vm2485, %v2446, %v2448
      %v2508 = vsel %vm2485, %v2450, %v2452
      %v2509 = vsel %vm2485, %v2452, %v2454
      %v2510 = vsel %vm2485, %v2456, %v2458
      %v2511 = vsel %vm2485, %v2458, %v2460
      %v2512 = vsel %vm2485, %v2462, %v2464
      %v2513 = vsel %vm2485, %v2464, %v2466
      %v2514 = vsel %vm2485, %v2468, %v2470
      %v2515 = vsel %vm2485, %v2470, %v2472
      %v2516 = vsel %vm2485, %v2474, %v2476
      %v2517 = vsel %vm2485, %v2476, %v2478
      %v2518 = vsel %vm2485, %v2480, %v2482
      %v2519 = vsel %vm2485, %v2482, %v2484
      %v2555 = vsel %vm1198, %v968, 0
      %v2558 = vsel %vm1198, %v970, 0
      %2560 = vmatpush.msra.mxu0 %v2516
      %2561 = vmatpush.msra.mxu0 %v2514
      %2562 = vmatpush.msra.mxu0 %v2512
      %2563 = vmatpush.msra.mxu0 %v2510
      %2564 = vmatpush.msra.mxu0 %v2508
      %2565 = vmatpush.msra.mxu0 %v2506
      %2566 = vmatpush.msra.mxu0 %v2504
      %2567 = vmatpush.msra.mxu0 %v2502
      %2568 = vmatpush.msra.mxu0 %v2500
      %2569 = vmatpush.msra.mxu0 %v2498
      %2570 = vmatpush.msra.mxu0 %v2496
      %2571 = vmatpush.msra.mxu0 %v2494
      %2572 = vmatpush.msra.mxu0 %v2492
      %2573 = vmatpush.msra.mxu0 %v2490
      %2574 = vmatpush.msra.mxu0 %v2488
      %2575 = vmatpush.msra.mxu0 %v2486
      %2576 = vmatmul.f32.gmra.mxu0 %v967
      %v2577 = vpop.f32.mrf.mxu0
      %v2578 = vadd.f32 %v2332, %v2577
      %2579 = vmatmul.f32.gmra.mxu0 %v969
      %v2580 = vpop.f32.mrf.mxu0
      %v2581 = vadd.f32 %v2335, %v2580
      %2582 = vdwg.mxu0
      %2583 = vmatpush.msra.mxu0 0.0
      %2584 = vmatpush.msra.mxu0 0.0
      %2585 = vmatpush.msra.mxu0 0.0
      %2586 = vmatpush.msra.mxu0 0.0
      %2587 = vmatpush.msra.mxu0 0.0
      %2588 = vmatpush.msra.mxu0 0.0
      %2589 = vmatpush.msra.mxu0 0.0
      %2590 = vmatpush.msra.mxu0 0.0
      %2591 = vmatpush.msra.mxu0 0.0
      %2592 = vmatpush.msra.mxu0 0.0
      %2593 = vmatpush.msra.mxu0 0.0
      %2594 = vmatpush.msra.mxu0 0.0
      %2595 = vmatpush.msra.mxu0 0.0
      %2596 = vmatpush.msra.mxu0 0.0
      %2597 = vmatpush.msra.mxu0 0.0
      %2598 = vmatpush.msra.mxu0 %v2518
      %2599 = vmatmul.f32.gmra.mxu0 %v2555
      %v2600 = vpop.f32.mrf.mxu0
      %v2601 = vadd.f32 %v2578, %v2600
      %2602 = vmatmul.f32.gmra.mxu0 %v2558
      %v2603 = vpop.f32.mrf.mxu0
      %v2604 = vadd.f32 %v2581, %v2603
      %2605 = vdwg.mxu0
      %2606 = vmatpush.msra.mxu0 %v2517
      %2607 = vmatpush.msra.mxu0 %v2515
      %2608 = vmatpush.msra.mxu0 %v2513
      %2609 = vmatpush.msra.mxu0 %v2511
      %2610 = vmatpush.msra.mxu0 %v2509
      %2611 = vmatpush.msra.mxu0 %v2507
      %2612 = vmatpush.msra.mxu0 %v2505
      %2613 = vmatpush.msra.mxu0 %v2503
      %2614 = vmatpush.msra.mxu0 %v2501
      %2615 = vmatpush.msra.mxu0 %v2499
      %2616 = vmatpush.msra.mxu0 %v2497
      %2617 = vmatpush.msra.mxu0 %v2495
      %2618 = vmatpush.msra.mxu0 %v2493
      %2619 = vmatpush.msra.mxu0 %v2491
      %2620 = vmatpush.msra.mxu0 %v2489
      %2621 = vmatpush.msra.mxu0 %v2487
      %2622 = vmatmul.f32.gmra.mxu0 %v967
      %v2623 = vpop.f32.mrf.mxu0
      %v2624 = vadd.f32 %v2378, %v2623
      %2625 = vmatmul.f32.gmra.mxu0 %v969
      %v2626 = vpop.f32.mrf.mxu0
      %v2627 = vadd.f32 %v2381, %v2626
      %2628 = vdwg.mxu0
      %2629 = vmatpush.msra.mxu0 0.0
      %2630 = vmatpush.msra.mxu0 0.0
      %2631 = vmatpush.msra.mxu0 0.0
      %2632 = vmatpush.msra.mxu0 0.0
      %2633 = vmatpush.msra.mxu0 0.0
      %2634 = vmatpush.msra.mxu0 0.0
      %2635 = vmatpush.msra.mxu0 0.0
      %2636 = vmatpush.msra.mxu0 0.0
      %2637 = vmatpush.msra.mxu0 0.0
      %2638 = vmatpush.msra.mxu0 0.0
      %2639 = vmatpush.msra.mxu0 0.0
      %2640 = vmatpush.msra.mxu0 0.0
      %2641 = vmatpush.msra.mxu0 0.0
      %2642 = vmatpush.msra.mxu0 0.0
      %2643 = vmatpush.msra.mxu0 0.0
      %2644 = vmatpush.msra.mxu0 %v2519
      %2645 = vmatmul.f32.gmra.mxu0 %v2555
      %v2646 = vpop.f32.mrf.mxu0
      %v2647 = vadd.f32 %v2624, %v2646
      %2648 = vmatmul.f32.gmra.mxu0 %v2558
      %v2649 = vpop.f32.mrf.mxu0
      %v2650 = vadd.f32 %v2627, %v2649
      %2651 = vdwg.mxu0
      %s2652 = scalar_lea.vmem %s5, 192
      %v2653 = vld [vmem:[%s2652] sm:$0xff]
      %v2654 = vld [vmem:[%s2652 + $0x8] sm:$0xff]
      %v2655 = vld [vmem:[%s2652 + $0x10] sm:$0xff]
      %v2656 = vld [vmem:[%s2652 + $0x18] sm:$0xff]
      %2657 = vrot.lane.b32.xlu0 %v910, 81
      %v2658 = vpop.permute.xlu0 %2657
      %2659 = vrot.lane.b32.xlu0 %v911, 81
      %v2660 = vpop.permute.xlu0 %2659
      %2661 = vrot.lane.b32.xlu0 %v912, 81
      %v2662 = vpop.permute.xlu0 %2661
      %2663 = vrot.lane.b32.xlu0 %v913, 81
      %v2664 = vpop.permute.xlu0 %2663
      %2665 = vrot.lane.b32.xlu0 %v914, 81
      %v2666 = vpop.permute.xlu0 %2665
      %2667 = vrot.lane.b32.xlu0 %v915, 81
      %v2668 = vpop.permute.xlu0 %2667
      %2669 = vrot.lane.b32.xlu0 %v916, 81
      %v2670 = vpop.permute.xlu0 %2669
      %2671 = vrot.lane.b32.xlu0 %v917, 81
      %v2672 = vpop.permute.xlu0 %2671
      %2673 = vrot.lane.b32.xlu0 %v918, 81
      %v2674 = vpop.permute.xlu0 %2673
      %2675 = vrot.lane.b32.xlu0 %v919, 81
      %v2676 = vpop.permute.xlu0 %2675
      %2677 = vrot.lane.b32.xlu0 %v920, 81
      %v2678 = vpop.permute.xlu0 %2677
      %2679 = vrot.lane.b32.xlu0 %v921, 81
      %v2680 = vpop.permute.xlu0 %2679
      %2681 = vrot.lane.b32.xlu0 %v922, 81
      %v2682 = vpop.permute.xlu0 %2681
      %2683 = vrot.lane.b32.xlu0 %v923, 81
      %v2684 = vpop.permute.xlu0 %2683
      %2685 = vrot.lane.b32.xlu0 %v924, 81
      %v2686 = vpop.permute.xlu0 %2685
      %2687 = vrot.lane.b32.xlu0 %v925, 81
      %v2688 = vpop.permute.xlu0 %2687
      %2689 = vrot.lane.b32.xlu0 %v926, 81
      %v2690 = vpop.permute.xlu0 %2689
      %2691 = vrot.lane.b32.xlu0 %v927, 81
      %v2692 = vpop.permute.xlu0 %2691
      %2693 = vrot.lane.b32.xlu0 %v928, 81
      %v2694 = vpop.permute.xlu0 %2693
      %2695 = vrot.lane.b32.xlu0 %v929, 81
      %v2696 = vpop.permute.xlu0 %2695
      %2697 = vrot.lane.b32.xlu0 %v930, 81
      %v2698 = vpop.permute.xlu0 %2697
      %2699 = vrot.lane.b32.xlu0 %v931, 81
      %v2700 = vpop.permute.xlu0 %2699
      %2701 = vrot.lane.b32.xlu0 %v932, 81
      %v2702 = vpop.permute.xlu0 %2701
      %2703 = vrot.lane.b32.xlu0 %v933, 81
      %v2704 = vpop.permute.xlu0 %2703
      %2705 = vrot.lane.b32.xlu0 %v934, 81
      %v2706 = vpop.permute.xlu0 %2705
      %2707 = vrot.lane.b32.xlu0 %v935, 81
      %v2708 = vpop.permute.xlu0 %2707
      %2709 = vrot.lane.b32.xlu0 %v936, 81
      %v2710 = vpop.permute.xlu0 %2709
      %2711 = vrot.lane.b32.xlu0 %v937, 81
      %v2712 = vpop.permute.xlu0 %2711
      %2713 = vrot.lane.b32.xlu0 %v938, 81
      %v2714 = vpop.permute.xlu0 %2713
      %2715 = vrot.lane.b32.xlu0 %v939, 81
      %v2716 = vpop.permute.xlu0 %2715
      %2717 = vrot.lane.b32.xlu0 %v940, 81
      %v2718 = vpop.permute.xlu0 %2717
      %2719 = vrot.lane.b32.xlu0 %v941, 81
      %v2720 = vpop.permute.xlu0 %2719
      %2721 = vrot.lane.b32.xlu0 %v942, 81
      %v2722 = vpop.permute.xlu0 %2721
      %2723 = vrot.lane.b32.xlu0 %v943, 81
      %v2724 = vpop.permute.xlu0 %2723
      %2725 = vrot.lane.b32.xlu0 %v944, 81
      %v2726 = vpop.permute.xlu0 %2725
      %2727 = vrot.lane.b32.xlu0 %v945, 81
      %v2728 = vpop.permute.xlu0 %2727
      %2729 = vrot.lane.b32.xlu0 %v946, 81
      %v2730 = vpop.permute.xlu0 %2729
      %2731 = vrot.lane.b32.xlu0 %v947, 81
      %v2732 = vpop.permute.xlu0 %2731
      %2733 = vrot.lane.b32.xlu0 %v948, 81
      %v2734 = vpop.permute.xlu0 %2733
      %2735 = vrot.lane.b32.xlu0 %v949, 81
      %v2736 = vpop.permute.xlu0 %2735
      %2737 = vrot.lane.b32.xlu0 %v950, 81
      %v2738 = vpop.permute.xlu0 %2737
      %2739 = vrot.lane.b32.xlu0 %v951, 81
      %v2740 = vpop.permute.xlu0 %2739
      %2741 = vrot.lane.b32.xlu0 %v952, 81
      %v2742 = vpop.permute.xlu0 %2741
      %2743 = vrot.lane.b32.xlu0 %v953, 81
      %v2744 = vpop.permute.xlu0 %2743
      %2745 = vrot.lane.b32.xlu0 %v954, 81
      %v2746 = vpop.permute.xlu0 %2745
      %2747 = vrot.lane.b32.xlu0 %v955, 81
      %v2748 = vpop.permute.xlu0 %2747
      %2749 = vrot.lane.b32.xlu0 %v956, 81
      %v2750 = vpop.permute.xlu0 %2749
      %2751 = vrot.lane.b32.xlu0 %v957, 81
      %v2752 = vpop.permute.xlu0 %2751
      %2753 = vrot.lane.b32.xlu0 %v958, 81
      %v2754 = vpop.permute.xlu0 %2753
      %2755 = vrot.lane.b32.xlu0 %v959, 81
      %v2756 = vpop.permute.xlu0 %2755
      %2757 = vrot.lane.b32.xlu0 %v960, 81
      %v2758 = vpop.permute.xlu0 %2757
      %vm2759 = vcmask 662528
      %v2760 = vsel %vm2759, %v2658, %v2660
      %v2761 = vsel %vm2759, %v2660, %v2662
      %v2762 = vsel %vm2759, %v2664, %v2666
      %v2763 = vsel %vm2759, %v2666, %v2668
      %v2764 = vsel %vm2759, %v2670, %v2672
      %v2765 = vsel %vm2759, %v2672, %v2674
      %v2766 = vsel %vm2759, %v2676, %v2678
      %v2767 = vsel %vm2759, %v2678, %v2680
      %v2768 = vsel %vm2759, %v2682, %v2684
      %v2769 = vsel %vm2759, %v2684, %v2686
      %v2770 = vsel %vm2759, %v2688, %v2690
      %v2771 = vsel %vm2759, %v2690, %v2692
      %v2772 = vsel %vm2759, %v2694, %v2696
      %v2773 = vsel %vm2759, %v2696, %v2698
      %v2774 = vsel %vm2759, %v2700, %v2702
      %v2775 = vsel %vm2759, %v2702, %v2704
      %v2776 = vsel %vm2759, %v2706, %v2708
      %v2777 = vsel %vm2759, %v2708, %v2710
      %v2778 = vsel %vm2759, %v2712, %v2714
      %v2779 = vsel %vm2759, %v2714, %v2716
      %v2780 = vsel %vm2759, %v2718, %v2720
      %v2781 = vsel %vm2759, %v2720, %v2722
      %v2782 = vsel %vm2759, %v2724, %v2726
      %v2783 = vsel %vm2759, %v2726, %v2728
      %v2784 = vsel %vm2759, %v2730, %v2732
      %v2785 = vsel %vm2759, %v2732, %v2734
      %v2786 = vsel %vm2759, %v2736, %v2738
      %v2787 = vsel %vm2759, %v2738, %v2740
      %v2788 = vsel %vm2759, %v2742, %v2744
      %v2789 = vsel %vm2759, %v2744, %v2746
      %v2790 = vsel %vm2759, %v2748, %v2750
      %v2791 = vsel %vm2759, %v2750, %v2752
      %v2792 = vsel %vm2759, %v2754, %v2756
      %v2793 = vsel %vm2759, %v2756, %v2758
      %v2829 = vsel %vm1198, %v2654, 0
      %v2832 = vsel %vm1198, %v2656, 0
      %2834 = vmatpush.msra.mxu0 %v2790
      %2835 = vmatpush.msra.mxu0 %v2788
      %2836 = vmatpush.msra.mxu0 %v2786
      %2837 = vmatpush.msra.mxu0 %v2784
      %2838 = vmatpush.msra.mxu0 %v2782
      %2839 = vmatpush.msra.mxu0 %v2780
      %2840 = vmatpush.msra.mxu0 %v2778
      %2841 = vmatpush.msra.mxu0 %v2776
      %2842 = vmatpush.msra.mxu0 %v2774
      %2843 = vmatpush.msra.mxu0 %v2772
      %2844 = vmatpush.msra.mxu0 %v2770
      %2845 = vmatpush.msra.mxu0 %v2768
      %2846 = vmatpush.msra.mxu0 %v2766
      %2847 = vmatpush.msra.mxu0 %v2764
      %2848 = vmatpush.msra.mxu0 %v2762
      %2849 = vmatpush.msra.mxu0 %v2760
      %2850 = vmatmul.f32.gmra.mxu0 %v2653
      %v2851 = vpop.f32.mrf.mxu0
      %v2852 = vadd.f32 0.0, %v2851
      %2853 = vmatmul.f32.gmra.mxu0 %v2655
      %v2854 = vpop.f32.mrf.mxu0
      %v2855 = vadd.f32 0.0, %v2854
      %2856 = vdwg.mxu0
      %2857 = vmatpush.msra.mxu0 0.0
      %2858 = vmatpush.msra.mxu0 0.0
      %2859 = vmatpush.msra.mxu0 0.0
      %2860 = vmatpush.msra.mxu0 0.0
      %2861 = vmatpush.msra.mxu0 0.0
      %2862 = vmatpush.msra.mxu0 0.0
      %2863 = vmatpush.msra.mxu0 0.0
      %2864 = vmatpush.msra.mxu0 0.0
      %2865 = vmatpush.msra.mxu0 0.0
      %2866 = vmatpush.msra.mxu0 0.0
      %2867 = vmatpush.msra.mxu0 0.0
      %2868 = vmatpush.msra.mxu0 0.0
      %2869 = vmatpush.msra.mxu0 0.0
      %2870 = vmatpush.msra.mxu0 0.0
      %2871 = vmatpush.msra.mxu0 0.0
      %2872 = vmatpush.msra.mxu0 %v2792
      %2873 = vmatmul.f32.gmra.mxu0 %v2829
      %v2874 = vpop.f32.mrf.mxu0
      %v2875 = vadd.f32 %v2852, %v2874
      %2876 = vmatmul.f32.gmra.mxu0 %v2832
      %v2877 = vpop.f32.mrf.mxu0
      %v2878 = vadd.f32 %v2855, %v2877
      %2879 = vdwg.mxu0
      %2880 = vmatpush.msra.mxu0 %v2791
      %2881 = vmatpush.msra.mxu0 %v2789
      %2882 = vmatpush.msra.mxu0 %v2787
      %2883 = vmatpush.msra.mxu0 %v2785
      %2884 = vmatpush.msra.mxu0 %v2783
      %2885 = vmatpush.msra.mxu0 %v2781
      %2886 = vmatpush.msra.mxu0 %v2779
      %2887 = vmatpush.msra.mxu0 %v2777
      %2888 = vmatpush.msra.mxu0 %v2775
      %2889 = vmatpush.msra.mxu0 %v2773
      %2890 = vmatpush.msra.mxu0 %v2771
      %2891 = vmatpush.msra.mxu0 %v2769
      %2892 = vmatpush.msra.mxu0 %v2767
      %2893 = vmatpush.msra.mxu0 %v2765
      %2894 = vmatpush.msra.mxu0 %v2763
      %2895 = vmatpush.msra.mxu0 %v2761
      %2896 = vmatmul.f32.gmra.mxu0 %v2653
      %v2897 = vpop.f32.mrf.mxu0
      %v2898 = vadd.f32 0.0, %v2897
      %2899 = vmatmul.f32.gmra.mxu0 %v2655
      %v2900 = vpop.f32.mrf.mxu0
      %v2901 = vadd.f32 0.0, %v2900
      %2902 = vdwg.mxu0
      %2903 = vmatpush.msra.mxu0 0.0
      %2904 = vmatpush.msra.mxu0 0.0
      %2905 = vmatpush.msra.mxu0 0.0
      %2906 = vmatpush.msra.mxu0 0.0
      %2907 = vmatpush.msra.mxu0 0.0
      %2908 = vmatpush.msra.mxu0 0.0
      %2909 = vmatpush.msra.mxu0 0.0
      %2910 = vmatpush.msra.mxu0 0.0
      %2911 = vmatpush.msra.mxu0 0.0
      %2912 = vmatpush.msra.mxu0 0.0
      %2913 = vmatpush.msra.mxu0 0.0
      %2914 = vmatpush.msra.mxu0 0.0
      %2915 = vmatpush.msra.mxu0 0.0
      %2916 = vmatpush.msra.mxu0 0.0
      %2917 = vmatpush.msra.mxu0 0.0
      %2918 = vmatpush.msra.mxu0 %v2793
      %2919 = vmatmul.f32.gmra.mxu0 %v2829
      %v2920 = vpop.f32.mrf.mxu0
      %v2921 = vadd.f32 %v2898, %v2920
      %2922 = vmatmul.f32.gmra.mxu0 %v2832
      %v2923 = vpop.f32.mrf.mxu0
      %v2924 = vadd.f32 %v2901, %v2923
      %2925 = vdwg.mxu0
      %v2926 = vadd.f32 %v1515, %v2875
      %v2927 = vadd.f32 %v1561, %v2921
      %v2928 = vadd.f32 %v1518, %v2878
      %v2929 = vadd.f32 %v1564, %v2924
      %s2930 = scalar_lea.vmem %s5, 224
      %v2931 = vld [vmem:[%s2930] sm:$0xff]
      %v2932 = vld [vmem:[%s2930 + $0x8] sm:$0xff]
      %v2933 = vld [vmem:[%s2930 + $0x10] sm:$0xff]
      %v2934 = vld [vmem:[%s2930 + $0x18] sm:$0xff]
      %2935 = vrot.lane.b32.xlu0 %v910, 80
      %v2936 = vpop.permute.xlu0 %2935
      %2937 = vrot.lane.b32.xlu0 %v911, 80
      %v2938 = vpop.permute.xlu0 %2937
      %2939 = vrot.lane.b32.xlu0 %v912, 80
      %v2940 = vpop.permute.xlu0 %2939
      %2941 = vrot.lane.b32.xlu0 %v913, 80
      %v2942 = vpop.permute.xlu0 %2941
      %2943 = vrot.lane.b32.xlu0 %v914, 80
      %v2944 = vpop.permute.xlu0 %2943
      %2945 = vrot.lane.b32.xlu0 %v915, 80
      %v2946 = vpop.permute.xlu0 %2945
      %2947 = vrot.lane.b32.xlu0 %v916, 80
      %v2948 = vpop.permute.xlu0 %2947
      %2949 = vrot.lane.b32.xlu0 %v917, 80
      %v2950 = vpop.permute.xlu0 %2949
      %2951 = vrot.lane.b32.xlu0 %v918, 80
      %v2952 = vpop.permute.xlu0 %2951
      %2953 = vrot.lane.b32.xlu0 %v919, 80
      %v2954 = vpop.permute.xlu0 %2953
      %2955 = vrot.lane.b32.xlu0 %v920, 80
      %v2956 = vpop.permute.xlu0 %2955
      %2957 = vrot.lane.b32.xlu0 %v921, 80
      %v2958 = vpop.permute.xlu0 %2957
      %2959 = vrot.lane.b32.xlu0 %v922, 80
      %v2960 = vpop.permute.xlu0 %2959
      %2961 = vrot.lane.b32.xlu0 %v923, 80
      %v2962 = vpop.permute.xlu0 %2961
      %2963 = vrot.lane.b32.xlu0 %v924, 80
      %v2964 = vpop.permute.xlu0 %2963
      %2965 = vrot.lane.b32.xlu0 %v925, 80
      %v2966 = vpop.permute.xlu0 %2965
      %2967 = vrot.lane.b32.xlu0 %v926, 80
      %v2968 = vpop.permute.xlu0 %2967
      %2969 = vrot.lane.b32.xlu0 %v927, 80
      %v2970 = vpop.permute.xlu0 %2969
      %2971 = vrot.lane.b32.xlu0 %v928, 80
      %v2972 = vpop.permute.xlu0 %2971
      %2973 = vrot.lane.b32.xlu0 %v929, 80
      %v2974 = vpop.permute.xlu0 %2973
      %2975 = vrot.lane.b32.xlu0 %v930, 80
      %v2976 = vpop.permute.xlu0 %2975
      %2977 = vrot.lane.b32.xlu0 %v931, 80
      %v2978 = vpop.permute.xlu0 %2977
      %2979 = vrot.lane.b32.xlu0 %v932, 80
      %v2980 = vpop.permute.xlu0 %2979
      %2981 = vrot.lane.b32.xlu0 %v933, 80
      %v2982 = vpop.permute.xlu0 %2981
      %2983 = vrot.lane.b32.xlu0 %v934, 80
      %v2984 = vpop.permute.xlu0 %2983
      %2985 = vrot.lane.b32.xlu0 %v935, 80
      %v2986 = vpop.permute.xlu0 %2985
      %2987 = vrot.lane.b32.xlu0 %v936, 80
      %v2988 = vpop.permute.xlu0 %2987
      %2989 = vrot.lane.b32.xlu0 %v937, 80
      %v2990 = vpop.permute.xlu0 %2989
      %2991 = vrot.lane.b32.xlu0 %v938, 80
      %v2992 = vpop.permute.xlu0 %2991
      %2993 = vrot.lane.b32.xlu0 %v939, 80
      %v2994 = vpop.permute.xlu0 %2993
      %2995 = vrot.lane.b32.xlu0 %v940, 80
      %v2996 = vpop.permute.xlu0 %2995
      %2997 = vrot.lane.b32.xlu0 %v941, 80
      %v2998 = vpop.permute.xlu0 %2997
      %2999 = vrot.lane.b32.xlu0 %v942, 80
      %v3000 = vpop.permute.xlu0 %2999
      %3001 = vrot.lane.b32.xlu0 %v943, 80
      %v3002 = vpop.permute.xlu0 %3001
      %3003 = vrot.lane.b32.xlu0 %v944, 80
      %v3004 = vpop.permute.xlu0 %3003
      %3005 = vrot.lane.b32.xlu0 %v945, 80
      %v3006 = vpop.permute.xlu0 %3005
      %3007 = vrot.lane.b32.xlu0 %v946, 80
      %v3008 = vpop.permute.xlu0 %3007
      %3009 = vrot.lane.b32.xlu0 %v947, 80
      %v3010 = vpop.permute.xlu0 %3009
      %3011 = vrot.lane.b32.xlu0 %v948, 80
      %v3012 = vpop.permute.xlu0 %3011
      %3013 = vrot.lane.b32.xlu0 %v949, 80
      %v3014 = vpop.permute.xlu0 %3013
      %3015 = vrot.lane.b32.xlu0 %v950, 80
      %v3016 = vpop.permute.xlu0 %3015
      %3017 = vrot.lane.b32.xlu0 %v951, 80
      %v3018 = vpop.permute.xlu0 %3017
      %3019 = vrot.lane.b32.xlu0 %v952, 80
      %v3020 = vpop.permute.xlu0 %3019
      %3021 = vrot.lane.b32.xlu0 %v953, 80
      %v3022 = vpop.permute.xlu0 %3021
      %3023 = vrot.lane.b32.xlu0 %v954, 80
      %v3024 = vpop.permute.xlu0 %3023
      %3025 = vrot.lane.b32.xlu0 %v955, 80
      %v3026 = vpop.permute.xlu0 %3025
      %3027 = vrot.lane.b32.xlu0 %v956, 80
      %v3028 = vpop.permute.xlu0 %3027
      %3029 = vrot.lane.b32.xlu0 %v957, 80
      %v3030 = vpop.permute.xlu0 %3029
      %3031 = vrot.lane.b32.xlu0 %v958, 80
      %v3032 = vpop.permute.xlu0 %3031
      %3033 = vrot.lane.b32.xlu0 %v959, 80
      %v3034 = vpop.permute.xlu0 %3033
      %3035 = vrot.lane.b32.xlu0 %v960, 80
      %v3036 = vpop.permute.xlu0 %3035
      %vm3037 = vcmask 654336
      %v3038 = vsel %vm3037, %v2936, %v2938
      %v3039 = vsel %vm3037, %v2938, %v2940
      %v3040 = vsel %vm3037, %v2942, %v2944
      %v3041 = vsel %vm3037, %v2944, %v2946
      %v3042 = vsel %vm3037, %v2948, %v2950
      %v3043 = vsel %vm3037, %v2950, %v2952
      %v3044 = vsel %vm3037, %v2954, %v2956
      %v3045 = vsel %vm3037, %v2956, %v2958
      %v3046 = vsel %vm3037, %v2960, %v2962
      %v3047 = vsel %vm3037, %v2962, %v2964
      %v3048 = vsel %vm3037, %v2966, %v2968
      %v3049 = vsel %vm3037, %v2968, %v2970
      %v3050 = vsel %vm3037, %v2972, %v2974
      %v3051 = vsel %vm3037, %v2974, %v2976
      %v3052 = vsel %vm3037, %v2978, %v2980
      %v3053 = vsel %vm3037, %v2980, %v2982
      %v3054 = vsel %vm3037, %v2984, %v2986
      %v3055 = vsel %vm3037, %v2986, %v2988
      %v3056 = vsel %vm3037, %v2990, %v2992
      %v3057 = vsel %vm3037, %v2992, %v2994
      %v3058 = vsel %vm3037, %v2996, %v2998
      %v3059 = vsel %vm3037, %v2998, %v3000
      %v3060 = vsel %vm3037, %v3002, %v3004
      %v3061 = vsel %vm3037, %v3004, %v3006
      %v3062 = vsel %vm3037, %v3008, %v3010
      %v3063 = vsel %vm3037, %v3010, %v3012
      %v3064 = vsel %vm3037, %v3014, %v3016
      %v3065 = vsel %vm3037, %v3016, %v3018
      %v3066 = vsel %vm3037, %v3020, %v3022
      %v3067 = vsel %vm3037, %v3022, %v3024
      %v3068 = vsel %vm3037, %v3026, %v3028
      %v3069 = vsel %vm3037, %v3028, %v3030
      %v3070 = vsel %vm3037, %v3032, %v3034
      %v3071 = vsel %vm3037, %v3034, %v3036
      %v3107 = vsel %vm1198, %v2932, 0
      %v3110 = vsel %vm1198, %v2934, 0
      %3112 = vmatpush.msra.mxu0 %v3068
      %3113 = vmatpush.msra.mxu0 %v3066
      %3114 = vmatpush.msra.mxu0 %v3064
      %3115 = vmatpush.msra.mxu0 %v3062
      %3116 = vmatpush.msra.mxu0 %v3060
      %3117 = vmatpush.msra.mxu0 %v3058
      %3118 = vmatpush.msra.mxu0 %v3056
      %3119 = vmatpush.msra.mxu0 %v3054
      %3120 = vmatpush.msra.mxu0 %v3052
      %3121 = vmatpush.msra.mxu0 %v3050
      %3122 = vmatpush.msra.mxu0 %v3048
      %3123 = vmatpush.msra.mxu0 %v3046
      %3124 = vmatpush.msra.mxu0 %v3044
      %3125 = vmatpush.msra.mxu0 %v3042
      %3126 = vmatpush.msra.mxu0 %v3040
      %3127 = vmatpush.msra.mxu0 %v3038
      %3128 = vmatmul.f32.gmra.mxu0 %v2931
      %v3129 = vpop.f32.mrf.mxu0
      %v3130 = vadd.f32 0.0, %v3129
      %3131 = vmatmul.f32.gmra.mxu0 %v2933
      %v3132 = vpop.f32.mrf.mxu0
      %v3133 = vadd.f32 0.0, %v3132
      %3134 = vdwg.mxu0
      %3135 = vmatpush.msra.mxu0 0.0
      %3136 = vmatpush.msra.mxu0 0.0
      %3137 = vmatpush.msra.mxu0 0.0
      %3138 = vmatpush.msra.mxu0 0.0
      %3139 = vmatpush.msra.mxu0 0.0
      %3140 = vmatpush.msra.mxu0 0.0
      %3141 = vmatpush.msra.mxu0 0.0
      %3142 = vmatpush.msra.mxu0 0.0
      %3143 = vmatpush.msra.mxu0 0.0
      %3144 = vmatpush.msra.mxu0 0.0
      %3145 = vmatpush.msra.mxu0 0.0
      %3146 = vmatpush.msra.mxu0 0.0
      %3147 = vmatpush.msra.mxu0 0.0
      %3148 = vmatpush.msra.mxu0 0.0
      %3149 = vmatpush.msra.mxu0 0.0
      %3150 = vmatpush.msra.mxu0 %v3070
      %3151 = vmatmul.f32.gmra.mxu0 %v3107
      %v3152 = vpop.f32.mrf.mxu0
      %v3153 = vadd.f32 %v3130, %v3152
      %3154 = vmatmul.f32.gmra.mxu0 %v3110
      %v3155 = vpop.f32.mrf.mxu0
      %v3156 = vadd.f32 %v3133, %v3155
      %3157 = vdwg.mxu0
      %3158 = vmatpush.msra.mxu0 %v3069
      %3159 = vmatpush.msra.mxu0 %v3067
      %3160 = vmatpush.msra.mxu0 %v3065
      %3161 = vmatpush.msra.mxu0 %v3063
      %3162 = vmatpush.msra.mxu0 %v3061
      %3163 = vmatpush.msra.mxu0 %v3059
      %3164 = vmatpush.msra.mxu0 %v3057
      %3165 = vmatpush.msra.mxu0 %v3055
      %3166 = vmatpush.msra.mxu0 %v3053
      %3167 = vmatpush.msra.mxu0 %v3051
      %3168 = vmatpush.msra.mxu0 %v3049
      %3169 = vmatpush.msra.mxu0 %v3047
      %3170 = vmatpush.msra.mxu0 %v3045
      %3171 = vmatpush.msra.mxu0 %v3043
      %3172 = vmatpush.msra.mxu0 %v3041
      %3173 = vmatpush.msra.mxu0 %v3039
      %3174 = vmatmul.f32.gmra.mxu0 %v2931
      %v3175 = vpop.f32.mrf.mxu0
      %v3176 = vadd.f32 0.0, %v3175
      %3177 = vmatmul.f32.gmra.mxu0 %v2933
      %v3178 = vpop.f32.mrf.mxu0
      %v3179 = vadd.f32 0.0, %v3178
      %3180 = vdwg.mxu0
      %3181 = vmatpush.msra.mxu0 0.0
      %3182 = vmatpush.msra.mxu0 0.0
      %3183 = vmatpush.msra.mxu0 0.0
      %3184 = vmatpush.msra.mxu0 0.0
      %3185 = vmatpush.msra.mxu0 0.0
      %3186 = vmatpush.msra.mxu0 0.0
      %3187 = vmatpush.msra.mxu0 0.0
      %3188 = vmatpush.msra.mxu0 0.0
      %3189 = vmatpush.msra.mxu0 0.0
      %3190 = vmatpush.msra.mxu0 0.0
      %3191 = vmatpush.msra.mxu0 0.0
      %3192 = vmatpush.msra.mxu0 0.0
      %3193 = vmatpush.msra.mxu0 0.0
      %3194 = vmatpush.msra.mxu0 0.0
      %3195 = vmatpush.msra.mxu0 0.0
      %3196 = vmatpush.msra.mxu0 %v3071
      %3197 = vmatmul.f32.gmra.mxu0 %v3107
      %v3198 = vpop.f32.mrf.mxu0
      %v3199 = vadd.f32 %v3176, %v3198
      %3200 = vmatmul.f32.gmra.mxu0 %v3110
      %v3201 = vpop.f32.mrf.mxu0
      %v3202 = vadd.f32 %v3179, %v3201
      %3203 = vdwg.mxu0
      %v3204 = vadd.f32 %v2058, %v3153
      %v3205 = vadd.f32 %v2104, %v3199
      %v3206 = vadd.f32 %v2061, %v3156
      %v3207 = vadd.f32 %v2107, %v3202
      %s3208 = scalar_lea.vmem %s5, 256
      %v3209 = vld [vmem:[%s3208] sm:$0xff]
      %v3210 = vld [vmem:[%s3208 + $0x8] sm:$0xff]
      %v3211 = vld [vmem:[%s3208 + $0x10] sm:$0xff]
      %v3212 = vld [vmem:[%s3208 + $0x18] sm:$0xff]
      %3213 = vrot.lane.b32.xlu0 %v910, 79
      %v3214 = vpop.permute.xlu0 %3213
      %3215 = vrot.lane.b32.xlu0 %v911, 79
      %v3216 = vpop.permute.xlu0 %3215
      %3217 = vrot.lane.b32.xlu0 %v912, 79
      %v3218 = vpop.permute.xlu0 %3217
      %3219 = vrot.lane.b32.xlu0 %v913, 79
      %v3220 = vpop.permute.xlu0 %3219
      %3221 = vrot.lane.b32.xlu0 %v914, 79
      %v3222 = vpop.permute.xlu0 %3221
      %3223 = vrot.lane.b32.xlu0 %v915, 79
      %v3224 = vpop.permute.xlu0 %3223
      %3225 = vrot.lane.b32.xlu0 %v916, 79
      %v3226 = vpop.permute.xlu0 %3225
      %3227 = vrot.lane.b32.xlu0 %v917, 79
      %v3228 = vpop.permute.xlu0 %3227
      %3229 = vrot.lane.b32.xlu0 %v918, 79
      %v3230 = vpop.permute.xlu0 %3229
      %3231 = vrot.lane.b32.xlu0 %v919, 79
      %v3232 = vpop.permute.xlu0 %3231
      %3233 = vrot.lane.b32.xlu0 %v920, 79
      %v3234 = vpop.permute.xlu0 %3233
      %3235 = vrot.lane.b32.xlu0 %v921, 79
      %v3236 = vpop.permute.xlu0 %3235
      %3237 = vrot.lane.b32.xlu0 %v922, 79
      %v3238 = vpop.permute.xlu0 %3237
      %3239 = vrot.lane.b32.xlu0 %v923, 79
      %v3240 = vpop.permute.xlu0 %3239
      %3241 = vrot.lane.b32.xlu0 %v924, 79
      %v3242 = vpop.permute.xlu0 %3241
      %3243 = vrot.lane.b32.xlu0 %v925, 79
      %v3244 = vpop.permute.xlu0 %3243
      %3245 = vrot.lane.b32.xlu0 %v926, 79
      %v3246 = vpop.permute.xlu0 %3245
      %3247 = vrot.lane.b32.xlu0 %v927, 79
      %v3248 = vpop.permute.xlu0 %3247
      %3249 = vrot.lane.b32.xlu0 %v928, 79
      %v3250 = vpop.permute.xlu0 %3249
      %3251 = vrot.lane.b32.xlu0 %v929, 79
      %v3252 = vpop.permute.xlu0 %3251
      %3253 = vrot.lane.b32.xlu0 %v930, 79
      %v3254 = vpop.permute.xlu0 %3253
      %3255 = vrot.lane.b32.xlu0 %v931, 79
      %v3256 = vpop.permute.xlu0 %3255
      %3257 = vrot.lane.b32.xlu0 %v932, 79
      %v3258 = vpop.permute.xlu0 %3257
      %3259 = vrot.lane.b32.xlu0 %v933, 79
      %v3260 = vpop.permute.xlu0 %3259
      %3261 = vrot.lane.b32.xlu0 %v934, 79
      %v3262 = vpop.permute.xlu0 %3261
      %3263 = vrot.lane.b32.xlu0 %v935, 79
      %v3264 = vpop.permute.xlu0 %3263
      %3265 = vrot.lane.b32.xlu0 %v936, 79
      %v3266 = vpop.permute.xlu0 %3265
      %3267 = vrot.lane.b32.xlu0 %v937, 79
      %v3268 = vpop.permute.xlu0 %3267
      %3269 = vrot.lane.b32.xlu0 %v938, 79
      %v3270 = vpop.permute.xlu0 %3269
      %3271 = vrot.lane.b32.xlu0 %v939, 79
      %v3272 = vpop.permute.xlu0 %3271
      %3273 = vrot.lane.b32.xlu0 %v940, 79
      %v3274 = vpop.permute.xlu0 %3273
      %3275 = vrot.lane.b32.xlu0 %v941, 79
      %v3276 = vpop.permute.xlu0 %3275
      %3277 = vrot.lane.b32.xlu0 %v942, 79
      %v3278 = vpop.permute.xlu0 %3277
      %3279 = vrot.lane.b32.xlu0 %v943, 79
      %v3280 = vpop.permute.xlu0 %3279
      %3281 = vrot.lane.b32.xlu0 %v944, 79
      %v3282 = vpop.permute.xlu0 %3281
      %3283 = vrot.lane.b32.xlu0 %v945, 79
      %v3284 = vpop.permute.xlu0 %3283
      %3285 = vrot.lane.b32.xlu0 %v946, 79
      %v3286 = vpop.permute.xlu0 %3285
      %3287 = vrot.lane.b32.xlu0 %v947, 79
      %v3288 = vpop.permute.xlu0 %3287
      %3289 = vrot.lane.b32.xlu0 %v948, 79
      %v3290 = vpop.permute.xlu0 %3289
      %3291 = vrot.lane.b32.xlu0 %v949, 79
      %v3292 = vpop.permute.xlu0 %3291
      %3293 = vrot.lane.b32.xlu0 %v950, 79
      %v3294 = vpop.permute.xlu0 %3293
      %3295 = vrot.lane.b32.xlu0 %v951, 79
      %v3296 = vpop.permute.xlu0 %3295
      %3297 = vrot.lane.b32.xlu0 %v952, 79
      %v3298 = vpop.permute.xlu0 %3297
      %3299 = vrot.lane.b32.xlu0 %v953, 79
      %v3300 = vpop.permute.xlu0 %3299
      %3301 = vrot.lane.b32.xlu0 %v954, 79
      %v3302 = vpop.permute.xlu0 %3301
      %3303 = vrot.lane.b32.xlu0 %v955, 79
      %v3304 = vpop.permute.xlu0 %3303
      %3305 = vrot.lane.b32.xlu0 %v956, 79
      %v3306 = vpop.permute.xlu0 %3305
      %3307 = vrot.lane.b32.xlu0 %v957, 79
      %v3308 = vpop.permute.xlu0 %3307
      %3309 = vrot.lane.b32.xlu0 %v958, 79
      %v3310 = vpop.permute.xlu0 %3309
      %3311 = vrot.lane.b32.xlu0 %v959, 79
      %v3312 = vpop.permute.xlu0 %3311
      %3313 = vrot.lane.b32.xlu0 %v960, 79
      %v3314 = vpop.permute.xlu0 %3313
      %vm3315 = vcmask 646144
      %v3316 = vsel %vm3315, %v3214, %v3216
      %v3317 = vsel %vm3315, %v3216, %v3218
      %v3318 = vsel %vm3315, %v3220, %v3222
      %v3319 = vsel %vm3315, %v3222, %v3224
      %v3320 = vsel %vm3315, %v3226, %v3228
      %v3321 = vsel %vm3315, %v3228, %v3230
      %v3322 = vsel %vm3315, %v3232, %v3234
      %v3323 = vsel %vm3315, %v3234, %v3236
      %v3324 = vsel %vm3315, %v3238, %v3240
      %v3325 = vsel %vm3315, %v3240, %v3242
      %v3326 = vsel %vm3315, %v3244, %v3246
      %v3327 = vsel %vm3315, %v3246, %v3248
      %v3328 = vsel %vm3315, %v3250, %v3252
      %v3329 = vsel %vm3315, %v3252, %v3254
      %v3330 = vsel %vm3315, %v3256, %v3258
      %v3331 = vsel %vm3315, %v3258, %v3260
      %v3332 = vsel %vm3315, %v3262, %v3264
      %v3333 = vsel %vm3315, %v3264, %v3266
      %v3334 = vsel %vm3315, %v3268, %v3270
      %v3335 = vsel %vm3315, %v3270, %v3272
      %v3336 = vsel %vm3315, %v3274, %v3276
      %v3337 = vsel %vm3315, %v3276, %v3278
      %v3338 = vsel %vm3315, %v3280, %v3282
      %v3339 = vsel %vm3315, %v3282, %v3284
      %v3340 = vsel %vm3315, %v3286, %v3288
      %v3341 = vsel %vm3315, %v3288, %v3290
      %v3342 = vsel %vm3315, %v3292, %v3294
      %v3343 = vsel %vm3315, %v3294, %v3296
      %v3344 = vsel %vm3315, %v3298, %v3300
      %v3345 = vsel %vm3315, %v3300, %v3302
      %v3346 = vsel %vm3315, %v3304, %v3306
      %v3347 = vsel %vm3315, %v3306, %v3308
      %v3348 = vsel %vm3315, %v3310, %v3312
      %v3349 = vsel %vm3315, %v3312, %v3314
      %v3385 = vsel %vm1198, %v3210, 0
      %v3388 = vsel %vm1198, %v3212, 0
      %3390 = vmatpush.msra.mxu0 %v3346
      %3391 = vmatpush.msra.mxu0 %v3344
      %3392 = vmatpush.msra.mxu0 %v3342
      %3393 = vmatpush.msra.mxu0 %v3340
      %3394 = vmatpush.msra.mxu0 %v3338
      %3395 = vmatpush.msra.mxu0 %v3336
      %3396 = vmatpush.msra.mxu0 %v3334
      %3397 = vmatpush.msra.mxu0 %v3332
      %3398 = vmatpush.msra.mxu0 %v3330
      %3399 = vmatpush.msra.mxu0 %v3328
      %3400 = vmatpush.msra.mxu0 %v3326
      %3401 = vmatpush.msra.mxu0 %v3324
      %3402 = vmatpush.msra.mxu0 %v3322
      %3403 = vmatpush.msra.mxu0 %v3320
      %3404 = vmatpush.msra.mxu0 %v3318
      %3405 = vmatpush.msra.mxu0 %v3316
      %3406 = vmatmul.f32.gmra.mxu0 %v3209
      %v3407 = vpop.f32.mrf.mxu0
      %v3408 = vadd.f32 0.0, %v3407
      %3409 = vmatmul.f32.gmra.mxu0 %v3211
      %v3410 = vpop.f32.mrf.mxu0
      %v3411 = vadd.f32 0.0, %v3410
      %3412 = vdwg.mxu0
      %3413 = vmatpush.msra.mxu0 0.0
      %3414 = vmatpush.msra.mxu0 0.0
      %3415 = vmatpush.msra.mxu0 0.0
      %3416 = vmatpush.msra.mxu0 0.0
      %3417 = vmatpush.msra.mxu0 0.0
      %3418 = vmatpush.msra.mxu0 0.0
      %3419 = vmatpush.msra.mxu0 0.0
      %3420 = vmatpush.msra.mxu0 0.0
      %3421 = vmatpush.msra.mxu0 0.0
      %3422 = vmatpush.msra.mxu0 0.0
      %3423 = vmatpush.msra.mxu0 0.0
      %3424 = vmatpush.msra.mxu0 0.0
      %3425 = vmatpush.msra.mxu0 0.0
      %3426 = vmatpush.msra.mxu0 0.0
      %3427 = vmatpush.msra.mxu0 0.0
      %3428 = vmatpush.msra.mxu0 %v3348
      %3429 = vmatmul.f32.gmra.mxu0 %v3385
      %v3430 = vpop.f32.mrf.mxu0
      %v3431 = vadd.f32 %v3408, %v3430
      %3432 = vmatmul.f32.gmra.mxu0 %v3388
      %v3433 = vpop.f32.mrf.mxu0
      %v3434 = vadd.f32 %v3411, %v3433
      %3435 = vdwg.mxu0
      %3436 = vmatpush.msra.mxu0 %v3347
      %3437 = vmatpush.msra.mxu0 %v3345
      %3438 = vmatpush.msra.mxu0 %v3343
      %3439 = vmatpush.msra.mxu0 %v3341
      %3440 = vmatpush.msra.mxu0 %v3339
      %3441 = vmatpush.msra.mxu0 %v3337
      %3442 = vmatpush.msra.mxu0 %v3335
      %3443 = vmatpush.msra.mxu0 %v3333
      %3444 = vmatpush.msra.mxu0 %v3331
      %3445 = vmatpush.msra.mxu0 %v3329
      %3446 = vmatpush.msra.mxu0 %v3327
      %3447 = vmatpush.msra.mxu0 %v3325
      %3448 = vmatpush.msra.mxu0 %v3323
      %3449 = vmatpush.msra.mxu0 %v3321
      %3450 = vmatpush.msra.mxu0 %v3319
      %3451 = vmatpush.msra.mxu0 %v3317
      %3452 = vmatmul.f32.gmra.mxu0 %v3209
      %v3453 = vpop.f32.mrf.mxu0
      %v3454 = vadd.f32 0.0, %v3453
      %3455 = vmatmul.f32.gmra.mxu0 %v3211
      %v3456 = vpop.f32.mrf.mxu0
      %v3457 = vadd.f32 0.0, %v3456
      %3458 = vdwg.mxu0
      %3459 = vmatpush.msra.mxu0 0.0
      %3460 = vmatpush.msra.mxu0 0.0
      %3461 = vmatpush.msra.mxu0 0.0
      %3462 = vmatpush.msra.mxu0 0.0
      %3463 = vmatpush.msra.mxu0 0.0
      %3464 = vmatpush.msra.mxu0 0.0
      %3465 = vmatpush.msra.mxu0 0.0
      %3466 = vmatpush.msra.mxu0 0.0
      %3467 = vmatpush.msra.mxu0 0.0
      %3468 = vmatpush.msra.mxu0 0.0
      %3469 = vmatpush.msra.mxu0 0.0
      %3470 = vmatpush.msra.mxu0 0.0
      %3471 = vmatpush.msra.mxu0 0.0
      %3472 = vmatpush.msra.mxu0 0.0
      %3473 = vmatpush.msra.mxu0 0.0
      %3474 = vmatpush.msra.mxu0 %v3349
      %3475 = vmatmul.f32.gmra.mxu0 %v3385
      %v3476 = vpop.f32.mrf.mxu0
      %v3477 = vadd.f32 %v3454, %v3476
      %3478 = vmatmul.f32.gmra.mxu0 %v3388
      %v3479 = vpop.f32.mrf.mxu0
      %v3480 = vadd.f32 %v3457, %v3479
      %3481 = vdwg.mxu0
      %v3482 = vadd.f32 %v2601, %v3431
      %v3483 = vadd.f32 %v2647, %v3477
      %v3484 = vadd.f32 %v2604, %v3434
      %v3485 = vadd.f32 %v2650, %v3480
      %v3486 = vmul.f32 %v2926, %v588
      %v3487 = vmul.f32 %v2927, %v589
      %v3488 = vmul.f32 %v2928, %v588
      %v3489 = vmul.f32 %v2929, %v589
      %v3490 = vadd.f32 %v3204, %v3486
      %v3491 = vadd.f32 %v3205, %v3487
      %v3492 = vadd.f32 %v3206, %v3488
      %v3493 = vadd.f32 %v3207, %v3489
      %v3494 = vmul.f32 %v3482, %v594
      %v3495 = vmul.f32 %v3483, %v595
      %v3496 = vmul.f32 %v3484, %v594
      %v3497 = vmul.f32 %v3485, %v595
      %v3498 = vadd.f32 %v3490, %v3494
      %v3499 = vadd.f32 %v3491, %v3495
      %v3500 = vadd.f32 %v3492, %v3496
      %v3501 = vadd.f32 %v3493, %v3497
      %v3502 = vld [vmem:[%s6] sm:$0xff]
      %v3503 = vld [vmem:[%s6 + $0x8] sm:$0xff]
      %3505 = vset.pattern.permute.xlu0 0
      %3506 = vperm.xlu0 %3505, %v3502
      %v3507 = vpop.permute.xlu0 %3506
      %3510 = vset.pattern.permute.xlu0 0
      %3511 = vperm.xlu0 %3510, %v3503
      %v3512 = vpop.permute.xlu0 %3511
      %v3514 = vadd.f32 %v3498, %v3507
      %v3515 = vadd.f32 %v3499, %v3507
      %v3516 = vadd.f32 %v3500, %v3512
      %v3517 = vadd.f32 %v3501, %v3512
      %v3518 = vld [vmem:[%s505] sm:$0xff]
      %v3519 = vld [vmem:[%s505 + $0x8] sm:$0xff]
      %v3520 = vmul.f32 %v3518, %v3514
      %v3521 = vmul.f32 %v3519, %v3515
      %3524 = vrot.lane.b32.xlu0 %v3520, 32
      %v3525 = vpop.permute.xlu0 %3524
      %3526 = vrot.lane.b32.xlu0 %v3521, 32
      %v3527 = vpop.permute.xlu0 %3526
      %v3528 = vsel %vm521, %v3525, %v3527
      %3532 = vst.msk [vmem:[#allocation2] sm:$0xff] %vm704, %v3525
      %3533 = vst [vmem:[#allocation2 + $0x8] sm:$0xff] %v3528
      %3534 = vst.msk [vmem:[#allocation2 + $0x10] sm:$0xff] %vm521, %v3527
      %3537 = vrot.lane.b32.xlu0 %v3516, 32
      %v3538 = vpop.permute.xlu0 %3537
      %3539 = vrot.lane.b32.xlu0 %v3517, 32
      %v3540 = vpop.permute.xlu0 %3539
      %v3541 = vsel %vm521, %v3538, %v3540
      %3545 = vst.msk [vmem:[#allocation2 + $0x18] sm:$0xff] %vm704, %v3538
      %3546 = vst [vmem:[#allocation2 + $0x20] sm:$0xff] %v3541
      %3547 = vst.msk [vmem:[#allocation2 + $0x28] sm:$0xff] %vm521, %v3540
      %v3548 = vld [vmem:[%s510] sm:$0xff]
      %3550 = vst [vmem:[#allocation1] ss:$2 sm:$0xff] %v3548
      %v3551 = vld.sshfl [vmem:[#allocation1] sm:$0xff pattern:$0x75316420]
      %v3552 = vld.sshfl [vmem:[#allocation1 + $0x8] sm:$0xff pattern:$0x75316420]
      %3553 = vrot.lane.b32.xlu0 %v3551, 32
      %v3554 = vpop.permute.xlu0 %3553
      %3555 = vrot.lane.b32.xlu0 %v3552, 32
      %v3556 = vpop.permute.xlu0 %3555
      %v3557 = vsel %vm521, %v3554, %v3556
      %3561 = vst.msk [vmem:[#allocation2 + $0x30] sm:$0xf] %vm729, %v3554
      %3562 = vst [vmem:[#allocation2 + $0x38] sm:$0xf] %v3557
      %3563 = vst.msk [vmem:[#allocation2 + $0x40] sm:$0xf] %vm732, %v3556
      %v3564 = vld [vmem:[%s7] sm:$0xff]
      %v3565 = vld [vmem:[%s7 + $0x8] sm:$0xff]
      %v3566 = vld [vmem:[#allocation2] sm:$0xff]
      %v3567 = vld [vmem:[#allocation2 + $0x8] sm:$0xff]
      %v3568 = vld [vmem:[#allocation2 + $0x10] sm:$0xff]
      %v3569 = vld [vmem:[#allocation2 + $0x18] sm:$0xff]
      %v3570 = vld [vmem:[#allocation2 + $0x20] sm:$0xff]
      %v3571 = vld [vmem:[#allocation2 + $0x28] sm:$0xff]
      %v3572 = vld [vmem:[#allocation2 + $0x30] sm:$0xf]
      %v3573 = vld [vmem:[#allocation2 + $0x38] sm:$0xf]
      %v3574 = vld [vmem:[#allocation2 + $0x40] sm:$0xf]
      %s3575 = scalar_lea.vmem %s7, 16
      %v3576 = vld [vmem:[%s3575] sm:$0xff]
      %v3577 = vld [vmem:[%s3575 + $0x8] sm:$0xff]
      %s3578 = scalar_lea.vmem %s7, 32
      %v3579 = vld [vmem:[%s3578] sm:$0xff]
      %v3580 = vld [vmem:[%s3578 + $0x8] sm:$0xff]
      %s3581 = scalar_lea.vmem %s7, 48
      %v3582 = vld [vmem:[%s3581] sm:$0xff]
      %v3583 = vld [vmem:[%s3581 + $0x8] sm:$0xff]
      %3593 = vrot.lane.b32.xlu0 %v3566, 97
      %v3594 = vpop.permute.xlu0 %3593
      %3595 = vrot.lane.b32.xlu0 %v3567, 97
      %v3596 = vpop.permute.xlu0 %3595
      %3597 = vrot.lane.b32.xlu0 %v3568, 97
      %v3598 = vpop.permute.xlu0 %3597
      %3599 = vrot.lane.b32.xlu0 %v3569, 97
      %v3600 = vpop.permute.xlu0 %3599
      %3601 = vrot.lane.b32.xlu0 %v3570, 97
      %v3602 = vpop.permute.xlu0 %3601
      %3603 = vrot.lane.b32.xlu0 %v3571, 97
      %v3604 = vpop.permute.xlu0 %3603
      %3605 = vrot.lane.b32.xlu0 %v3572, 97
      %v3606 = vpop.permute.xlu0 %3605
      %3607 = vrot.lane.b32.xlu0 %v3573, 97
      %v3608 = vpop.permute.xlu0 %3607
      %3609 = vrot.lane.b32.xlu0 %v3574, 97
      %v3610 = vpop.permute.xlu0 %3609
      %v3611 = vsel %vm1129, %v3594, %v3596
      %v3612 = vsel %vm1129, %v3596, %v3598
      %v3613 = vsel %vm1129, %v3600, %v3602
      %v3614 = vsel %vm1129, %v3602, %v3604
      %v3615 = vsel %vm1129, %v3606, %v3608
      %v3616 = vsel %vm1129, %v3608, %v3610
      %vm3621 = vcmask 162816
      %v3623 = vsel %vm3621, %v3582, 0
      %v3626 = vsel %vm3621, %v3583, 0
      %v3628 = vsel %vm770, %v3615, 0
      %v3630 = vsel %vm770, %v3616, 0
      %3632 = vmatpush.msra.mxu0 0.0
      %3633 = vmatpush.msra.mxu0 0.0
      %3634 = vmatpush.msra.mxu0 0.0
      %3635 = vmatpush.msra.mxu0 0.0
      %3636 = vmatpush.msra.mxu0 0.0
      %3637 = vmatpush.msra.mxu0 0.0
      %3638 = vmatpush.msra.mxu0 0.0
      %3639 = vmatpush.msra.mxu0 0.0
      %3640 = vmatpush.msra.mxu0 0.0
      %3641 = vmatpush.msra.mxu0 0.0
      %3642 = vmatpush.msra.mxu0 0.0
      %3643 = vmatpush.msra.mxu0 0.0
      %3644 = vmatpush.msra.mxu0 0.0
      %3645 = vmatpush.msra.mxu0 %v3628
      %3646 = vmatpush.msra.mxu0 %v3613
      %3647 = vmatpush.msra.mxu0 %v3611
      %3648 = vmatmul.f32.gmra.mxu0 %v3623
      %v3649 = vpop.f32.mrf.mxu0
      %v3650 = vadd.f32 0.0, %v3649
      %3651 = vmatmul.f32.gmra.mxu0 %v3626
      %v3652 = vpop.f32.mrf.mxu0
      %v3653 = vadd.f32 0.0, %v3652
      %3654 = vdwg.mxu0
      %3655 = vmatpush.msra.mxu0 0.0
      %3656 = vmatpush.msra.mxu0 0.0
      %3657 = vmatpush.msra.mxu0 0.0
      %3658 = vmatpush.msra.mxu0 0.0
      %3659 = vmatpush.msra.mxu0 0.0
      %3660 = vmatpush.msra.mxu0 0.0
      %3661 = vmatpush.msra.mxu0 0.0
      %3662 = vmatpush.msra.mxu0 0.0
      %3663 = vmatpush.msra.mxu0 0.0
      %3664 = vmatpush.msra.mxu0 0.0
      %3665 = vmatpush.msra.mxu0 0.0
      %3666 = vmatpush.msra.mxu0 0.0
      %3667 = vmatpush.msra.mxu0 0.0
      %3668 = vmatpush.msra.mxu0 %v3630
      %3669 = vmatpush.msra.mxu0 %v3614
      %3670 = vmatpush.msra.mxu0 %v3612
      %3671 = vmatmul.f32.gmra.mxu0 %v3623
      %v3672 = vpop.f32.mrf.mxu0
      %v3673 = vadd.f32 0.0, %v3672
      %3674 = vmatmul.f32.gmra.mxu0 %v3626
      %v3675 = vpop.f32.mrf.mxu0
      %v3676 = vadd.f32 0.0, %v3675
      %3677 = vdwg.mxu0
      %3678 = vrot.lane.b32.xlu0 %v3566, 113
      %v3679 = vpop.permute.xlu0 %3678
      %3680 = vrot.lane.b32.xlu0 %v3567, 113
      %v3681 = vpop.permute.xlu0 %3680
      %3682 = vrot.lane.b32.xlu0 %v3568, 113
      %v3683 = vpop.permute.xlu0 %3682
      %3684 = vrot.lane.b32.xlu0 %v3569, 113
      %v3685 = vpop.permute.xlu0 %3684
      %3686 = vrot.lane.b32.xlu0 %v3570, 113
      %v3687 = vpop.permute.xlu0 %3686
      %3688 = vrot.lane.b32.xlu0 %v3571, 113
      %v3689 = vpop.permute.xlu0 %3688
      %3690 = vrot.lane.b32.xlu0 %v3572, 113
      %v3691 = vpop.permute.xlu0 %3690
      %3692 = vrot.lane.b32.xlu0 %v3573, 113
      %v3693 = vpop.permute.xlu0 %3692
      %3694 = vrot.lane.b32.xlu0 %v3574, 113
      %v3695 = vpop.permute.xlu0 %3694
      %v3696 = vsel %vm1399, %v3679, %v3681
      %v3697 = vsel %vm1399, %v3681, %v3683
      %v3698 = vsel %vm1399, %v3685, %v3687
      %v3699 = vsel %vm1399, %v3687, %v3689
      %v3700 = vsel %vm1399, %v3691, %v3693
      %v3701 = vsel %vm1399, %v3693, %v3695
      %v3707 = vsel %vm3621, %v3564, 0
      %v3710 = vsel %vm3621, %v3565, 0
      %v3712 = vsel %vm770, %v3700, 0
      %v3714 = vsel %vm770, %v3701, 0
      %3716 = vmatpush.msra.mxu0 0.0
      %3717 = vmatpush.msra.mxu0 0.0
      %3718 = vmatpush.msra.mxu0 0.0
      %3719 = vmatpush.msra.mxu0 0.0
      %3720 = vmatpush.msra.mxu0 0.0
      %3721 = vmatpush.msra.mxu0 0.0
      %3722 = vmatpush.msra.mxu0 0.0
      %3723 = vmatpush.msra.mxu0 0.0
      %3724 = vmatpush.msra.mxu0 0.0
      %3725 = vmatpush.msra.mxu0 0.0
      %3726 = vmatpush.msra.mxu0 0.0
      %3727 = vmatpush.msra.mxu0 0.0
      %3728 = vmatpush.msra.mxu0 0.0
      %3729 = vmatpush.msra.mxu0 %v3712
      %3730 = vmatpush.msra.mxu0 %v3698
      %3731 = vmatpush.msra.mxu0 %v3696
      %3732 = vmatmul.f32.gmra.mxu0 %v3707
      %v3733 = vpop.f32.mrf.mxu0
      %v3734 = vadd.f32 %v3650, %v3733
      %3735 = vmatmul.f32.gmra.mxu0 %v3710
      %v3736 = vpop.f32.mrf.mxu0
      %v3737 = vadd.f32 %v3653, %v3736
      %3738 = vdwg.mxu0
      %3739 = vmatpush.msra.mxu0 0.0
      %3740 = vmatpush.msra.mxu0 0.0
      %3741 = vmatpush.msra.mxu0 0.0
      %3742 = vmatpush.msra.mxu0 0.0
      %3743 = vmatpush.msra.mxu0 0.0
      %3744 = vmatpush.msra.mxu0 0.0
      %3745 = vmatpush.msra.mxu0 0.0
      %3746 = vmatpush.msra.mxu0 0.0
      %3747 = vmatpush.msra.mxu0 0.0
      %3748 = vmatpush.msra.mxu0 0.0
      %3749 = vmatpush.msra.mxu0 0.0
      %3750 = vmatpush.msra.mxu0 0.0
      %3751 = vmatpush.msra.mxu0 0.0
      %3752 = vmatpush.msra.mxu0 %v3714
      %3753 = vmatpush.msra.mxu0 %v3699
      %3754 = vmatpush.msra.mxu0 %v3697
      %3755 = vmatmul.f32.gmra.mxu0 %v3707
      %v3756 = vpop.f32.mrf.mxu0
      %v3757 = vadd.f32 %v3673, %v3756
      %3758 = vmatmul.f32.gmra.mxu0 %v3710
      %v3759 = vpop.f32.mrf.mxu0
      %v3760 = vadd.f32 %v3676, %v3759
      %3761 = vdwg.mxu0
      %s3762 = scalar_lea.vmem %s7, 64
      %v3763 = vld [vmem:[%s3762] sm:$0xff]
      %v3764 = vld [vmem:[%s3762 + $0x8] sm:$0xff]
      %3765 = vrot.lane.b32.xlu0 %v3566, 96
      %v3766 = vpop.permute.xlu0 %3765
      %3767 = vrot.lane.b32.xlu0 %v3567, 96
      %v3768 = vpop.permute.xlu0 %3767
      %3769 = vrot.lane.b32.xlu0 %v3568, 96
      %v3770 = vpop.permute.xlu0 %3769
      %3771 = vrot.lane.b32.xlu0 %v3569, 96
      %v3772 = vpop.permute.xlu0 %3771
      %3773 = vrot.lane.b32.xlu0 %v3570, 96
      %v3774 = vpop.permute.xlu0 %3773
      %3775 = vrot.lane.b32.xlu0 %v3571, 96
      %v3776 = vpop.permute.xlu0 %3775
      %3777 = vrot.lane.b32.xlu0 %v3572, 96
      %v3778 = vpop.permute.xlu0 %3777
      %3779 = vrot.lane.b32.xlu0 %v3573, 96
      %v3780 = vpop.permute.xlu0 %3779
      %3781 = vrot.lane.b32.xlu0 %v3574, 96
      %v3782 = vpop.permute.xlu0 %3781
      %v3783 = vsel %vm1673, %v3766, %v3768
      %v3784 = vsel %vm1673, %v3768, %v3770
      %v3785 = vsel %vm1673, %v3772, %v3774
      %v3786 = vsel %vm1673, %v3774, %v3776
      %v3787 = vsel %vm1673, %v3778, %v3780
      %v3788 = vsel %vm1673, %v3780, %v3782
      %v3794 = vsel %vm3621, %v3763, 0
      %v3797 = vsel %vm3621, %v3764, 0
      %v3799 = vsel %vm770, %v3787, 0
      %v3801 = vsel %vm770, %v3788, 0
      %3803 = vmatpush.msra.mxu0 0.0
      %3804 = vmatpush.msra.mxu0 0.0
      %3805 = vmatpush.msra.mxu0 0.0
      %3806 = vmatpush.msra.mxu0 0.0
      %3807 = vmatpush.msra.mxu0 0.0
      %3808 = vmatpush.msra.mxu0 0.0
      %3809 = vmatpush.msra.mxu0 0.0
      %3810 = vmatpush.msra.mxu0 0.0
      %3811 = vmatpush.msra.mxu0 0.0
      %3812 = vmatpush.msra.mxu0 0.0
      %3813 = vmatpush.msra.mxu0 0.0
      %3814 = vmatpush.msra.mxu0 0.0
      %3815 = vmatpush.msra.mxu0 0.0
      %3816 = vmatpush.msra.mxu0 %v3799
      %3817 = vmatpush.msra.mxu0 %v3785
      %3818 = vmatpush.msra.mxu0 %v3783
      %3819 = vmatmul.f32.gmra.mxu0 %v3794
      %v3820 = vpop.f32.mrf.mxu0
      %v3821 = vadd.f32 0.0, %v3820
      %3822 = vmatmul.f32.gmra.mxu0 %v3797
      %v3823 = vpop.f32.mrf.mxu0
      %v3824 = vadd.f32 0.0, %v3823
      %3825 = vdwg.mxu0
      %3826 = vmatpush.msra.mxu0 0.0
      %3827 = vmatpush.msra.mxu0 0.0
      %3828 = vmatpush.msra.mxu0 0.0
      %3829 = vmatpush.msra.mxu0 0.0
      %3830 = vmatpush.msra.mxu0 0.0
      %3831 = vmatpush.msra.mxu0 0.0
      %3832 = vmatpush.msra.mxu0 0.0
      %3833 = vmatpush.msra.mxu0 0.0
      %3834 = vmatpush.msra.mxu0 0.0
      %3835 = vmatpush.msra.mxu0 0.0
      %3836 = vmatpush.msra.mxu0 0.0
      %3837 = vmatpush.msra.mxu0 0.0
      %3838 = vmatpush.msra.mxu0 0.0
      %3839 = vmatpush.msra.mxu0 %v3801
      %3840 = vmatpush.msra.mxu0 %v3786
      %3841 = vmatpush.msra.mxu0 %v3784
      %3842 = vmatmul.f32.gmra.mxu0 %v3794
      %v3843 = vpop.f32.mrf.mxu0
      %v3844 = vadd.f32 0.0, %v3843
      %3845 = vmatmul.f32.gmra.mxu0 %v3797
      %v3846 = vpop.f32.mrf.mxu0
      %v3847 = vadd.f32 0.0, %v3846
      %3848 = vdwg.mxu0
      %3849 = vrot.lane.b32.xlu0 %v3566, 112
      %v3850 = vpop.permute.xlu0 %3849
      %3851 = vrot.lane.b32.xlu0 %v3567, 112
      %v3852 = vpop.permute.xlu0 %3851
      %3853 = vrot.lane.b32.xlu0 %v3568, 112
      %v3854 = vpop.permute.xlu0 %3853
      %3855 = vrot.lane.b32.xlu0 %v3569, 112
      %v3856 = vpop.permute.xlu0 %3855
      %3857 = vrot.lane.b32.xlu0 %v3570, 112
      %v3858 = vpop.permute.xlu0 %3857
      %3859 = vrot.lane.b32.xlu0 %v3571, 112
      %v3860 = vpop.permute.xlu0 %3859
      %3861 = vrot.lane.b32.xlu0 %v3572, 112
      %v3862 = vpop.permute.xlu0 %3861
      %3863 = vrot.lane.b32.xlu0 %v3573, 112
      %v3864 = vpop.permute.xlu0 %3863
      %3865 = vrot.lane.b32.xlu0 %v3574, 112
      %v3866 = vpop.permute.xlu0 %3865
      %v3867 = vsel %vm1942, %v3850, %v3852
      %v3868 = vsel %vm1942, %v3852, %v3854
      %v3869 = vsel %vm1942, %v3856, %v3858
      %v3870 = vsel %vm1942, %v3858, %v3860
      %v3871 = vsel %vm1942, %v3862, %v3864
      %v3872 = vsel %vm1942, %v3864, %v3866
      %v3878 = vsel %vm3621, %v3576, 0
      %v3881 = vsel %vm3621, %v3577, 0
      %v3883 = vsel %vm770, %v3871, 0
      %v3885 = vsel %vm770, %v3872, 0
      %3887 = vmatpush.msra.mxu0 0.0
      %3888 = vmatpush.msra.mxu0 0.0
      %3889 = vmatpush.msra.mxu0 0.0
      %3890 = vmatpush.msra.mxu0 0.0
      %3891 = vmatpush.msra.mxu0 0.0
      %3892 = vmatpush.msra.mxu0 0.0
      %3893 = vmatpush.msra.mxu0 0.0
      %3894 = vmatpush.msra.mxu0 0.0
      %3895 = vmatpush.msra.mxu0 0.0
      %3896 = vmatpush.msra.mxu0 0.0
      %3897 = vmatpush.msra.mxu0 0.0
      %3898 = vmatpush.msra.mxu0 0.0
      %3899 = vmatpush.msra.mxu0 0.0
      %3900 = vmatpush.msra.mxu0 %v3883
      %3901 = vmatpush.msra.mxu0 %v3869
      %3902 = vmatpush.msra.mxu0 %v3867
      %3903 = vmatmul.f32.gmra.mxu0 %v3878
      %v3904 = vpop.f32.mrf.mxu0
      %v3905 = vadd.f32 %v3821, %v3904
      %3906 = vmatmul.f32.gmra.mxu0 %v3881
      %v3907 = vpop.f32.mrf.mxu0
      %v3908 = vadd.f32 %v3824, %v3907
      %3909 = vdwg.mxu0
      %3910 = vmatpush.msra.mxu0 0.0
      %3911 = vmatpush.msra.mxu0 0.0
      %3912 = vmatpush.msra.mxu0 0.0
      %3913 = vmatpush.msra.mxu0 0.0
      %3914 = vmatpush.msra.mxu0 0.0
      %3915 = vmatpush.msra.mxu0 0.0
      %3916 = vmatpush.msra.mxu0 0.0
      %3917 = vmatpush.msra.mxu0 0.0
      %3918 = vmatpush.msra.mxu0 0.0
      %3919 = vmatpush.msra.mxu0 0.0
      %3920 = vmatpush.msra.mxu0 0.0
      %3921 = vmatpush.msra.mxu0 0.0
      %3922 = vmatpush.msra.mxu0 0.0
      %3923 = vmatpush.msra.mxu0 %v3885
      %3924 = vmatpush.msra.mxu0 %v3870
      %3925 = vmatpush.msra.mxu0 %v3868
      %3926 = vmatmul.f32.gmra.mxu0 %v3878
      %v3927 = vpop.f32.mrf.mxu0
      %v3928 = vadd.f32 %v3844, %v3927
      %3929 = vmatmul.f32.gmra.mxu0 %v3881
      %v3930 = vpop.f32.mrf.mxu0
      %v3931 = vadd.f32 %v3847, %v3930
      %3932 = vdwg.mxu0
      %s3933 = scalar_lea.vmem %s7, 80
      %v3934 = vld [vmem:[%s3933] sm:$0xff]
      %v3935 = vld [vmem:[%s3933 + $0x8] sm:$0xff]
      %3936 = vrot.lane.b32.xlu0 %v3566, 95
      %v3937 = vpop.permute.xlu0 %3936
      %3938 = vrot.lane.b32.xlu0 %v3567, 95
      %v3939 = vpop.permute.xlu0 %3938
      %3940 = vrot.lane.b32.xlu0 %v3568, 95
      %v3941 = vpop.permute.xlu0 %3940
      %3942 = vrot.lane.b32.xlu0 %v3569, 95
      %v3943 = vpop.permute.xlu0 %3942
      %3944 = vrot.lane.b32.xlu0 %v3570, 95
      %v3945 = vpop.permute.xlu0 %3944
      %3946 = vrot.lane.b32.xlu0 %v3571, 95
      %v3947 = vpop.permute.xlu0 %3946
      %3948 = vrot.lane.b32.xlu0 %v3572, 95
      %v3949 = vpop.permute.xlu0 %3948
      %3950 = vrot.lane.b32.xlu0 %v3573, 95
      %v3951 = vpop.permute.xlu0 %3950
      %3952 = vrot.lane.b32.xlu0 %v3574, 95
      %v3953 = vpop.permute.xlu0 %3952
      %v3954 = vsel %vm2216, %v3937, %v3939
      %v3955 = vsel %vm2216, %v3939, %v3941
      %v3956 = vsel %vm2216, %v3943, %v3945
      %v3957 = vsel %vm2216, %v3945, %v3947
      %v3958 = vsel %vm2216, %v3949, %v3951
      %v3959 = vsel %vm2216, %v3951, %v3953
      %v3965 = vsel %vm3621, %v3934, 0
      %v3968 = vsel %vm3621, %v3935, 0
      %v3970 = vsel %vm770, %v3958, 0
      %v3972 = vsel %vm770, %v3959, 0
      %3974 = vmatpush.msra.mxu0 0.0
      %3975 = vmatpush.msra.mxu0 0.0
      %3976 = vmatpush.msra.mxu0 0.0
      %3977 = vmatpush.msra.mxu0 0.0
      %3978 = vmatpush.msra.mxu0 0.0
      %3979 = vmatpush.msra.mxu0 0.0
      %3980 = vmatpush.msra.mxu0 0.0
      %3981 = vmatpush.msra.mxu0 0.0
      %3982 = vmatpush.msra.mxu0 0.0
      %3983 = vmatpush.msra.mxu0 0.0
      %3984 = vmatpush.msra.mxu0 0.0
      %3985 = vmatpush.msra.mxu0 0.0
      %3986 = vmatpush.msra.mxu0 0.0
      %3987 = vmatpush.msra.mxu0 %v3970
      %3988 = vmatpush.msra.mxu0 %v3956
      %3989 = vmatpush.msra.mxu0 %v3954
      %3990 = vmatmul.f32.gmra.mxu0 %v3965
      %v3991 = vpop.f32.mrf.mxu0
      %v3992 = vadd.f32 0.0, %v3991
      %3993 = vmatmul.f32.gmra.mxu0 %v3968
      %v3994 = vpop.f32.mrf.mxu0
      %v3995 = vadd.f32 0.0, %v3994
      %3996 = vdwg.mxu0
      %3997 = vmatpush.msra.mxu0 0.0
      %3998 = vmatpush.msra.mxu0 0.0
      %3999 = vmatpush.msra.mxu0 0.0
      %4000 = vmatpush.msra.mxu0 0.0
      %4001 = vmatpush.msra.mxu0 0.0
      %4002 = vmatpush.msra.mxu0 0.0
      %4003 = vmatpush.msra.mxu0 0.0
      %4004 = vmatpush.msra.mxu0 0.0
      %4005 = vmatpush.msra.mxu0 0.0
      %4006 = vmatpush.msra.mxu0 0.0
      %4007 = vmatpush.msra.mxu0 0.0
      %4008 = vmatpush.msra.mxu0 0.0
      %4009 = vmatpush.msra.mxu0 0.0
      %4010 = vmatpush.msra.mxu0 %v3972
      %4011 = vmatpush.msra.mxu0 %v3957
      %4012 = vmatpush.msra.mxu0 %v3955
      %4013 = vmatmul.f32.gmra.mxu0 %v3965
      %v4014 = vpop.f32.mrf.mxu0
      %v4015 = vadd.f32 0.0, %v4014
      %4016 = vmatmul.f32.gmra.mxu0 %v3968
      %v4017 = vpop.f32.mrf.mxu0
      %v4018 = vadd.f32 0.0, %v4017
      %4019 = vdwg.mxu0
      %4020 = vrot.lane.b32.xlu0 %v3566, 111
      %v4021 = vpop.permute.xlu0 %4020
      %4022 = vrot.lane.b32.xlu0 %v3567, 111
      %v4023 = vpop.permute.xlu0 %4022
      %4024 = vrot.lane.b32.xlu0 %v3568, 111
      %v4025 = vpop.permute.xlu0 %4024
      %4026 = vrot.lane.b32.xlu0 %v3569, 111
      %v4027 = vpop.permute.xlu0 %4026
      %4028 = vrot.lane.b32.xlu0 %v3570, 111
      %v4029 = vpop.permute.xlu0 %4028
      %4030 = vrot.lane.b32.xlu0 %v3571, 111
      %v4031 = vpop.permute.xlu0 %4030
      %4032 = vrot.lane.b32.xlu0 %v3572, 111
      %v4033 = vpop.permute.xlu0 %4032
      %4034 = vrot.lane.b32.xlu0 %v3573, 111
      %v4035 = vpop.permute.xlu0 %4034
      %4036 = vrot.lane.b32.xlu0 %v3574, 111
      %v4037 = vpop.permute.xlu0 %4036
      %v4038 = vsel %vm2485, %v4021, %v4023
      %v4039 = vsel %vm2485, %v4023, %v4025
      %v4040 = vsel %vm2485, %v4027, %v4029
      %v4041 = vsel %vm2485, %v4029, %v4031
      %v4042 = vsel %vm2485, %v4033, %v4035
      %v4043 = vsel %vm2485, %v4035, %v4037
      %v4049 = vsel %vm3621, %v3579, 0
      %v4052 = vsel %vm3621, %v3580, 0
      %v4054 = vsel %vm770, %v4042, 0
      %v4056 = vsel %vm770, %v4043, 0
      %4058 = vmatpush.msra.mxu0 0.0
      %4059 = vmatpush.msra.mxu0 0.0
      %4060 = vmatpush.msra.mxu0 0.0
      %4061 = vmatpush.msra.mxu0 0.0
      %4062 = vmatpush.msra.mxu0 0.0
      %4063 = vmatpush.msra.mxu0 0.0
      %4064 = vmatpush.msra.mxu0 0.0
      %4065 = vmatpush.msra.mxu0 0.0
      %4066 = vmatpush.msra.mxu0 0.0
      %4067 = vmatpush.msra.mxu0 0.0
      %4068 = vmatpush.msra.mxu0 0.0
      %4069 = vmatpush.msra.mxu0 0.0
      %4070 = vmatpush.msra.mxu0 0.0
      %4071 = vmatpush.msra.mxu0 %v4054
      %4072 = vmatpush.msra.mxu0 %v4040
      %4073 = vmatpush.msra.mxu0 %v4038
      %4074 = vmatmul.f32.gmra.mxu0 %v4049
      %v4075 = vpop.f32.mrf.mxu0
      %v4076 = vadd.f32 %v3992, %v4075
      %4077 = vmatmul.f32.gmra.mxu0 %v4052
      %v4078 = vpop.f32.mrf.mxu0
      %v4079 = vadd.f32 %v3995, %v4078
      %4080 = vdwg.mxu0
      %4081 = vmatpush.msra.mxu0 0.0
      %4082 = vmatpush.msra.mxu0 0.0
      %4083 = vmatpush.msra.mxu0 0.0
      %4084 = vmatpush.msra.mxu0 0.0
      %4085 = vmatpush.msra.mxu0 0.0
      %4086 = vmatpush.msra.mxu0 0.0
      %4087 = vmatpush.msra.mxu0 0.0
      %4088 = vmatpush.msra.mxu0 0.0
      %4089 = vmatpush.msra.mxu0 0.0
      %4090 = vmatpush.msra.mxu0 0.0
      %4091 = vmatpush.msra.mxu0 0.0
      %4092 = vmatpush.msra.mxu0 0.0
      %4093 = vmatpush.msra.mxu0 0.0
      %4094 = vmatpush.msra.mxu0 %v4056
      %4095 = vmatpush.msra.mxu0 %v4041
      %4096 = vmatpush.msra.mxu0 %v4039
      %4097 = vmatmul.f32.gmra.mxu0 %v4049
      %v4098 = vpop.f32.mrf.mxu0
      %v4099 = vadd.f32 %v4015, %v4098
      %4100 = vmatmul.f32.gmra.mxu0 %v4052
      %v4101 = vpop.f32.mrf.mxu0
      %v4102 = vadd.f32 %v4018, %v4101
      %4103 = vdwg.mxu0
      %s4104 = scalar_lea.vmem %s7, 96
      %v4105 = vld [vmem:[%s4104] sm:$0xff]
      %v4106 = vld [vmem:[%s4104 + $0x8] sm:$0xff]
      %4107 = vrot.lane.b32.xlu0 %v3566, 81
      %v4108 = vpop.permute.xlu0 %4107
      %4109 = vrot.lane.b32.xlu0 %v3567, 81
      %v4110 = vpop.permute.xlu0 %4109
      %4111 = vrot.lane.b32.xlu0 %v3568, 81
      %v4112 = vpop.permute.xlu0 %4111
      %4113 = vrot.lane.b32.xlu0 %v3569, 81
      %v4114 = vpop.permute.xlu0 %4113
      %4115 = vrot.lane.b32.xlu0 %v3570, 81
      %v4116 = vpop.permute.xlu0 %4115
      %4117 = vrot.lane.b32.xlu0 %v3571, 81
      %v4118 = vpop.permute.xlu0 %4117
      %4119 = vrot.lane.b32.xlu0 %v3572, 81
      %v4120 = vpop.permute.xlu0 %4119
      %4121 = vrot.lane.b32.xlu0 %v3573, 81
      %v4122 = vpop.permute.xlu0 %4121
      %4123 = vrot.lane.b32.xlu0 %v3574, 81
      %v4124 = vpop.permute.xlu0 %4123
      %v4125 = vsel %vm2759, %v4108, %v4110
      %v4126 = vsel %vm2759, %v4110, %v4112
      %v4127 = vsel %vm2759, %v4114, %v4116
      %v4128 = vsel %vm2759, %v4116, %v4118
      %v4129 = vsel %vm2759, %v4120, %v4122
      %v4130 = vsel %vm2759, %v4122, %v4124
      %v4136 = vsel %vm3621, %v4105, 0
      %v4139 = vsel %vm3621, %v4106, 0
      %v4141 = vsel %vm770, %v4129, 0
      %v4143 = vsel %vm770, %v4130, 0
      %4145 = vmatpush.msra.mxu0 0.0
      %4146 = vmatpush.msra.mxu0 0.0
      %4147 = vmatpush.msra.mxu0 0.0
      %4148 = vmatpush.msra.mxu0 0.0
      %4149 = vmatpush.msra.mxu0 0.0
      %4150 = vmatpush.msra.mxu0 0.0
      %4151 = vmatpush.msra.mxu0 0.0
      %4152 = vmatpush.msra.mxu0 0.0
      %4153 = vmatpush.msra.mxu0 0.0
      %4154 = vmatpush.msra.mxu0 0.0
      %4155 = vmatpush.msra.mxu0 0.0
      %4156 = vmatpush.msra.mxu0 0.0
      %4157 = vmatpush.msra.mxu0 0.0
      %4158 = vmatpush.msra.mxu0 %v4141
      %4159 = vmatpush.msra.mxu0 %v4127
      %4160 = vmatpush.msra.mxu0 %v4125
      %4161 = vmatmul.f32.gmra.mxu0 %v4136
      %v4162 = vpop.f32.mrf.mxu0
      %v4163 = vadd.f32 0.0, %v4162
      %4164 = vmatmul.f32.gmra.mxu0 %v4139
      %v4165 = vpop.f32.mrf.mxu0
      %v4166 = vadd.f32 0.0, %v4165
      %4167 = vdwg.mxu0
      %4168 = vmatpush.msra.mxu0 0.0
      %4169 = vmatpush.msra.mxu0 0.0
      %4170 = vmatpush.msra.mxu0 0.0
      %4171 = vmatpush.msra.mxu0 0.0
      %4172 = vmatpush.msra.mxu0 0.0
      %4173 = vmatpush.msra.mxu0 0.0
      %4174 = vmatpush.msra.mxu0 0.0
      %4175 = vmatpush.msra.mxu0 0.0
      %4176 = vmatpush.msra.mxu0 0.0
      %4177 = vmatpush.msra.mxu0 0.0
      %4178 = vmatpush.msra.mxu0 0.0
      %4179 = vmatpush.msra.mxu0 0.0
      %4180 = vmatpush.msra.mxu0 0.0
      %4181 = vmatpush.msra.mxu0 %v4143
      %4182 = vmatpush.msra.mxu0 %v4128
      %4183 = vmatpush.msra.mxu0 %v4126
      %4184 = vmatmul.f32.gmra.mxu0 %v4136
      %v4185 = vpop.f32.mrf.mxu0
      %v4186 = vadd.f32 0.0, %v4185
      %4187 = vmatmul.f32.gmra.mxu0 %v4139
      %v4188 = vpop.f32.mrf.mxu0
      %v4189 = vadd.f32 0.0, %v4188
      %4190 = vdwg.mxu0
      %v4191 = vadd.f32 %v3734, %v4163
      %v4192 = vadd.f32 %v3757, %v4186
      %v4193 = vadd.f32 %v3737, %v4166
      %v4194 = vadd.f32 %v3760, %v4189
      %s4195 = scalar_lea.vmem %s7, 112
      %v4196 = vld [vmem:[%s4195] sm:$0xff]
      %v4197 = vld [vmem:[%s4195 + $0x8] sm:$0xff]
      %4198 = vrot.lane.b32.xlu0 %v3566, 80
      %v4199 = vpop.permute.xlu0 %4198
      %4200 = vrot.lane.b32.xlu0 %v3567, 80
      %v4201 = vpop.permute.xlu0 %4200
      %4202 = vrot.lane.b32.xlu0 %v3568, 80
      %v4203 = vpop.permute.xlu0 %4202
      %4204 = vrot.lane.b32.xlu0 %v3569, 80
      %v4205 = vpop.permute.xlu0 %4204
      %4206 = vrot.lane.b32.xlu0 %v3570, 80
      %v4207 = vpop.permute.xlu0 %4206
      %4208 = vrot.lane.b32.xlu0 %v3571, 80
      %v4209 = vpop.permute.xlu0 %4208
      %4210 = vrot.lane.b32.xlu0 %v3572, 80
      %v4211 = vpop.permute.xlu0 %4210
      %4212 = vrot.lane.b32.xlu0 %v3573, 80
      %v4213 = vpop.permute.xlu0 %4212
      %4214 = vrot.lane.b32.xlu0 %v3574, 80
      %v4215 = vpop.permute.xlu0 %4214
      %v4216 = vsel %vm3037, %v4199, %v4201
      %v4217 = vsel %vm3037, %v4201, %v4203
      %v4218 = vsel %vm3037, %v4205, %v4207
      %v4219 = vsel %vm3037, %v4207, %v4209
      %v4220 = vsel %vm3037, %v4211, %v4213
      %v4221 = vsel %vm3037, %v4213, %v4215
      %v4227 = vsel %vm3621, %v4196, 0
      %v4230 = vsel %vm3621, %v4197, 0
      %v4232 = vsel %vm770, %v4220, 0
      %v4234 = vsel %vm770, %v4221, 0
      %4236 = vmatpush.msra.mxu0 0.0
      %4237 = vmatpush.msra.mxu0 0.0
      %4238 = vmatpush.msra.mxu0 0.0
      %4239 = vmatpush.msra.mxu0 0.0
      %4240 = vmatpush.msra.mxu0 0.0
      %4241 = vmatpush.msra.mxu0 0.0
      %4242 = vmatpush.msra.mxu0 0.0
      %4243 = vmatpush.msra.mxu0 0.0
      %4244 = vmatpush.msra.mxu0 0.0
      %4245 = vmatpush.msra.mxu0 0.0
      %4246 = vmatpush.msra.mxu0 0.0
      %4247 = vmatpush.msra.mxu0 0.0
      %4248 = vmatpush.msra.mxu0 0.0
      %4249 = vmatpush.msra.mxu0 %v4232
      %4250 = vmatpush.msra.mxu0 %v4218
      %4251 = vmatpush.msra.mxu0 %v4216
      %4252 = vmatmul.f32.gmra.mxu0 %v4227
      %v4253 = vpop.f32.mrf.mxu0
      %v4254 = vadd.f32 0.0, %v4253
      %4255 = vmatmul.f32.gmra.mxu0 %v4230
      %v4256 = vpop.f32.mrf.mxu0
      %v4257 = vadd.f32 0.0, %v4256
      %4258 = vdwg.mxu0
      %4259 = vmatpush.msra.mxu0 0.0
      %4260 = vmatpush.msra.mxu0 0.0
      %4261 = vmatpush.msra.mxu0 0.0
      %4262 = vmatpush.msra.mxu0 0.0
      %4263 = vmatpush.msra.mxu0 0.0
      %4264 = vmatpush.msra.mxu0 0.0
      %4265 = vmatpush.msra.mxu0 0.0
      %4266 = vmatpush.msra.mxu0 0.0
      %4267 = vmatpush.msra.mxu0 0.0
      %4268 = vmatpush.msra.mxu0 0.0
      %4269 = vmatpush.msra.mxu0 0.0
      %4270 = vmatpush.msra.mxu0 0.0
      %4271 = vmatpush.msra.mxu0 0.0
      %4272 = vmatpush.msra.mxu0 %v4234
      %4273 = vmatpush.msra.mxu0 %v4219
      %4274 = vmatpush.msra.mxu0 %v4217
      %4275 = vmatmul.f32.gmra.mxu0 %v4227
      %v4276 = vpop.f32.mrf.mxu0
      %v4277 = vadd.f32 0.0, %v4276
      %4278 = vmatmul.f32.gmra.mxu0 %v4230
      %v4279 = vpop.f32.mrf.mxu0
      %v4280 = vadd.f32 0.0, %v4279
      %4281 = vdwg.mxu0
      %v4282 = vadd.f32 %v3905, %v4254
      %v4283 = vadd.f32 %v3928, %v4277
      %v4284 = vadd.f32 %v3908, %v4257
      %v4285 = vadd.f32 %v3931, %v4280
      %s4286 = scalar_lea.vmem %s7, 128
      %v4287 = vld [vmem:[%s4286] sm:$0xff]
      %v4288 = vld [vmem:[%s4286 + $0x8] sm:$0xff]
      %4289 = vrot.lane.b32.xlu0 %v3566, 79
      %v4290 = vpop.permute.xlu0 %4289
      %4291 = vrot.lane.b32.xlu0 %v3567, 79
      %v4292 = vpop.permute.xlu0 %4291
      %4293 = vrot.lane.b32.xlu0 %v3568, 79
      %v4294 = vpop.permute.xlu0 %4293
      %4295 = vrot.lane.b32.xlu0 %v3569, 79
      %v4296 = vpop.permute.xlu0 %4295
      %4297 = vrot.lane.b32.xlu0 %v3570, 79
      %v4298 = vpop.permute.xlu0 %4297
      %4299 = vrot.lane.b32.xlu0 %v3571, 79
      %v4300 = vpop.permute.xlu0 %4299
      %4301 = vrot.lane.b32.xlu0 %v3572, 79
      %v4302 = vpop.permute.xlu0 %4301
      %4303 = vrot.lane.b32.xlu0 %v3573, 79
      %v4304 = vpop.permute.xlu0 %4303
      %4305 = vrot.lane.b32.xlu0 %v3574, 79
      %v4306 = vpop.permute.xlu0 %4305
      %v4307 = vsel %vm3315, %v4290, %v4292
      %v4308 = vsel %vm3315, %v4292, %v4294
      %v4309 = vsel %vm3315, %v4296, %v4298
      %v4310 = vsel %vm3315, %v4298, %v4300
      %v4311 = vsel %vm3315, %v4302, %v4304
      %v4312 = vsel %vm3315, %v4304, %v4306
      %v4318 = vsel %vm3621, %v4287, 0
      %v4321 = vsel %vm3621, %v4288, 0
      %v4323 = vsel %vm770, %v4311, 0
      %v4325 = vsel %vm770, %v4312, 0
      %4327 = vmatpush.msra.mxu0 0.0
      %4328 = vmatpush.msra.mxu0 0.0
      %4329 = vmatpush.msra.mxu0 0.0
      %4330 = vmatpush.msra.mxu0 0.0
      %4331 = vmatpush.msra.mxu0 0.0
      %4332 = vmatpush.msra.mxu0 0.0
      %4333 = vmatpush.msra.mxu0 0.0
      %4334 = vmatpush.msra.mxu0 0.0
      %4335 = vmatpush.msra.mxu0 0.0
      %4336 = vmatpush.msra.mxu0 0.0
      %4337 = vmatpush.msra.mxu0 0.0
      %4338 = vmatpush.msra.mxu0 0.0
      %4339 = vmatpush.msra.mxu0 0.0
      %4340 = vmatpush.msra.mxu0 %v4323
      %4341 = vmatpush.msra.mxu0 %v4309
      %4342 = vmatpush.msra.mxu0 %v4307
      %4343 = vmatmul.f32.gmra.mxu0 %v4318
      %v4344 = vpop.f32.mrf.mxu0
      %v4345 = vadd.f32 0.0, %v4344
      %4346 = vmatmul.f32.gmra.mxu0 %v4321
      %v4347 = vpop.f32.mrf.mxu0
      %v4348 = vadd.f32 0.0, %v4347
      %4349 = vdwg.mxu0
      %4350 = vmatpush.msra.mxu0 0.0
      %4351 = vmatpush.msra.mxu0 0.0
      %4352 = vmatpush.msra.mxu0 0.0
      %4353 = vmatpush.msra.mxu0 0.0
      %4354 = vmatpush.msra.mxu0 0.0
      %4355 = vmatpush.msra.mxu0 0.0
      %4356 = vmatpush.msra.mxu0 0.0
      %4357 = vmatpush.msra.mxu0 0.0
      %4358 = vmatpush.msra.mxu0 0.0
      %4359 = vmatpush.msra.mxu0 0.0
      %4360 = vmatpush.msra.mxu0 0.0
      %4361 = vmatpush.msra.mxu0 0.0
      %4362 = vmatpush.msra.mxu0 0.0
      %4363 = vmatpush.msra.mxu0 %v4325
      %4364 = vmatpush.msra.mxu0 %v4310
      %4365 = vmatpush.msra.mxu0 %v4308
      %4366 = vmatmul.f32.gmra.mxu0 %v4318
      %v4367 = vpop.f32.mrf.mxu0
      %v4368 = vadd.f32 0.0, %v4367
      %4369 = vmatmul.f32.gmra.mxu0 %v4321
      %v4370 = vpop.f32.mrf.mxu0
      %v4371 = vadd.f32 0.0, %v4370
      %4372 = vdwg.mxu0
      %v4373 = vadd.f32 %v4076, %v4345
      %v4374 = vadd.f32 %v4099, %v4368
      %v4375 = vadd.f32 %v4079, %v4348
      %v4376 = vadd.f32 %v4102, %v4371
      %v4377 = vmul.f32 %v4191, %v588
      %v4378 = vmul.f32 %v4192, %v589
      %v4379 = vmul.f32 %v4193, %v588
      %v4380 = vmul.f32 %v4194, %v589
      %v4381 = vadd.f32 %v4282, %v4377
      %v4382 = vadd.f32 %v4283, %v4378
      %v4383 = vadd.f32 %v4284, %v4379
      %v4384 = vadd.f32 %v4285, %v4380
      %v4385 = vmul.f32 %v4373, %v594
      %v4386 = vmul.f32 %v4374, %v595
      %v4387 = vmul.f32 %v4375, %v594
      %v4388 = vmul.f32 %v4376, %v595
      %v4389 = vadd.f32 %v4381, %v4385
      %v4390 = vadd.f32 %v4382, %v4386
      %v4391 = vadd.f32 %v4383, %v4387
      %v4392 = vadd.f32 %v4384, %v4388
      %v4393 = vld [vmem:[%s8] sm:$0xff]
      %v4394 = vld [vmem:[%s8 + $0x8] sm:$0xff]
      %4396 = vset.pattern.permute.xlu0 0
      %4397 = vperm.xlu0 %4396, %v4393
      %v4398 = vpop.permute.xlu0 %4397
      %4401 = vset.pattern.permute.xlu0 0
      %4402 = vperm.xlu0 %4401, %v4394
      %v4403 = vpop.permute.xlu0 %4402
      %v4405 = vadd.f32 %v4389, %v4398
      %v4406 = vadd.f32 %v4390, %v4398
      %v4407 = vadd.f32 %v4391, %v4403
      %v4408 = vadd.f32 %v4392, %v4403
      %vm4409 = vcmp.gt.f32.partialorder %v4405, 0.0
      %vm4410 = vcmp.gt.f32.partialorder %v4406, 0.0
      %vm4411 = vcmp.gt.f32.partialorder %v4407, 0.0
      %vm4412 = vcmp.gt.f32.partialorder %v4408, 0.0
      %v4413 = vmul.f32 %v4405, 0.1
      %v4414 = vmul.f32 %v4406, 0.1
      %v4415 = vmul.f32 %v4407, 0.1
      %v4416 = vmul.f32 %v4408, 0.1
      %v4417 = vsel %vm4409, %v4405, %v4413
      %v4418 = vsel %vm4410, %v4406, %v4414
      %v4419 = vsel %vm4411, %v4407, %v4415
      %v4420 = vsel %vm4412, %v4408, %v4416
      %v4421 = vadd.f32 %v4417, %v4419
      %v4422 = vadd.f32 %v4418, %v4420
      %4425 = vrot.lane.b32.xlu0 %v4421, 32
      %v4426 = vpop.permute.xlu0 %4425
      %4427 = vrot.lane.b32.xlu0 %v4422, 32
      %v4428 = vpop.permute.xlu0 %4427
      %v4429 = vsel %vm521, %v4426, %v4428
      %4433 = vst.msk [vmem:[#allocation2] sm:$0xff] %vm704, %v4426
      %4434 = vst [vmem:[#allocation2 + $0x8] sm:$0xff] %v4429
      %4435 = vst.msk [vmem:[#allocation2 + $0x10] sm:$0xff] %vm521, %v4428
      %v4436 = vld [vmem:[%s9] sm:$0xf]
      %v4437 = vld [vmem:[#allocation2] sm:$0xff]
      %v4438 = vld [vmem:[#allocation2 + $0x8] sm:$0xff]
      %v4439 = vld [vmem:[#allocation2 + $0x10] sm:$0xff]
      %s4440 = scalar_lea.vmem %s9, 4
      %v4441 = vld [vmem:[%s4440] sm:$0xf]
      %s4442 = scalar_lea.vmem %s9, 8
      %v4443 = vld [vmem:[%s4442] sm:$0xf]
      %s4444 = scalar_lea.vmem %s9, 12
      %v4445 = vld [vmem:[%s4444] sm:$0xf]
      %4449 = vrot.lane.b32.xlu0 %v4437, 97
      %v4450 = vpop.permute.xlu0 %4449
      %4451 = vrot.lane.b32.xlu0 %v4438, 97
      %v4452 = vpop.permute.xlu0 %4451
      %4453 = vrot.lane.b32.xlu0 %v4439, 97
      %v4454 = vpop.permute.xlu0 %4453
      %v4455 = vsel %vm1129, %v4450, %v4452
      %v4456 = vsel %vm1129, %v4452, %v4454
      %v4460 = vsel %vm1198, %v4445, 0
      %4462 = vmatpush.msra.mxu0 0.0
      %4463 = vmatpush.msra.mxu0 0.0
      %4464 = vmatpush.msra.mxu0 0.0
      %4465 = vmatpush.msra.mxu0 0.0
      %4466 = vmatpush.msra.mxu0 0.0
      %4467 = vmatpush.msra.mxu0 0.0
      %4468 = vmatpush.msra.mxu0 0.0
      %4469 = vmatpush.msra.mxu0 0.0
      %4470 = vmatpush.msra.mxu0 0.0
      %4471 = vmatpush.msra.mxu0 0.0
      %4472 = vmatpush.msra.mxu0 0.0
      %4473 = vmatpush.msra.mxu0 0.0
      %4474 = vmatpush.msra.mxu0 0.0
      %4475 = vmatpush.msra.mxu0 0.0
      %4476 = vmatpush.msra.mxu0 0.0
      %4477 = vmatpush.msra.mxu0 %v4455
      %4478 = vmatmul.f32.gmra.mxu0 %v4460
      %v4479 = vpop.f32.mrf.mxu0
      %v4480 = vadd.f32 0.0, %v4479
      %4481 = vdwg.mxu0
      %4482 = vmatpush.msra.mxu0 0.0
      %4483 = vmatpush.msra.mxu0 0.0
      %4484 = vmatpush.msra.mxu0 0.0
      %4485 = vmatpush.msra.mxu0 0.0
      %4486 = vmatpush.msra.mxu0 0.0
      %4487 = vmatpush.msra.mxu0 0.0
      %4488 = vmatpush.msra.mxu0 0.0
      %4489 = vmatpush.msra.mxu0 0.0
      %4490 = vmatpush.msra.mxu0 0.0
      %4491 = vmatpush.msra.mxu0 0.0
      %4492 = vmatpush.msra.mxu0 0.0
      %4493 = vmatpush.msra.mxu0 0.0
      %4494 = vmatpush.msra.mxu0 0.0
      %4495 = vmatpush.msra.mxu0 0.0
      %4496 = vmatpush.msra.mxu0 0.0
      %4497 = vmatpush.msra.mxu0 %v4456
      %4498 = vmatmul.f32.gmra.mxu0 %v4460
      %v4499 = vpop.f32.mrf.mxu0
      %v4500 = vadd.f32 0.0, %v4499
      %4501 = vdwg.mxu0
      %4502 = vrot.lane.b32.xlu0 %v4437, 113
      %v4503 = vpop.permute.xlu0 %4502
      %4504 = vrot.lane.b32.xlu0 %v4438, 113
      %v4505 = vpop.permute.xlu0 %4504
      %4506 = vrot.lane.b32.xlu0 %v4439, 113
      %v4507 = vpop.permute.xlu0 %4506
      %v4508 = vsel %vm1399, %v4503, %v4505
      %v4509 = vsel %vm1399, %v4505, %v4507
      %v4513 = vsel %vm1198, %v4436, 0
      %4515 = vmatpush.msra.mxu0 0.0
      %4516 = vmatpush.msra.mxu0 0.0
      %4517 = vmatpush.msra.mxu0 0.0
      %4518 = vmatpush.msra.mxu0 0.0
      %4519 = vmatpush.msra.mxu0 0.0
      %4520 = vmatpush.msra.mxu0 0.0
      %4521 = vmatpush.msra.mxu0 0.0
      %4522 = vmatpush.msra.mxu0 0.0
      %4523 = vmatpush.msra.mxu0 0.0
      %4524 = vmatpush.msra.mxu0 0.0
      %4525 = vmatpush.msra.mxu0 0.0
      %4526 = vmatpush.msra.mxu0 0.0
      %4527 = vmatpush.msra.mxu0 0.0
      %4528 = vmatpush.msra.mxu0 0.0
      %4529 = vmatpush.msra.mxu0 0.0
      %4530 = vmatpush.msra.mxu0 %v4508
      %4531 = vmatmul.f32.gmra.mxu0 %v4513
      %v4532 = vpop.f32.mrf.mxu0
      %v4533 = vadd.f32 %v4480, %v4532
      %4534 = vdwg.mxu0
      %4535 = vmatpush.msra.mxu0 0.0
      %4536 = vmatpush.msra.mxu0 0.0
      %4537 = vmatpush.msra.mxu0 0.0
      %4538 = vmatpush.msra.mxu0 0.0
      %4539 = vmatpush.msra.mxu0 0.0
      %4540 = vmatpush.msra.mxu0 0.0
      %4541 = vmatpush.msra.mxu0 0.0
      %4542 = vmatpush.msra.mxu0 0.0
      %4543 = vmatpush.msra.mxu0 0.0
      %4544 = vmatpush.msra.mxu0 0.0
      %4545 = vmatpush.msra.mxu0 0.0
      %4546 = vmatpush.msra.mxu0 0.0
      %4547 = vmatpush.msra.mxu0 0.0
      %4548 = vmatpush.msra.mxu0 0.0
      %4549 = vmatpush.msra.mxu0 0.0
      %4550 = vmatpush.msra.mxu0 %v4509
      %4551 = vmatmul.f32.gmra.mxu0 %v4513
      %v4552 = vpop.f32.mrf.mxu0
      %v4553 = vadd.f32 %v4500, %v4552
      %4554 = vdwg.mxu0
      %s4555 = scalar_lea.vmem %s9, 16
      %v4556 = vld [vmem:[%s4555] sm:$0xf]
      %4557 = vrot.lane.b32.xlu0 %v4437, 96
      %v4558 = vpop.permute.xlu0 %4557
      %4559 = vrot.lane.b32.xlu0 %v4438, 96
      %v4560 = vpop.permute.xlu0 %4559
      %4561 = vrot.lane.b32.xlu0 %v4439, 96
      %v4562 = vpop.permute.xlu0 %4561
      %v4563 = vsel %vm1673, %v4558, %v4560
      %v4564 = vsel %vm1673, %v4560, %v4562
      %v4568 = vsel %vm1198, %v4556, 0
      %4570 = vmatpush.msra.mxu0 0.0
      %4571 = vmatpush.msra.mxu0 0.0
      %4572 = vmatpush.msra.mxu0 0.0
      %4573 = vmatpush.msra.mxu0 0.0
      %4574 = vmatpush.msra.mxu0 0.0
      %4575 = vmatpush.msra.mxu0 0.0
      %4576 = vmatpush.msra.mxu0 0.0
      %4577 = vmatpush.msra.mxu0 0.0
      %4578 = vmatpush.msra.mxu0 0.0
      %4579 = vmatpush.msra.mxu0 0.0
      %4580 = vmatpush.msra.mxu0 0.0
      %4581 = vmatpush.msra.mxu0 0.0
      %4582 = vmatpush.msra.mxu0 0.0
      %4583 = vmatpush.msra.mxu0 0.0
      %4584 = vmatpush.msra.mxu0 0.0
      %4585 = vmatpush.msra.mxu0 %v4563
      %4586 = vmatmul.f32.gmra.mxu0 %v4568
      %v4587 = vpop.f32.mrf.mxu0
      %v4588 = vadd.f32 0.0, %v4587
      %4589 = vdwg.mxu0
      %4590 = vmatpush.msra.mxu0 0.0
      %4591 = vmatpush.msra.mxu0 0.0
      %4592 = vmatpush.msra.mxu0 0.0
      %4593 = vmatpush.msra.mxu0 0.0
      %4594 = vmatpush.msra.mxu0 0.0
      %4595 = vmatpush.msra.mxu0 0.0
      %4596 = vmatpush.msra.mxu0 0.0
      %4597 = vmatpush.msra.mxu0 0.0
      %4598 = vmatpush.msra.mxu0 0.0
      %4599 = vmatpush.msra.mxu0 0.0
      %4600 = vmatpush.msra.mxu0 0.0
      %4601 = vmatpush.msra.mxu0 0.0
      %4602 = vmatpush.msra.mxu0 0.0
      %4603 = vmatpush.msra.mxu0 0.0
      %4604 = vmatpush.msra.mxu0 0.0
      %4605 = vmatpush.msra.mxu0 %v4564
      %4606 = vmatmul.f32.gmra.mxu0 %v4568
      %v4607 = vpop.f32.mrf.mxu0
      %v4608 = vadd.f32 0.0, %v4607
      %4609 = vdwg.mxu0
      %4610 = vrot.lane.b32.xlu0 %v4437, 112
      %v4611 = vpop.permute.xlu0 %4610
      %4612 = vrot.lane.b32.xlu0 %v4438, 112
      %v4613 = vpop.permute.xlu0 %4612
      %4614 = vrot.lane.b32.xlu0 %v4439, 112
      %v4615 = vpop.permute.xlu0 %4614
      %v4616 = vsel %vm1942, %v4611, %v4613
      %v4617 = vsel %vm1942, %v4613, %v4615
      %v4621 = vsel %vm1198, %v4441, 0
      %4623 = vmatpush.msra.mxu0 0.0
      %4624 = vmatpush.msra.mxu0 0.0
      %4625 = vmatpush.msra.mxu0 0.0
      %4626 = vmatpush.msra.mxu0 0.0
      %4627 = vmatpush.msra.mxu0 0.0
      %4628 = vmatpush.msra.mxu0 0.0
      %4629 = vmatpush.msra.mxu0 0.0
      %4630 = vmatpush.msra.mxu0 0.0
      %4631 = vmatpush.msra.mxu0 0.0
      %4632 = vmatpush.msra.mxu0 0.0
      %4633 = vmatpush.msra.mxu0 0.0
      %4634 = vmatpush.msra.mxu0 0.0
      %4635 = vmatpush.msra.mxu0 0.0
      %4636 = vmatpush.msra.mxu0 0.0
      %4637 = vmatpush.msra.mxu0 0.0
      %4638 = vmatpush.msra.mxu0 %v4616
      %4639 = vmatmul.f32.gmra.mxu0 %v4621
      %v4640 = vpop.f32.mrf.mxu0
      %v4641 = vadd.f32 %v4588, %v4640
      %4642 = vdwg.mxu0
      %4643 = vmatpush.msra.mxu0 0.0
      %4644 = vmatpush.msra.mxu0 0.0
      %4645 = vmatpush.msra.mxu0 0.0
      %4646 = vmatpush.msra.mxu0 0.0
      %4647 = vmatpush.msra.mxu0 0.0
      %4648 = vmatpush.msra.mxu0 0.0
      %4649 = vmatpush.msra.mxu0 0.0
      %4650 = vmatpush.msra.mxu0 0.0
      %4651 = vmatpush.msra.mxu0 0.0
      %4652 = vmatpush.msra.mxu0 0.0
      %4653 = vmatpush.msra.mxu0 0.0
      %4654 = vmatpush.msra.mxu0 0.0
      %4655 = vmatpush.msra.mxu0 0.0
      %4656 = vmatpush.msra.mxu0 0.0
      %4657 = vmatpush.msra.mxu0 0.0
      %4658 = vmatpush.msra.mxu0 %v4617
      %4659 = vmatmul.f32.gmra.mxu0 %v4621
      %v4660 = vpop.f32.mrf.mxu0
      %v4661 = vadd.f32 %v4608, %v4660
      %4662 = vdwg.mxu0
      %s4663 = scalar_lea.vmem %s9, 20
      %v4664 = vld [vmem:[%s4663] sm:$0xf]
      %4665 = vrot.lane.b32.xlu0 %v4437, 95
      %v4666 = vpop.permute.xlu0 %4665
      %4667 = vrot.lane.b32.xlu0 %v4438, 95
      %v4668 = vpop.permute.xlu0 %4667
      %4669 = vrot.lane.b32.xlu0 %v4439, 95
      %v4670 = vpop.permute.xlu0 %4669
      %v4671 = vsel %vm2216, %v4666, %v4668
      %v4672 = vsel %vm2216, %v4668, %v4670
      %v4676 = vsel %vm1198, %v4664, 0
      %4678 = vmatpush.msra.mxu0 0.0
      %4679 = vmatpush.msra.mxu0 0.0
      %4680 = vmatpush.msra.mxu0 0.0
      %4681 = vmatpush.msra.mxu0 0.0
      %4682 = vmatpush.msra.mxu0 0.0
      %4683 = vmatpush.msra.mxu0 0.0
      %4684 = vmatpush.msra.mxu0 0.0
      %4685 = vmatpush.msra.mxu0 0.0
      %4686 = vmatpush.msra.mxu0 0.0
      %4687 = vmatpush.msra.mxu0 0.0
      %4688 = vmatpush.msra.mxu0 0.0
      %4689 = vmatpush.msra.mxu0 0.0
      %4690 = vmatpush.msra.mxu0 0.0
      %4691 = vmatpush.msra.mxu0 0.0
      %4692 = vmatpush.msra.mxu0 0.0
      %4693 = vmatpush.msra.mxu0 %v4671
      %4694 = vmatmul.f32.gmra.mxu0 %v4676
      %v4695 = vpop.f32.mrf.mxu0
      %v4696 = vadd.f32 0.0, %v4695
      %4697 = vdwg.mxu0
      %4698 = vmatpush.msra.mxu0 0.0
      %4699 = vmatpush.msra.mxu0 0.0
      %4700 = vmatpush.msra.mxu0 0.0
      %4701 = vmatpush.msra.mxu0 0.0
      %4702 = vmatpush.msra.mxu0 0.0
      %4703 = vmatpush.msra.mxu0 0.0
      %4704 = vmatpush.msra.mxu0 0.0
      %4705 = vmatpush.msra.mxu0 0.0
      %4706 = vmatpush.msra.mxu0 0.0
      %4707 = vmatpush.msra.mxu0 0.0
      %4708 = vmatpush.msra.mxu0 0.0
      %4709 = vmatpush.msra.mxu0 0.0
      %4710 = vmatpush.msra.mxu0 0.0
      %4711 = vmatpush.msra.mxu0 0.0
      %4712 = vmatpush.msra.mxu0 0.0
      %4713 = vmatpush.msra.mxu0 %v4672
      %4714 = vmatmul.f32.gmra.mxu0 %v4676
      %v4715 = vpop.f32.mrf.mxu0
      %v4716 = vadd.f32 0.0, %v4715
      %4717 = vdwg.mxu0
      %4718 = vrot.lane.b32.xlu0 %v4437, 111
      %v4719 = vpop.permute.xlu0 %4718
      %4720 = vrot.lane.b32.xlu0 %v4438, 111
      %v4721 = vpop.permute.xlu0 %4720
      %4722 = vrot.lane.b32.xlu0 %v4439, 111
      %v4723 = vpop.permute.xlu0 %4722
      %v4724 = vsel %vm2485, %v4719, %v4721
      %v4725 = vsel %vm2485, %v4721, %v4723
      %v4729 = vsel %vm1198, %v4443, 0
      %4731 = vmatpush.msra.mxu0 0.0
      %4732 = vmatpush.msra.mxu0 0.0
      %4733 = vmatpush.msra.mxu0 0.0
      %4734 = vmatpush.msra.mxu0 0.0
      %4735 = vmatpush.msra.mxu0 0.0
      %4736 = vmatpush.msra.mxu0 0.0
      %4737 = vmatpush.msra.mxu0 0.0
      %4738 = vmatpush.msra.mxu0 0.0
      %4739 = vmatpush.msra.mxu0 0.0
      %4740 = vmatpush.msra.mxu0 0.0
      %4741 = vmatpush.msra.mxu0 0.0
      %4742 = vmatpush.msra.mxu0 0.0
      %4743 = vmatpush.msra.mxu0 0.0
      %4744 = vmatpush.msra.mxu0 0.0
      %4745 = vmatpush.msra.mxu0 0.0
      %4746 = vmatpush.msra.mxu0 %v4724
      %4747 = vmatmul.f32.gmra.mxu0 %v4729
      %v4748 = vpop.f32.mrf.mxu0
      %v4749 = vadd.f32 %v4696, %v4748
      %4750 = vdwg.mxu0
      %4751 = vmatpush.msra.mxu0 0.0
      %4752 = vmatpush.msra.mxu0 0.0
      %4753 = vmatpush.msra.mxu0 0.0
      %4754 = vmatpush.msra.mxu0 0.0
      %4755 = vmatpush.msra.mxu0 0.0
      %4756 = vmatpush.msra.mxu0 0.0
      %4757 = vmatpush.msra.mxu0 0.0
      %4758 = vmatpush.msra.mxu0 0.0
      %4759 = vmatpush.msra.mxu0 0.0
      %4760 = vmatpush.msra.mxu0 0.0
      %4761 = vmatpush.msra.mxu0 0.0
      %4762 = vmatpush.msra.mxu0 0.0
      %4763 = vmatpush.msra.mxu0 0.0
      %4764 = vmatpush.msra.mxu0 0.0
      %4765 = vmatpush.msra.mxu0 0.0
      %4766 = vmatpush.msra.mxu0 %v4725
      %4767 = vmatmul.f32.gmra.mxu0 %v4729
      %v4768 = vpop.f32.mrf.mxu0
      %v4769 = vadd.f32 %v4716, %v4768
      %4770 = vdwg.mxu0
      %s4771 = scalar_lea.vmem %s9, 24
      %v4772 = vld [vmem:[%s4771] sm:$0xf]
      %4773 = vrot.lane.b32.xlu0 %v4437, 81
      %v4774 = vpop.permute.xlu0 %4773
      %4775 = vrot.lane.b32.xlu0 %v4438, 81
      %v4776 = vpop.permute.xlu0 %4775
      %4777 = vrot.lane.b32.xlu0 %v4439, 81
      %v4778 = vpop.permute.xlu0 %4777
      %v4779 = vsel %vm2759, %v4774, %v4776
      %v4780 = vsel %vm2759, %v4776, %v4778
      %v4784 = vsel %vm1198, %v4772, 0
      %4786 = vmatpush.msra.mxu0 0.0
      %4787 = vmatpush.msra.mxu0 0.0
      %4788 = vmatpush.msra.mxu0 0.0
      %4789 = vmatpush.msra.mxu0 0.0
      %4790 = vmatpush.msra.mxu0 0.0
      %4791 = vmatpush.msra.mxu0 0.0
      %4792 = vmatpush.msra.mxu0 0.0
      %4793 = vmatpush.msra.mxu0 0.0
      %4794 = vmatpush.msra.mxu0 0.0
      %4795 = vmatpush.msra.mxu0 0.0
      %4796 = vmatpush.msra.mxu0 0.0
      %4797 = vmatpush.msra.mxu0 0.0
      %4798 = vmatpush.msra.mxu0 0.0
      %4799 = vmatpush.msra.mxu0 0.0
      %4800 = vmatpush.msra.mxu0 0.0
      %4801 = vmatpush.msra.mxu0 %v4779
      %4802 = vmatmul.f32.gmra.mxu0 %v4784
      %v4803 = vpop.f32.mrf.mxu0
      %v4804 = vadd.f32 0.0, %v4803
      %4805 = vdwg.mxu0
      %4806 = vmatpush.msra.mxu0 0.0
      %4807 = vmatpush.msra.mxu0 0.0
      %4808 = vmatpush.msra.mxu0 0.0
      %4809 = vmatpush.msra.mxu0 0.0
      %4810 = vmatpush.msra.mxu0 0.0
      %4811 = vmatpush.msra.mxu0 0.0
      %4812 = vmatpush.msra.mxu0 0.0
      %4813 = vmatpush.msra.mxu0 0.0
      %4814 = vmatpush.msra.mxu0 0.0
      %4815 = vmatpush.msra.mxu0 0.0
      %4816 = vmatpush.msra.mxu0 0.0
      %4817 = vmatpush.msra.mxu0 0.0
      %4818 = vmatpush.msra.mxu0 0.0
      %4819 = vmatpush.msra.mxu0 0.0
      %4820 = vmatpush.msra.mxu0 0.0
      %4821 = vmatpush.msra.mxu0 %v4780
      %4822 = vmatmul.f32.gmra.mxu0 %v4784
      %v4823 = vpop.f32.mrf.mxu0
      %v4824 = vadd.f32 0.0, %v4823
      %4825 = vdwg.mxu0
      %v4826 = vadd.f32 %v4533, %v4804
      %v4827 = vadd.f32 %v4553, %v4824
      %s4828 = scalar_lea.vmem %s9, 28
      %v4829 = vld [vmem:[%s4828] sm:$0xf]
      %4830 = vrot.lane.b32.xlu0 %v4437, 80
      %v4831 = vpop.permute.xlu0 %4830
      %4832 = vrot.lane.b32.xlu0 %v4438, 80
      %v4833 = vpop.permute.xlu0 %4832
      %4834 = vrot.lane.b32.xlu0 %v4439, 80
      %v4835 = vpop.permute.xlu0 %4834
      %v4836 = vsel %vm3037, %v4831, %v4833
      %v4837 = vsel %vm3037, %v4833, %v4835
      %v4841 = vsel %vm1198, %v4829, 0
      %4843 = vmatpush.msra.mxu0 0.0
      %4844 = vmatpush.msra.mxu0 0.0
      %4845 = vmatpush.msra.mxu0 0.0
      %4846 = vmatpush.msra.mxu0 0.0
      %4847 = vmatpush.msra.mxu0 0.0
      %4848 = vmatpush.msra.mxu0 0.0
      %4849 = vmatpush.msra.mxu0 0.0
      %4850 = vmatpush.msra.mxu0 0.0
      %4851 = vmatpush.msra.mxu0 0.0
      %4852 = vmatpush.msra.mxu0 0.0
      %4853 = vmatpush.msra.mxu0 0.0
      %4854 = vmatpush.msra.mxu0 0.0
      %4855 = vmatpush.msra.mxu0 0.0
      %4856 = vmatpush.msra.mxu0 0.0
      %4857 = vmatpush.msra.mxu0 0.0
      %4858 = vmatpush.msra.mxu0 %v4836
      %4859 = vmatmul.f32.gmra.mxu0 %v4841
      %v4860 = vpop.f32.mrf.mxu0
      %v4861 = vadd.f32 0.0, %v4860
      %4862 = vdwg.mxu0
      %4863 = vmatpush.msra.mxu0 0.0
      %4864 = vmatpush.msra.mxu0 0.0
      %4865 = vmatpush.msra.mxu0 0.0
      %4866 = vmatpush.msra.mxu0 0.0
      %4867 = vmatpush.msra.mxu0 0.0
      %4868 = vmatpush.msra.mxu0 0.0
      %4869 = vmatpush.msra.mxu0 0.0
      %4870 = vmatpush.msra.mxu0 0.0
      %4871 = vmatpush.msra.mxu0 0.0
      %4872 = vmatpush.msra.mxu0 0.0
      %4873 = vmatpush.msra.mxu0 0.0
      %4874 = vmatpush.msra.mxu0 0.0
      %4875 = vmatpush.msra.mxu0 0.0
      %4876 = vmatpush.msra.mxu0 0.0
      %4877 = vmatpush.msra.mxu0 0.0
      %4878 = vmatpush.msra.mxu0 %v4837
      %4879 = vmatmul.f32.gmra.mxu0 %v4841
      %v4880 = vpop.f32.mrf.mxu0
      %v4881 = vadd.f32 0.0, %v4880
      %4882 = vdwg.mxu0
      %v4883 = vadd.f32 %v4641, %v4861
      %v4884 = vadd.f32 %v4661, %v4881
      %s4885 = scalar_lea.vmem %s9, 32
      %v4886 = vld [vmem:[%s4885] sm:$0xf]
      %4887 = vrot.lane.b32.xlu0 %v4437, 79
      %v4888 = vpop.permute.xlu0 %4887
      %4889 = vrot.lane.b32.xlu0 %v4438, 79
      %v4890 = vpop.permute.xlu0 %4889
      %4891 = vrot.lane.b32.xlu0 %v4439, 79
      %v4892 = vpop.permute.xlu0 %4891
      %v4893 = vsel %vm3315, %v4888, %v4890
      %v4894 = vsel %vm3315, %v4890, %v4892
      %v4898 = vsel %vm1198, %v4886, 0
      %4900 = vmatpush.msra.mxu0 0.0
      %4901 = vmatpush.msra.mxu0 0.0
      %4902 = vmatpush.msra.mxu0 0.0
      %4903 = vmatpush.msra.mxu0 0.0
      %4904 = vmatpush.msra.mxu0 0.0
      %4905 = vmatpush.msra.mxu0 0.0
      %4906 = vmatpush.msra.mxu0 0.0
      %4907 = vmatpush.msra.mxu0 0.0
      %4908 = vmatpush.msra.mxu0 0.0
      %4909 = vmatpush.msra.mxu0 0.0
      %4910 = vmatpush.msra.mxu0 0.0
      %4911 = vmatpush.msra.mxu0 0.0
      %4912 = vmatpush.msra.mxu0 0.0
      %4913 = vmatpush.msra.mxu0 0.0
      %4914 = vmatpush.msra.mxu0 0.0
      %4915 = vmatpush.msra.mxu0 %v4893
      %4916 = vmatmul.f32.gmra.mxu0 %v4898
      %v4917 = vpop.f32.mrf.mxu0
      %v4918 = vadd.f32 0.0, %v4917
      %4919 = vdwg.mxu0
      %4920 = vmatpush.msra.mxu0 0.0
      %4921 = vmatpush.msra.mxu0 0.0
      %4922 = vmatpush.msra.mxu0 0.0
      %4923 = vmatpush.msra.mxu0 0.0
      %4924 = vmatpush.msra.mxu0 0.0
      %4925 = vmatpush.msra.mxu0 0.0
      %4926 = vmatpush.msra.mxu0 0.0
      %4927 = vmatpush.msra.mxu0 0.0
      %4928 = vmatpush.msra.mxu0 0.0
      %4929 = vmatpush.msra.mxu0 0.0
      %4930 = vmatpush.msra.mxu0 0.0
      %4931 = vmatpush.msra.mxu0 0.0
      %4932 = vmatpush.msra.mxu0 0.0
      %4933 = vmatpush.msra.mxu0 0.0
      %4934 = vmatpush.msra.mxu0 0.0
      %4935 = vmatpush.msra.mxu0 %v4894
      %4936 = vmatmul.f32.gmra.mxu0 %v4898
      %v4937 = vpop.f32.mrf.mxu0
      %v4938 = vadd.f32 0.0, %v4937
      %4939 = vdwg.mxu0
      %v4940 = vadd.f32 %v4749, %v4918
      %v4941 = vadd.f32 %v4769, %v4938
      %v4942 = vmul.f32 %v4826, %v588
      %v4943 = vmul.f32 %v4827, %v589
      %v4944 = vadd.f32 %v4883, %v4942
      %v4945 = vadd.f32 %v4884, %v4943
      %v4946 = vmul.f32 %v4940, %v594
      %v4947 = vmul.f32 %v4941, %v595
      %v4948 = vadd.f32 %v4944, %v4946
      %v4949 = vadd.f32 %v4945, %v4947
      %v4950 = vld [vmem:[%s10] sm:$0xf]
      %4952 = vset.pattern.permute.xlu0 0
      %4953 = vperm.xlu0 %4952, %v4950
      %v4954 = vpop.permute.xlu0 %4953
      %v4956 = vadd.f32 %v4948, %v4954
      %v4957 = vadd.f32 %v4949, %v4954
      %v4958 = vsel %vm770, %v4956, 0.0
      %v4959 = vsel %vm770, %v4957, 0.0
      %v4960 = vadd.f32 %v4958, %v4959
      %4961 = vadd.xlane.f32.xlu0 %v4960
      %v4962 = vpop.xlane.xlu0 %4961
      %v4963 = vrcp.pop 256.0
      %v4964 = vmul.f32 256.0, %v4963
      %v4965 = vsub.f32 1.0, %v4964
      %v4966 = vmul.f32 %v4963, %v4965
      %v4967 = vadd.f32 %v4963, %v4966
      %vm4968 = vweird.f32 %v4963
      %v4969 = vsel %vm4968, %v4963, %v4967
      %v4970 = vmul.f32 %v4962, %v4969
      %v4971 = vmul.f32 %v4956, %v4956
      %v4972 = vmul.f32 %v4957, %v4957
      %v4973 = vsel %vm770, %v4971, 0.0
      %v4974 = vsel %vm770, %v4972, 0.0
      %v4975 = vadd.f32 %v4973, %v4974
      %4976 = vadd.xlane.f32.xlu0 %v4975
      %v4977 = vpop.xlane.xlu0 %4976
      %v4978 = vmul.f32 %v4977, %v4969
      %v4979 = vmul.f32 %v4970, %v4970
      %v4980 = vsub.f32 %v4978, %v4979
      %v4981 = vsub.f32 %v4956, %v4970
      %v4982 = vsub.f32 %v4957, %v4970
      %v4983 = vadd.f32 %v4980, 1e-05
      %v4984 = vrsqrt.pop %v4983
      %v4985 = vmul.f32 %v4984, %v4983
      %v4986 = vmul.f32 %v4985, %v4984
      %v4987 = vmul.f32 0.5, %v4986
      %v4988 = vsub.f32 1.5, %v4987
      %v4989 = vmul.f32 %v4984, %v4988
      %vm4990 = vweird.f32 %v4983
      %vm4991 = vweird.f32 %v4984
      %vm4992 = vmor %vm4990, %vm4991
      %v4993 = vsel %vm4992, %v4984, %v4989
      %v4994 = vmul.f32 %v4981, %v4993
      %v4995 = vmul.f32 %v4982, %v4993
      %v4996 = vld [vmem:[%s515] sm:$0x77]
      %v4997 = vld [vmem:[%s11] sm:$0xff]
      %v4998 = vld [vmem:[%s12] sm:$0xff]
      %5000 = vset.pattern.permute.xlu0 0
      %5001 = vperm.xlu0 %5000, %v4998
      %v5002 = vpop.permute.xlu0 %5001
      %5005 = vst [vmem:[#allocation1] ss:$2 sm:$0xff] %v4996
      %v5006 = vld.sshfl [vmem:[#allocation1] sm:$0xff pattern:$0x75316420]
      %v5007 = vld.sshfl [vmem:[#allocation1 + $0x8] sm:$0xff pattern:$0x75316420]
      %vm5008 = vcmask 23552
      %v5010 = vsel %vm5008, %v4997, 0
      %vm5012 = vcmask 1042432
      %v5013 = vsel %vm5012, %v5006, 0
      %v5015 = vsel %vm5012, %v5007, 0
      %5017 = vmatpush.msra.mxu0 0.0
      %5018 = vmatpush.msra.mxu0 0.0
      %5019 = vmatpush.msra.mxu0 0.0
      %5020 = vmatpush.msra.mxu0 0.0
      %5021 = vmatpush.msra.mxu0 0.0
      %5022 = vmatpush.msra.mxu0 0.0
      %5023 = vmatpush.msra.mxu0 0.0
      %5024 = vmatpush.msra.mxu0 0.0
      %5025 = vmatpush.msra.mxu0 0.0
      %5026 = vmatpush.msra.mxu0 0.0
      %5027 = vmatpush.msra.mxu0 0.0
      %5028 = vmatpush.msra.mxu0 0.0
      %5029 = vmatpush.msra.mxu0 0.0
      %5030 = vmatpush.msra.mxu0 0.0
      %5031 = vmatpush.msra.mxu0 0.0
      %5032 = vmatpush.msra.mxu0 %v5013
      %5033 = vmatmul.f32.gmra.mxu0 %v5010
      %v5034 = vpop.f32.mrf.mxu0
      %v5035 = vadd.f32 %v5002, %v5034
      %5036 = vdwg.mxu0
      %5037 = vmatpush.msra.mxu0 0.0
      %5038 = vmatpush.msra.mxu0 0.0
      %5039 = vmatpush.msra.mxu0 0.0
      %5040 = vmatpush.msra.mxu0 0.0
      %5041 = vmatpush.msra.mxu0 0.0
      %5042 = vmatpush.msra.mxu0 0.0
      %5043 = vmatpush.msra.mxu0 0.0
      %5044 = vmatpush.msra.mxu0 0.0
      %5045 = vmatpush.msra.mxu0 0.0
      %5046 = vmatpush.msra.mxu0 0.0
      %5047 = vmatpush.msra.mxu0 0.0
      %5048 = vmatpush.msra.mxu0 0.0
      %5049 = vmatpush.msra.mxu0 0.0
      %5050 = vmatpush.msra.mxu0 0.0
      %5051 = vmatpush.msra.mxu0 0.0
      %5052 = vmatpush.msra.mxu0 %v5015
      %5053 = vmatmul.f32.gmra.mxu0 %v5010
      %v5054 = vpop.f32.mrf.mxu0
      %v5055 = vadd.f32 %v5002, %v5054
      %5056 = vdwg.mxu0
      %v5057 = vmul.f32 %v5035, %v4994
      %v5058 = vmul.f32 %v5055, %v4995
      %v5061 = vrot.slane %v5035, 4
      %v5062 = vrot.slane %v5055, 4
      %v5065 = vadd.f32 %v5057, %v5061
      %v5066 = vadd.f32 %v5058, %v5062
      %v5069 = vrot.slane %v5066, 4
      %v5070 = vsel %vm770, %v5065, %v5069
      %5072 = vst [vmem:[%s520] sm:$0xff] %v5070
      %p5073 = scmp.lt.s32.totalorder %s24, 1
      %s5074 = scalar_select %p5073, %s24, 1
      %s5075 = smul.addr %s5074, 2
      %s5076 = smul.addr %s5075, 4
      %s5077 = scalar_lea.vmem %s13, %s5076
      // Predicated region
      $region73: #{ssa_forward.1} parent=71 // pred_check
        %p5078 = pneg %p340
      $region74: #{ssa_forward.1} parent=71 // pred_check_branch
        %5080 = sbr.rel (%p5078) target = $region76
      $region75: #{ssa_forward.1} parent=71 // pred_region
        _
      $region76: #{ssa_forward.1} parent=71 // pred_fallthru
        _
    $region72: #{ssa_forward.1} parent=5 // pred_fallthru
      _
    %p5081 = scmp.le.s32.totalorder 2, %s19
    // Predicated region
    $region77: #{ssa_forward.1} parent=5 // pred_check
      %p5082 = pneg %p5081
    $region78: #{ssa_forward.1} parent=5 // pred_check_branch
      %5084 = sbr.rel (%p5082) target = $region80
    $region79: #{ssa_forward.1} parent=5 // pred_region
      %s5085 = ssub.s32 %s19, 2
      // Predicated region
      $region81: #{ssa_forward.1} parent=79 // pred_check
        %p5086 = pneg %p346
      $region82: #{ssa_forward.1} parent=79 // pred_check_branch
        %5088 = sbr.rel (%p5086) target = $region84
      $region83: #{ssa_forward.1} parent=79 // pred_region
        %p5089 = scmp.lt.s32.totalorder %s25, 1
        %s5090 = scalar_select %p5089, %s25, 1
        %s5091 = smul.addr %s5090, 2
        %s5092 = smul.addr %s5091, 4
        %s5093 = scalar_lea.vmem %s13, %s5092
      $region84: #{ssa_forward.1} parent=79 // pred_fallthru
        _
    $region80: #{ssa_forward.1} parent=5 // pred_fallthru
      _
  $region6: #{ssa_forward.1} parent=0 // loop_footer
    %s23 = sadd.s32 1, %s19
  $region7: #{ssa_forward.1} parent=0 // loop_footer_branch
    %18 = sbr.rel target = $region3
  $region8: #{ssa_forward.1} parent=0 // loop_exit
    _

</llo_original>
